<compile_context>
chip_gen: v6e
topology: v6e:2x2x1
jax: 0.10.0
libtpu: 0.0.40
codegen_flags: <defaults>
</compile_context>

<pallas_src>
import functools

import jax
import jax.numpy as jnp
from jax.experimental import pallas as pl
from jax.experimental.pallas import tpu as pltpu


def fire_kernel(x_ref, wsq_ref, bsq_ref, w1_ref, b1_ref, w9_ref, b3_ref,
                out_ref, spad_ref, im2col_ref, *, H, Wp, W, Csq):
    """One batch element per grid step.

    x_ref     : (1, H*Wp, Cin)   bf16  input activations (NHWC, spatial flat)
    wsq_ref   : (Cin, Csq)       bf16  squeeze 1x1 weights
    bsq_ref   : (1, Csq)         f32   squeeze bias
    w1_ref    : (Csq, E1)        bf16  expand1x1 weights
    b1_ref    : (1, E1)          f32   expand1x1 bias
    w9_ref    : (9*Csq, E3)      bf16  expand3x3 weights, rows ordered (dy,dx,c)
    b3_ref    : (1, E3)          f32   expand3x3 bias
    out_ref   : (1, H*Wp, E1+E3) bf16
    spad_ref  : (H+2, Wp+2, Csq) bf16  zero-padded squeeze activations
    im2col_ref: (H*Wp, 9*Csq)    bf16  im2col slab for the 3x3 conv
    """
    zeros = functools.partial(jnp.zeros, dtype=spad_ref.dtype)

    # ---- squeeze: 1x1 conv + ReLU (bf16 MXU operands, f32 accumulate) ----
    x2d = x_ref[0]                                            # (H*Wp, Cin)
    s = jnp.maximum(
        jnp.dot(x2d, wsq_ref[...], preferred_element_type=jnp.float32)
        + bsq_ref[...],
        0.0)                                                  # (H*Wp, Csq) f32
    s_bf = s.astype(jnp.bfloat16)

    # ---- expand1x1: K = Csq, N = E1 matmul (+ bias), f32 accumulation ----
    e1 = (jnp.dot(s_bf, w1_ref[...], preferred_element_type=jnp.float32)
          + b1_ref[...])                                      # (H*Wp, E1) f32

    # ---- zero-padded squeeze map ----
    s_sp = s_bf.reshape(H, Wp, Csq)
    if Wp != W:
        # Padded columns of s are bias+ReLU garbage; zero them so the dx=+1
        # taps do not pollute the true right-edge outputs.
        col = jax.lax.broadcasted_iota(jnp.int32, (H, Wp, Csq), 1)
        s_sp = jnp.where(col < W, s_sp, jnp.zeros_like(s_sp))

    # Only the 1-pixel halo needs re-zeroing each step (interior is fully
    # overwritten); done every step so it is safe under any megacore split.
    spad_ref[0:1] = zeros((1, Wp + 2, Csq))
    spad_ref[H + 1:H + 2] = zeros((1, Wp + 2, Csq))
    spad_ref[1:H + 1, 0:1] = zeros((H, 1, Csq))
    spad_ref[1:H + 1, Wp + 1:Wp + 2] = zeros((H, 1, Csq))
    spad_ref[1:H + 1, 1:Wp + 1] = s_sp

    # ---- build the contiguous (H*Wp, 9*Csq) im2col slab ----
    for dy in range(3):
        for dx in range(3):
            k = 3 * dy + dx
            im2col_ref[:, k * Csq:(k + 1) * Csq] = (
                spad_ref[dy:dy + H, dx:dx + Wp].reshape(H * Wp, Csq))

    # ---- expand3x3: ONE K = 9*Csq contraction, no zero output columns ----
    e3 = (jnp.dot(im2col_ref[...], w9_ref[...],
                  preferred_element_type=jnp.float32)
          + b3_ref[...])                                      # (H*Wp, E3) f32

    # ---- ReLU + single full-width, lane-dense bf16 store ----
    out_ref[0] = jnp.concatenate(
        [jnp.maximum(e1, 0.0), jnp.maximum(e3, 0.0)], axis=1
    ).astype(out_ref.dtype)


def fire_forward(x_nchw, params):
    """Fire module forward. Input is NCHW (PyTorch layout); output is NCHW bf16."""
    N, Cin, H, W = x_nchw.shape
    Csq = params["squeeze_w"].shape[0]
    E1 = params["expand1x1_w"].shape[0]
    E3 = params["expand3x3_w"].shape[0]
    Eo = E1 + E3

    # Pad W to a multiple of 8 (55->56, 27->32, 13->16) so in-kernel reshapes
    # and the output store stay sublane/lane dense; crop on output.
    Wp = ((W + 7) // 8) * 8

    # NCHW -> NHWC -> (N, H*Wp, C): channels on lanes, spatial on sublanes.
    x = jnp.transpose(x_nchw, (0, 2, 3, 1))
    if Wp != W:
        x = jnp.pad(x, ((0, 0), (0, 0), (0, Wp - W), (0, 0)))
    x = x.reshape(N, H * Wp, Cin).astype(jnp.bfloat16)

    # ---- weights as channel-contraction matrices (bf16), biases f32 ----
    wsq = params["squeeze_w"].reshape(Csq, Cin).T.astype(jnp.bfloat16)
    bsq = params["squeeze_b"].reshape(1, Csq).astype(jnp.float32)
    w1 = params["expand1x1_w"].reshape(E1, Csq).T.astype(jnp.bfloat16)
    b1 = params["expand1x1_b"].reshape(1, E1).astype(jnp.float32)
    # (E3, Csq, 3, 3) -> (3, 3, Csq, E3) -> (9*Csq, E3); row order (dy, dx, c)
    # matches the im2col column blocks built in the kernel.
    w9 = jnp.transpose(params["expand3x3_w"], (2, 3, 1, 0)).reshape(9 * Csq, E3)
    w9 = w9.astype(jnp.bfloat16)
    b3 = params["expand3x3_b"].reshape(1, E3).astype(jnp.float32)

    kernel = functools.partial(fire_kernel, H=H, Wp=Wp, W=W, Csq=Csq)

    flops = 2 * N * H * Wp * (Cin * Csq + Csq * E1 + 9 * Csq * E3)
    weight_bytes = (Cin * Csq + Csq * E1 + 9 * Csq * E3) * 2 + (Csq + Eo) * 4
    bytes_accessed = N * H * Wp * (Cin + Eo) * 2 + weight_bytes

    # Derived VMEM budget: double-buffered in/out blocks + weights + scratch
    # + live f32 intermediates, with headroom; capped for v7x (64 MiB/core).
    block_bytes = (2 * H * Wp * Cin * 2          # x block (double buffered)
                   + 2 * H * Wp * Eo * 2         # out block (double buffered)
                   + 2 * weight_bytes            # weight/bias blocks
                   + (H + 2) * (Wp + 2) * Csq * 2  # spad scratch
                   + H * Wp * 9 * Csq * 2        # im2col scratch
                   + H * Wp * (Csq + Eo) * 4)    # live f32 intermediates
    vmem_limit = min(int(1.5 * block_bytes) + (4 << 20), 64 << 20)

    out_flat = pl.pallas_call(
        kernel,
        out_shape=jax.ShapeDtypeStruct((N, H * Wp, Eo), jnp.bfloat16),
        grid=(N,),
        in_specs=[
            pl.BlockSpec((1, H * Wp, Cin), lambda n: (n, 0, 0)),
            pl.BlockSpec((Cin, Csq), lambda n: (0, 0)),
            pl.BlockSpec((1, Csq), lambda n: (0, 0)),
            pl.BlockSpec((Csq, E1), lambda n: (0, 0)),
            pl.BlockSpec((1, E1), lambda n: (0, 0)),
            pl.BlockSpec((9 * Csq, E3), lambda n: (0, 0)),
            pl.BlockSpec((1, E3), lambda n: (0, 0)),
        ],
        out_specs=pl.BlockSpec((1, H * Wp, Eo), lambda n: (n, 0, 0)),
        scratch_shapes=[
            pltpu.VMEM((H + 2, Wp + 2, Csq), jnp.bfloat16),
            pltpu.VMEM((H * Wp, 9 * Csq), jnp.bfloat16),
        ],
        compiler_params=pltpu.CompilerParams(
            dimension_semantics=("parallel",),
            vmem_limit_bytes=vmem_limit),
        cost_estimate=pl.CostEstimate(
            flops=flops, transcendentals=0, bytes_accessed=bytes_accessed),
    )(x, wsq, bsq, w1, b1, w9, b3)

    out = out_flat.reshape(N, H, Wp, Eo)[:, :, :W, :]
    return jnp.transpose(out, (0, 3, 1, 2))                    # NCHW, bf16


# ---------------- pure-JAX reference (for correctness check) ----------------
def _conv2d_nchw(x, w, b, padding):
    out = jax.lax.conv_general_dilated(
        x, w, window_strides=(1, 1), padding=padding,
        dimension_numbers=("NCHW", "OIHW", "NCHW"))
    return out + b[None, :, None, None]


def fire_reference(x, params):
    s = jax.nn.relu(_conv2d_nchw(x, params["squeeze_w"],
                                 params["squeeze_b"], "VALID"))
    e1 = jax.nn.relu(_conv2d_nchw(s, params["expand1x1_w"],
                                  params["expand1x1_b"], "VALID"))
    e3 = jax.nn.relu(_conv2d_nchw(s, params["expand3x3_w"],
                                  params["expand3x3_b"], ((1, 1), (1, 1))))
    return jnp.concatenate([e1, e3], axis=1)


def _make_params(key, Cin, Csq, E1, E3):
    ks = jax.random.split(key, 6)
    return {
        "squeeze_w":   0.1 * jax.random.normal(ks[0], (Csq, Cin, 1, 1), jnp.float32),
        "squeeze_b":   0.1 * jax.random.normal(ks[1], (Csq,), jnp.float32),
        "expand1x1_w": 0.1 * jax.random.normal(ks[2], (E1, Csq, 1, 1), jnp.float32),
        "expand1x1_b": 0.1 * jax.random.normal(ks[3], (E1,), jnp.float32),
        "expand3x3_w": 0.1 * jax.random.normal(ks[4], (E3, Csq, 3, 3), jnp.float32),
        "expand3x3_b": 0.1 * jax.random.normal(ks[5], (E3,), jnp.float32),
    }


def _run_case(key, N, Cin, H, W, Csq, E1, E3):
    kx, kp = jax.random.split(key)
    x = jax.random.normal(kx, (N, Cin, H, W), dtype=jnp.float32)
    params = _make_params(kp, Cin, Csq, E1, E3)

    out = fire_forward(x, params)
    jax.block_until_ready(out)

    ref = fire_reference(x, params)
    assert out.shape == (N, E1 + E3, H, W), out.shape
    # bf16 matmul operands + bf16 output store vs. an all-f32 reference.
    assert jnp.allclose(out.astype(jnp.float32), ref, atol=3e-2, rtol=3e-2), \
        "mismatch vs reference"


if __name__ == "__main__":
    key = jax.random.PRNGKey(0)
    k1, k2 = jax.random.split(key)

    # Small aligned case (W already a multiple of 8).
    _run_case(k1, N=2, Cin=4, H=16, W=16, Csq=3, E1=4, E3=4)
    # Non-aligned width case (exercises the W-padding + masking path, 13->16).
    _run_case(k2, N=1, Cin=8, H=13, W=13, Csq=6, E1=8, E3=8)

    print("KERNEL_OK")
</pallas_src>

<mosaic_0001>
module attributes {stable_mosaic.version = 11 : i64} {
  func.func @fire_kernel(%arg0: i32, %arg1: memref<1x256x4xbf16, #tpu.memory_space<vmem>>, %arg2: memref<4x3xbf16, #tpu.memory_space<vmem>>, %arg3: memref<1x3xf32, #tpu.memory_space<vmem>>, %arg4: memref<3x4xbf16, #tpu.memory_space<vmem>>, %arg5: memref<1x4xf32, #tpu.memory_space<vmem>>, %arg6: memref<27x4xbf16, #tpu.memory_space<vmem>>, %arg7: memref<1x4xf32, #tpu.memory_space<vmem>>, %arg8: memref<1x256x8xbf16, #tpu.memory_space<vmem>>, %arg9: memref<18x18x3xbf16, #tpu.memory_space<vmem>>, %arg10: memref<256x27xbf16, #tpu.memory_space<vmem>>) attributes {dimension_semantics = [#tpu.dimension_semantics<parallel>], iteration_bounds = array<i64: 2>, scalar_prefetch = 0 : i64, scratch_operands = 2 : i64, tpu.core_type = #tpu.core_type<tc>, window_params = [{transform_indices = @transform_0, window_bounds = array<i64: 1, 256, 4>}, {pipeline_mode = #tpu.pipeline_mode<synchronous>, transform_indices = @transform_1, window_bounds = array<i64: 4, 3>}, {pipeline_mode = #tpu.pipeline_mode<synchronous>, transform_indices = @transform_2, window_bounds = array<i64: 1, 3>}, {pipeline_mode = #tpu.pipeline_mode<synchronous>, transform_indices = @transform_3, window_bounds = array<i64: 3, 4>}, {pipeline_mode = #tpu.pipeline_mode<synchronous>, transform_indices = @transform_4, window_bounds = array<i64: 1, 4>}, {pipeline_mode = #tpu.pipeline_mode<synchronous>, transform_indices = @transform_5, window_bounds = array<i64: 27, 4>}, {pipeline_mode = #tpu.pipeline_mode<synchronous>, transform_indices = @transform_6, window_bounds = array<i64: 1, 4>}, {transform_indices = @transform_7, window_bounds = array<i64: 1, 256, 8>}]} {
    %c0 = arith.constant 0 : index
    %c0_0 = arith.constant 0 : index
    %c0_1 = arith.constant 0 : index
    %0 = vector.load %arg1[%c0, %c0_0, %c0_1] : memref<1x256x4xbf16, #tpu.memory_space<vmem>>, vector<1x256x4xbf16>
    %1 = vector.shape_cast %0 : vector<1x256x4xbf16> to vector<256x4xbf16>
    %c0_2 = arith.constant 0 : index
    %c0_3 = arith.constant 0 : index
    %2 = vector.load %arg2[%c0_2, %c0_3] : memref<4x3xbf16, #tpu.memory_space<vmem>>, vector<4x3xbf16>
    %cst = arith.constant dense<0.000000e+00> : vector<256x3xf32>
    %3 = tpu.matmul %1, %2, %cst {dimension_numbers = #tpu.dot_dimension_numbers<[1], [0], [0], [1], [0, 0, 1, 1], [], []>} : vector<256x4xbf16>, vector<4x3xbf16>, vector<256x3xf32> -> vector<256x3xf32>
    %c0_4 = arith.constant 0 : index
    %c0_5 = arith.constant 0 : index
    %4 = vector.load %arg3[%c0_4, %c0_5] : memref<1x3xf32, #tpu.memory_space<vmem>>, vector<1x3xf32>
    %5 = vector.broadcast %4 : vector<1x3xf32> to vector<256x3xf32>
    %6 = arith.addf %3, %5 : vector<256x3xf32>
    %cst_6 = arith.constant 0.000000e+00 : f32
    %7 = vector.broadcast %cst_6 : f32 to vector<256x3xf32>
    %8 = arith.maximumf %6, %7 : vector<256x3xf32>
    %9 = arith.truncf %8 : vector<256x3xf32> to vector<256x3xbf16>
    %c0_7 = arith.constant 0 : index
    %c0_8 = arith.constant 0 : index
    %10 = vector.load %arg4[%c0_7, %c0_8] : memref<3x4xbf16, #tpu.memory_space<vmem>>, vector<3x4xbf16>
    %cst_9 = arith.constant dense<0.000000e+00> : vector<256x4xf32>
    %11 = tpu.matmul %9, %10, %cst_9 {dimension_numbers = #tpu.dot_dimension_numbers<[1], [0], [0], [1], [0, 0, 1, 1], [], []>} : vector<256x3xbf16>, vector<3x4xbf16>, vector<256x4xf32> -> vector<256x4xf32>
    %c0_10 = arith.constant 0 : index
    %c0_11 = arith.constant 0 : index
    %12 = vector.load %arg5[%c0_10, %c0_11] : memref<1x4xf32, #tpu.memory_space<vmem>>, vector<1x4xf32>
    %13 = vector.broadcast %12 : vector<1x4xf32> to vector<256x4xf32>
    %14 = arith.addf %11, %13 : vector<256x4xf32>
    %15 = vector.shape_cast %9 : vector<256x3xbf16> to vector<16x16x3xbf16>
    %cst_12 = arith.constant 0.000000e+00 : bf16
    %16 = vector.broadcast %cst_12 : bf16 to vector<1x18x3xbf16>
    %c0_13 = arith.constant 0 : index
    %c0_14 = arith.constant 0 : index
    %c0_15 = arith.constant 0 : index
    %17 = vector.load %arg9[%c0_13, %c0_14, %c0_15] : memref<18x18x3xbf16, #tpu.memory_space<vmem>>, vector<1x18x3xbf16>
    tpu.vector_store %arg9[%c0_13, %c0_14, %c0_15], %16 {strides = array<i32>} : memref<18x18x3xbf16, #tpu.memory_space<vmem>>, vector<1x18x3xbf16>,
    %cst_16 = arith.constant 0.000000e+00 : bf16
    %18 = vector.broadcast %cst_16 : bf16 to vector<1x18x3xbf16>
    %c17 = arith.constant 17 : index
    %c0_17 = arith.constant 0 : index
    %c0_18 = arith.constant 0 : index
    %19 = vector.load %arg9[%c17, %c0_17, %c0_18] : memref<18x18x3xbf16, #tpu.memory_space<vmem>>, vector<1x18x3xbf16>
    tpu.vector_store %arg9[%c17, %c0_17, %c0_18], %18 {strides = array<i32>} : memref<18x18x3xbf16, #tpu.memory_space<vmem>>, vector<1x18x3xbf16>,
    %cst_19 = arith.constant 0.000000e+00 : bf16
    %20 = vector.broadcast %cst_19 : bf16 to vector<16x1x3xbf16>
    %c1 = arith.constant 1 : index
    %c0_20 = arith.constant 0 : index
    %c0_21 = arith.constant 0 : index
    %21 = vector.load %arg9[%c1, %c0_20, %c0_21] : memref<18x18x3xbf16, #tpu.memory_space<vmem>>, vector<16x1x3xbf16>
    tpu.vector_store %arg9[%c1, %c0_20, %c0_21], %20 {strides = array<i32>} : memref<18x18x3xbf16, #tpu.memory_space<vmem>>, vector<16x1x3xbf16>,
    %cst_22 = arith.constant 0.000000e+00 : bf16
    %22 = vector.broadcast %cst_22 : bf16 to vector<16x1x3xbf16>
    %c1_23 = arith.constant 1 : index
    %c17_24 = arith.constant 17 : index
    %c0_25 = arith.constant 0 : index
    %23 = vector.load %arg9[%c1_23, %c17_24, %c0_25] : memref<18x18x3xbf16, #tpu.memory_space<vmem>>, vector<16x1x3xbf16>
    tpu.vector_store %arg9[%c1_23, %c17_24, %c0_25], %22 {strides = array<i32>} : memref<18x18x3xbf16, #tpu.memory_space<vmem>>, vector<16x1x3xbf16>,
    %c1_26 = arith.constant 1 : index
    %c1_27 = arith.constant 1 : index
    %c0_28 = arith.constant 0 : index
    %24 = vector.load %arg9[%c1_26, %c1_27, %c0_28] : memref<18x18x3xbf16, #tpu.memory_space<vmem>>, vector<16x16x3xbf16>
    tpu.vector_store %arg9[%c1_26, %c1_27, %c0_28], %15 {strides = array<i32>} : memref<18x18x3xbf16, #tpu.memory_space<vmem>>, vector<16x16x3xbf16>,
    %c0_29 = arith.constant 0 : index
    %c0_30 = arith.constant 0 : index
    %c0_31 = arith.constant 0 : index
    %25 = vector.load %arg9[%c0_29, %c0_30, %c0_31] : memref<18x18x3xbf16, #tpu.memory_space<vmem>>, vector<16x16x3xbf16>
    %26 = vector.shape_cast %25 : vector<16x16x3xbf16> to vector<256x3xbf16>
    %c0_32 = arith.constant 0 : index
    %c0_33 = arith.constant 0 : index
    %27 = vector.load %arg10[%c0_32, %c0_33] : memref<256x27xbf16, #tpu.memory_space<vmem>>, vector<256x3xbf16>
    tpu.vector_store %arg10[%c0_32, %c0_33], %26 {strides = array<i32>} : memref<256x27xbf16, #tpu.memory_space<vmem>>, vector<256x3xbf16>,
    %c0_34 = arith.constant 0 : index
    %c1_35 = arith.constant 1 : index
    %c0_36 = arith.constant 0 : index
    %28 = vector.load %arg9[%c0_34, %c1_35, %c0_36] : memref<18x18x3xbf16, #tpu.memory_space<vmem>>, vector<16x16x3xbf16>
    %29 = vector.shape_cast %28 : vector<16x16x3xbf16> to vector<256x3xbf16>
    %c0_37 = arith.constant 0 : index
    %c3 = arith.constant 3 : index
    %30 = vector.load %arg10[%c0_37, %c3] : memref<256x27xbf16, #tpu.memory_space<vmem>>, vector<256x3xbf16>
    tpu.vector_store %arg10[%c0_37, %c3], %29 {strides = array<i32>} : memref<256x27xbf16, #tpu.memory_space<vmem>>, vector<256x3xbf16>,
    %c0_38 = arith.constant 0 : index
    %c2 = arith.constant 2 : index
    %c0_39 = arith.constant 0 : index
    %31 = vector.load %arg9[%c0_38, %c2, %c0_39] : memref<18x18x3xbf16, #tpu.memory_space<vmem>>, vector<16x16x3xbf16>
    %32 = vector.shape_cast %31 : vector<16x16x3xbf16> to vector<256x3xbf16>
    %c0_40 = arith.constant 0 : index
    %c6 = arith.constant 6 : index
    %33 = vector.load %arg10[%c0_40, %c6] : memref<256x27xbf16, #tpu.memory_space<vmem>>, vector<256x3xbf16>
    tpu.vector_store %arg10[%c0_40, %c6], %32 {strides = array<i32>} : memref<256x27xbf16, #tpu.memory_space<vmem>>, vector<256x3xbf16>,
    %c1_41 = arith.constant 1 : index
    %c0_42 = arith.constant 0 : index
    %c0_43 = arith.constant 0 : index
    %34 = vector.load %arg9[%c1_41, %c0_42, %c0_43] : memref<18x18x3xbf16, #tpu.memory_space<vmem>>, vector<16x16x3xbf16>
    %35 = vector.shape_cast %34 : vector<16x16x3xbf16> to vector<256x3xbf16>
    %c0_44 = arith.constant 0 : index
    %c9 = arith.constant 9 : index
    %36 = vector.load %arg10[%c0_44, %c9] : memref<256x27xbf16, #tpu.memory_space<vmem>>, vector<256x3xbf16>
    tpu.vector_store %arg10[%c0_44, %c9], %35 {strides = array<i32>} : memref<256x27xbf16, #tpu.memory_space<vmem>>, vector<256x3xbf16>,
    %c1_45 = arith.constant 1 : index
    %c1_46 = arith.constant 1 : index
    %c0_47 = arith.constant 0 : index
    %37 = vector.load %arg9[%c1_45, %c1_46, %c0_47] : memref<18x18x3xbf16, #tpu.memory_space<vmem>>, vector<16x16x3xbf16>
    %38 = vector.shape_cast %37 : vector<16x16x3xbf16> to vector<256x3xbf16>
    %c0_48 = arith.constant 0 : index
    %c12 = arith.constant 12 : index
    %39 = vector.load %arg10[%c0_48, %c12] : memref<256x27xbf16, #tpu.memory_space<vmem>>, vector<256x3xbf16>
    tpu.vector_store %arg10[%c0_48, %c12], %38 {strides = array<i32>} : memref<256x27xbf16, #tpu.memory_space<vmem>>, vector<256x3xbf16>,
    %c1_49 = arith.constant 1 : index
    %c2_50 = arith.constant 2 : index
    %c0_51 = arith.constant 0 : index
    %40 = vector.load %arg9[%c1_49, %c2_50, %c0_51] : memref<18x18x3xbf16, #tpu.memory_space<vmem>>, vector<16x16x3xbf16>
    %41 = vector.shape_cast %40 : vector<16x16x3xbf16> to vector<256x3xbf16>
    %c0_52 = arith.constant 0 : index
    %c15 = arith.constant 15 : index
    %42 = vector.load %arg10[%c0_52, %c15] : memref<256x27xbf16, #tpu.memory_space<vmem>>, vector<256x3xbf16>
    tpu.vector_store %arg10[%c0_52, %c15], %41 {strides = array<i32>} : memref<256x27xbf16, #tpu.memory_space<vmem>>, vector<256x3xbf16>,
    %c2_53 = arith.constant 2 : index
    %c0_54 = arith.constant 0 : index
    %c0_55 = arith.constant 0 : index
    %43 = vector.load %arg9[%c2_53, %c0_54, %c0_55] : memref<18x18x3xbf16, #tpu.memory_space<vmem>>, vector<16x16x3xbf16>
    %44 = vector.shape_cast %43 : vector<16x16x3xbf16> to vector<256x3xbf16>
    %c0_56 = arith.constant 0 : index
    %c18 = arith.constant 18 : index
    %45 = vector.load %arg10[%c0_56, %c18] : memref<256x27xbf16, #tpu.memory_space<vmem>>, vector<256x3xbf16>
    tpu.vector_store %arg10[%c0_56, %c18], %44 {strides = array<i32>} : memref<256x27xbf16, #tpu.memory_space<vmem>>, vector<256x3xbf16>,
    %c2_57 = arith.constant 2 : index
    %c1_58 = arith.constant 1 : index
    %c0_59 = arith.constant 0 : index
    %46 = vector.load %arg9[%c2_57, %c1_58, %c0_59] : memref<18x18x3xbf16, #tpu.memory_space<vmem>>, vector<16x16x3xbf16>
    %47 = vector.shape_cast %46 : vector<16x16x3xbf16> to vector<256x3xbf16>
    %c0_60 = arith.constant 0 : index
    %c21 = arith.constant 21 : index
    %48 = vector.load %arg10[%c0_60, %c21] : memref<256x27xbf16, #tpu.memory_space<vmem>>, vector<256x3xbf16>
    tpu.vector_store %arg10[%c0_60, %c21], %47 {strides = array<i32>} : memref<256x27xbf16, #tpu.memory_space<vmem>>, vector<256x3xbf16>,
    %c2_61 = arith.constant 2 : index
    %c2_62 = arith.constant 2 : index
    %c0_63 = arith.constant 0 : index
    %49 = vector.load %arg9[%c2_61, %c2_62, %c0_63] : memref<18x18x3xbf16, #tpu.memory_space<vmem>>, vector<16x16x3xbf16>
    %50 = vector.shape_cast %49 : vector<16x16x3xbf16> to vector<256x3xbf16>
    %c0_64 = arith.constant 0 : index
    %c24 = arith.constant 24 : index
    %51 = vector.load %arg10[%c0_64, %c24] : memref<256x27xbf16, #tpu.memory_space<vmem>>, vector<256x3xbf16>
    tpu.vector_store %arg10[%c0_64, %c24], %50 {strides = array<i32>} : memref<256x27xbf16, #tpu.memory_space<vmem>>, vector<256x3xbf16>,
    %c0_65 = arith.constant 0 : index
    %c0_66 = arith.constant 0 : index
    %52 = vector.load %arg10[%c0_65, %c0_66] : memref<256x27xbf16, #tpu.memory_space<vmem>>, vector<256x27xbf16>
    %c0_67 = arith.constant 0 : index
    %c0_68 = arith.constant 0 : index
    %53 = vector.load %arg6[%c0_67, %c0_68] : memref<27x4xbf16, #tpu.memory_space<vmem>>, vector<27x4xbf16>
    %cst_69 = arith.constant dense<0.000000e+00> : vector<256x4xf32>
    %54 = tpu.matmul %52, %53, %cst_69 {dimension_numbers = #tpu.dot_dimension_numbers<[1], [0], [0], [1], [0, 0, 1, 1], [], []>} : vector<256x27xbf16>, vector<27x4xbf16>, vector<256x4xf32> -> vector<256x4xf32>
    %c0_70 = arith.constant 0 : index
    %c0_71 = arith.constant 0 : index
    %55 = vector.load %arg7[%c0_70, %c0_71] : memref<1x4xf32, #tpu.memory_space<vmem>>, vector<1x4xf32>
    %56 = vector.broadcast %55 : vector<1x4xf32> to vector<256x4xf32>
    %57 = arith.addf %54, %56 : vector<256x4xf32>
    %cst_72 = arith.constant 0.000000e+00 : f32
    %58 = vector.broadcast %cst_72 : f32 to vector<256x4xf32>
    %59 = arith.maximumf %14, %58 : vector<256x4xf32>
    %cst_73 = arith.constant 0.000000e+00 : f32
    %60 = vector.broadcast %cst_73 : f32 to vector<256x4xf32>
    %61 = arith.maximumf %57, %60 : vector<256x4xf32>
    %62 = tpu.concatenate %59, %61 in 1 : vector<256x4xf32>, vector<256x4xf32> -> vector<256x8xf32>
    %63 = arith.truncf %62 : vector<256x8xf32> to vector<256x8xbf16>
    %c0_74 = arith.constant 0 : index
    %c0_75 = arith.constant 0 : index
    %c0_76 = arith.constant 0 : index
    %64 = vector.load %arg8[%c0_74, %c0_75, %c0_76] : memref<1x256x8xbf16, #tpu.memory_space<vmem>>, vector<1x256x8xbf16>
    %65 = vector.shape_cast %64 : vector<1x256x8xbf16> to vector<256x8xbf16>
    %66 = vector.shape_cast %63 : vector<256x8xbf16> to vector<1x256x8xbf16>
    tpu.vector_store %arg8[%c0_74, %c0_75, %c0_76], %66 {strides = array<i32>} : memref<1x256x8xbf16, #tpu.memory_space<vmem>>, vector<1x256x8xbf16>,
    return
  }
  func.func @transform_0(%arg0: i32) -> (i32, i32, i32) {
    %c0_i32 = arith.constant 0 : i32
    %c0_i32_0 = arith.constant 0 : i32
    %c0_i32_1 = arith.constant 0 : i32
    return %arg0, %c0_i32, %c0_i32_0 : i32, i32, i32
  }
  func.func @transform_1(%arg0: i32) -> (i32, i32) {
    %c0_i32 = arith.constant 0 : i32
    %c0_i32_0 = arith.constant 0 : i32
    %c0_i32_1 = arith.constant 0 : i32
    return %c0_i32, %c0_i32_0 : i32, i32
  }
  func.func @transform_2(%arg0: i32) -> (i32, i32) {
    %c0_i32 = arith.constant 0 : i32
    %c0_i32_0 = arith.constant 0 : i32
    %c0_i32_1 = arith.constant 0 : i32
    return %c0_i32, %c0_i32_0 : i32, i32
  }
  func.func @transform_3(%arg0: i32) -> (i32, i32) {
    %c0_i32 = arith.constant 0 : i32
    %c0_i32_0 = arith.constant 0 : i32
    %c0_i32_1 = arith.constant 0 : i32
    return %c0_i32, %c0_i32_0 : i32, i32
  }
  func.func @transform_4(%arg0: i32) -> (i32, i32) {
    %c0_i32 = arith.constant 0 : i32
    %c0_i32_0 = arith.constant 0 : i32
    %c0_i32_1 = arith.constant 0 : i32
    return %c0_i32, %c0_i32_0 : i32, i32
  }
  func.func @transform_5(%arg0: i32) -> (i32, i32) {
    %c0_i32 = arith.constant 0 : i32
    %c0_i32_0 = arith.constant 0 : i32
    %c0_i32_1 = arith.constant 0 : i32
    return %c0_i32, %c0_i32_0 : i32, i32
  }
  func.func @transform_6(%arg0: i32) -> (i32, i32) {
    %c0_i32 = arith.constant 0 : i32
    %c0_i32_0 = arith.constant 0 : i32
    %c0_i32_1 = arith.constant 0 : i32
    return %c0_i32, %c0_i32_0 : i32, i32
  }
  func.func @transform_7(%arg0: i32) -> (i32, i32, i32) {
    %c0_i32 = arith.constant 0 : i32
    %c0_i32_0 = arith.constant 0 : i32
    %c0_i32_1 = arith.constant 0 : i32
    return %arg0, %c0_i32, %c0_i32_0 : i32, i32, i32
  }
}

</mosaic_0001>

<llo_original>
// kernel: tpu_custom_call.1
$region0: #{tpu_custom_call.1}
  #allocation0 [shape = 'u32[]', space=smem, size = 0x4, offset = 0x4, fixed_abs, tag = 'smem constant byte address 0x4 - core index']
  #allocation1 [shape = 'u32[144,128]{1,0:T(1,128)}', space=vmem, size = 0x12000, scoped, tag = 'internal scratch']
  #allocation2 [shape = 'bf16[18,18,3]{2,1,0:T(8,128)(2,1)}', space=vmem, size = 0x1b000, scoped, tag = 'scratch operand']
  #allocation3 [shape = 'bf16[256,27]{1,0:T(8,128)(2,1)}', space=vmem, size = 0x10000, scoped, tag = 'scratch operand']
  %s0 = inlined_call_operand.vmem [shape: bf16[2,256,4], index: 0, kind: input, shape index: {}]
  %s1 = inlined_call_operand.vmem [shape: bf16[4,3], index: 1, kind: input, shape index: {}]
  %s2 = inlined_call_operand.vmem [shape: f32[1,3], index: 2, kind: input, shape index: {}]
  %s3 = inlined_call_operand.vmem [shape: bf16[3,4], index: 3, kind: input, shape index: {}]
  %s4 = inlined_call_operand.vmem [shape: f32[1,4], index: 4, kind: input, shape index: {}]
  %s5 = inlined_call_operand.vmem [shape: bf16[27,4], index: 5, kind: input, shape index: {}]
  %s6 = inlined_call_operand.vmem [shape: f32[1,4], index: 6, kind: input, shape index: {}]
  %s7 = inlined_call_operand.vmem [shape: bf16[2,256,8], index: 7, kind: output, shape index: {}]
  %s8 = sld [smem:[#allocation0]]
  $region61: #{tpu_custom_call.1} parent=0
    _
  %s10 = ssub.s32 1, %s8
  %s11 = scalar_select 0, %s10, %s8
  loop: start=0, step=1, limit=4
  $region2: #{tpu_custom_call.1} parent=0 // loop_pre_header
    _
  $region3: #{tpu_custom_call.1} parent=0 // loop_header
    %s13 = sphi 0, %s17
    %p14 = scmp.ge.s32.totalorder %s13, 4
    %s23 = sphi 0, %s25
    %s26 = sphi 0, %s23
    %s27 = sphi 0, %s26
    %s43 = sphi 0, %s27
    %s47 = sphi 0, %s47
    %s49 = sphi 0, %s47
    %s50 = sphi 0, %s49
    %s64 = sphi 0, %s50
    %s68 = sphi 0, %s68
    %s70 = sphi 0, %s68
    %s71 = sphi 0, %s70
    %s85 = sphi 0, %s71
    %s89 = sphi 0, %s89
    %s91 = sphi 0, %s89
    %s92 = sphi 0, %s91
    %s106 = sphi 0, %s92
    %s110 = sphi 0, %s110
    %s112 = sphi 0, %s110
    %s113 = sphi 0, %s112
    %s127 = sphi 0, %s113
    %s131 = sphi 0, %s131
    %s133 = sphi 0, %s131
    %s134 = sphi 0, %s133
    %s148 = sphi 0, %s134
    %s152 = sphi 0, %s152
    %s154 = sphi 0, %s152
    %s155 = sphi 0, %s154
    %s169 = sphi 0, %s155
    %s175 = sphi 0, %s177
    %s178 = sphi 0, %s175
    %s179 = sphi 0, %s178
    %s195 = sphi 0, %s179
  $region4: #{tpu_custom_call.1} parent=0 // loop_header_branch
    %16 = sbr.rel (%p14) target = $region8
  $region5: #{tpu_custom_call.1} parent=0 // loop_body
    %s18 = ssub.s32 %s13, 1
    %s19 = ssub.s32 %s13, 2
    %s20 = sadd.s32 %s13, 1
    %s21 = ssub.s32 %s13, %s20
    %p22 = scmp.eq.s32.totalorder %s21, 0
    %s24 = sadd.s32 %s23, 1
    %s25 = scalar_select %p22, %s23, %s24
    %p28 = pneg %p22
    %p29 = scmp.eq.s32.totalorder %s13, 1
    %p30 = por %p28, %p29
    %p31 = scmp.ne.s32.totalorder %s23, %s26
    %p32 = scmp.eq.s32.totalorder %s13, 0
    %p33 = por %p31, %p32
    %p34 = scmp.ne.s32.totalorder %s23, %s26
    %p35 = scmp.eq.s32.totalorder %s18, 1
    %p36 = por %p34, %p35
    %p37 = scmp.ne.s32.totalorder %s26, %s27
    %p38 = scmp.eq.s32.totalorder %s18, 0
    %p39 = por %p37, %p38
    %p40 = scmp.ne.s32.totalorder %s26, %s27
    %p41 = scmp.eq.s32.totalorder %s19, 1
    %p42 = por %p40, %p41
    %p44 = scmp.ne.s32.totalorder %s27, %s43
    %p45 = scmp.eq.s32.totalorder %s19, 0
    %p46 = por %p44, %p45
    %s48 = sadd.s32 %s47, 1
    %p51 = scmp.eq.s32.totalorder %s13, 1
    %p52 = scmp.ne.s32.totalorder %s47, %s49
    %p53 = scmp.eq.s32.totalorder %s13, 0
    %p54 = por %p52, %p53
    %p55 = scmp.ne.s32.totalorder %s47, %s49
    %p56 = scmp.eq.s32.totalorder %s18, 1
    %p57 = por %p55, %p56
    %p58 = scmp.ne.s32.totalorder %s49, %s50
    %p59 = scmp.eq.s32.totalorder %s18, 0
    %p60 = por %p58, %p59
    %p61 = scmp.ne.s32.totalorder %s49, %s50
    %p62 = scmp.eq.s32.totalorder %s19, 1
    %p63 = por %p61, %p62
    %p65 = scmp.ne.s32.totalorder %s50, %s64
    %p66 = scmp.eq.s32.totalorder %s19, 0
    %p67 = por %p65, %p66
    %s69 = sadd.s32 %s68, 1
    %p72 = scmp.eq.s32.totalorder %s13, 1
    %p73 = scmp.ne.s32.totalorder %s68, %s70
    %p74 = scmp.eq.s32.totalorder %s13, 0
    %p75 = por %p73, %p74
    %p76 = scmp.ne.s32.totalorder %s68, %s70
    %p77 = scmp.eq.s32.totalorder %s18, 1
    %p78 = por %p76, %p77
    %p79 = scmp.ne.s32.totalorder %s70, %s71
    %p80 = scmp.eq.s32.totalorder %s18, 0
    %p81 = por %p79, %p80
    %p82 = scmp.ne.s32.totalorder %s70, %s71
    %p83 = scmp.eq.s32.totalorder %s19, 1
    %p84 = por %p82, %p83
    %p86 = scmp.ne.s32.totalorder %s71, %s85
    %p87 = scmp.eq.s32.totalorder %s19, 0
    %p88 = por %p86, %p87
    %s90 = sadd.s32 %s89, 1
    %p93 = scmp.eq.s32.totalorder %s13, 1
    %p94 = scmp.ne.s32.totalorder %s89, %s91
    %p95 = scmp.eq.s32.totalorder %s13, 0
    %p96 = por %p94, %p95
    %p97 = scmp.ne.s32.totalorder %s89, %s91
    %p98 = scmp.eq.s32.totalorder %s18, 1
    %p99 = por %p97, %p98
    %p100 = scmp.ne.s32.totalorder %s91, %s92
    %p101 = scmp.eq.s32.totalorder %s18, 0
    %p102 = por %p100, %p101
    %p103 = scmp.ne.s32.totalorder %s91, %s92
    %p104 = scmp.eq.s32.totalorder %s19, 1
    %p105 = por %p103, %p104
    %p107 = scmp.ne.s32.totalorder %s92, %s106
    %p108 = scmp.eq.s32.totalorder %s19, 0
    %p109 = por %p107, %p108
    %s111 = sadd.s32 %s110, 1
    %p114 = scmp.eq.s32.totalorder %s13, 1
    %p115 = scmp.ne.s32.totalorder %s110, %s112
    %p116 = scmp.eq.s32.totalorder %s13, 0
    %p117 = por %p115, %p116
    %p118 = scmp.ne.s32.totalorder %s110, %s112
    %p119 = scmp.eq.s32.totalorder %s18, 1
    %p120 = por %p118, %p119
    %p121 = scmp.ne.s32.totalorder %s112, %s113
    %p122 = scmp.eq.s32.totalorder %s18, 0
    %p123 = por %p121, %p122
    %p124 = scmp.ne.s32.totalorder %s112, %s113
    %p125 = scmp.eq.s32.totalorder %s19, 1
    %p126 = por %p124, %p125
    %p128 = scmp.ne.s32.totalorder %s113, %s127
    %p129 = scmp.eq.s32.totalorder %s19, 0
    %p130 = por %p128, %p129
    %s132 = sadd.s32 %s131, 1
    %p135 = scmp.eq.s32.totalorder %s13, 1
    %p136 = scmp.ne.s32.totalorder %s131, %s133
    %p137 = scmp.eq.s32.totalorder %s13, 0
    %p138 = por %p136, %p137
    %p139 = scmp.ne.s32.totalorder %s131, %s133
    %p140 = scmp.eq.s32.totalorder %s18, 1
    %p141 = por %p139, %p140
    %p142 = scmp.ne.s32.totalorder %s133, %s134
    %p143 = scmp.eq.s32.totalorder %s18, 0
    %p144 = por %p142, %p143
    %p145 = scmp.ne.s32.totalorder %s133, %s134
    %p146 = scmp.eq.s32.totalorder %s19, 1
    %p147 = por %p145, %p146
    %p149 = scmp.ne.s32.totalorder %s134, %s148
    %p150 = scmp.eq.s32.totalorder %s19, 0
    %p151 = por %p149, %p150
    %s153 = sadd.s32 %s152, 1
    %p156 = scmp.eq.s32.totalorder %s13, 1
    %p157 = scmp.ne.s32.totalorder %s152, %s154
    %p158 = scmp.eq.s32.totalorder %s13, 0
    %p159 = por %p157, %p158
    %p160 = scmp.ne.s32.totalorder %s152, %s154
    %p161 = scmp.eq.s32.totalorder %s18, 1
    %p162 = por %p160, %p161
    %p163 = scmp.ne.s32.totalorder %s154, %s155
    %p164 = scmp.eq.s32.totalorder %s18, 0
    %p165 = por %p163, %p164
    %p166 = scmp.ne.s32.totalorder %s154, %s155
    %p167 = scmp.eq.s32.totalorder %s19, 1
    %p168 = por %p166, %p167
    %p170 = scmp.ne.s32.totalorder %s155, %s169
    %p171 = scmp.eq.s32.totalorder %s19, 0
    %p172 = por %p170, %p171
    %s173 = ssub.s32 %s13, %s20
    %p174 = scmp.eq.s32.totalorder %s173, 0
    %s176 = sadd.s32 %s175, 1
    %s177 = scalar_select %p174, %s175, %s176
    %p180 = pneg %p174
    %p181 = scmp.eq.s32.totalorder %s13, 1
    %p182 = por %p180, %p181
    %p183 = scmp.ne.s32.totalorder %s175, %s178
    %p184 = scmp.eq.s32.totalorder %s13, 0
    %p185 = por %p183, %p184
    %p186 = scmp.ne.s32.totalorder %s175, %s178
    %p187 = scmp.eq.s32.totalorder %s18, 1
    %p188 = por %p186, %p187
    %p189 = scmp.ne.s32.totalorder %s178, %s179
    %p190 = scmp.eq.s32.totalorder %s18, 0
    %p191 = por %p189, %p190
    %p192 = scmp.ne.s32.totalorder %s178, %s179
    %p193 = scmp.eq.s32.totalorder %s19, 1
    %p194 = por %p192, %p193
    %p196 = scmp.ne.s32.totalorder %s179, %s195
    %p197 = scmp.eq.s32.totalorder %s19, 0
    %p198 = por %p196, %p197
    %p199 = scmp.le.s32.totalorder 1, %s13
    %p200 = scmp.lt.s32.totalorder %s13, 3
    %p201 = pnand %p199, %p200
    %p202 = pneg %p201
    // Predicated region
    $region9: #{tpu_custom_call.1} parent=5 // pred_check
      _
    $region10: #{tpu_custom_call.1} parent=5 // pred_check_branch
      %204 = sbr.rel (%p201) target = $region12
    $region11: #{tpu_custom_call.1} parent=5 // pred_region
      %s205 = ssub.s32 %s13, 1
      // Predicated region
      $region13: #{tpu_custom_call.1} parent=11 // pred_check
        %p206 = pneg %p60
      $region14: #{tpu_custom_call.1} parent=11 // pred_check_branch
        %208 = sbr.rel (%p206) target = $region16
      $region15: #{tpu_custom_call.1} parent=11 // pred_region
        _
      $region16: #{tpu_custom_call.1} parent=11 // pred_fallthru
        _
      // Predicated region
      $region17: #{tpu_custom_call.1} parent=11 // pred_check
        %p209 = pneg %p81
      $region18: #{tpu_custom_call.1} parent=11 // pred_check_branch
        %211 = sbr.rel (%p209) target = $region20
      $region19: #{tpu_custom_call.1} parent=11 // pred_region
        _
      $region20: #{tpu_custom_call.1} parent=11 // pred_fallthru
        _
      // Predicated region
      $region21: #{tpu_custom_call.1} parent=11 // pred_check
        %p212 = pneg %p102
      $region22: #{tpu_custom_call.1} parent=11 // pred_check_branch
        %214 = sbr.rel (%p212) target = $region24
      $region23: #{tpu_custom_call.1} parent=11 // pred_region
        _
      $region24: #{tpu_custom_call.1} parent=11 // pred_fallthru
        _
      // Predicated region
      $region25: #{tpu_custom_call.1} parent=11 // pred_check
        %p215 = pneg %p123
      $region26: #{tpu_custom_call.1} parent=11 // pred_check_branch
        %217 = sbr.rel (%p215) target = $region28
      $region27: #{tpu_custom_call.1} parent=11 // pred_region
        _
      $region28: #{tpu_custom_call.1} parent=11 // pred_fallthru
        _
      // Predicated region
      $region29: #{tpu_custom_call.1} parent=11 // pred_check
        %p218 = pneg %p144
      $region30: #{tpu_custom_call.1} parent=11 // pred_check_branch
        %220 = sbr.rel (%p218) target = $region32
      $region31: #{tpu_custom_call.1} parent=11 // pred_region
        _
      $region32: #{tpu_custom_call.1} parent=11 // pred_fallthru
        _
      // Predicated region
      $region33: #{tpu_custom_call.1} parent=11 // pred_check
        %p221 = pneg %p165
      $region34: #{tpu_custom_call.1} parent=11 // pred_check_branch
        %223 = sbr.rel (%p221) target = $region36
      $region35: #{tpu_custom_call.1} parent=11 // pred_region
        _
      $region36: #{tpu_custom_call.1} parent=11 // pred_fallthru
        _
    $region12: #{tpu_custom_call.1} parent=5 // pred_fallthru
      _
    %p224 = scmp.lt.s32.totalorder %s13, 2
    // Predicated region
    $region37: #{tpu_custom_call.1} parent=5 // pred_check
      %p225 = pneg %p224
    $region38: #{tpu_custom_call.1} parent=5 // pred_check_branch
      %227 = sbr.rel (%p225) target = $region40
    $region39: #{tpu_custom_call.1} parent=5 // pred_region
      // Predicated region
      $region41: #{tpu_custom_call.1} parent=39 // pred_check
        %p228 = pneg %p33
      $region42: #{tpu_custom_call.1} parent=39 // pred_check_branch
        %230 = sbr.rel (%p228) target = $region44
      $region43: #{tpu_custom_call.1} parent=39 // pred_region
        %p231 = scmp.lt.s32.totalorder %s13, 1
        %s232 = scalar_select %p231, %s13, 1
        %s233 = smul.addr %s232, 32
        %s234 = smul.addr %s233, 4
        %s235 = scalar_lea.vmem %s0, %s234
      $region44: #{tpu_custom_call.1} parent=39 // pred_fallthru
        _
    $region40: #{tpu_custom_call.1} parent=5 // pred_fallthru
      _
    %p236 = scmp.le.s32.totalorder 1, %s13
    %p237 = scmp.lt.s32.totalorder %s13, 3
    %p238 = pnand %p236, %p237
    %p239 = pneg %p238
    // Predicated region
    $region45: #{tpu_custom_call.1} parent=5 // pred_check
      _
    $region46: #{tpu_custom_call.1} parent=5 // pred_check_branch
      %241 = sbr.rel (%p238) target = $region48
    $region47: #{tpu_custom_call.1} parent=5 // pred_region
      %s242 = ssub.s32 %s13, 1
      %p243 = scmp.lt.s32.totalorder %s18, 1
      %s244 = scalar_select %p243, %s18, 1
      %s245 = smul.addr %s244, 32
      %s246 = smul.addr %s245, 4
      %s247 = scalar_lea.vmem %s0, %s246
      %p248 = pneg %p39
      %p249 = pneg %p36
      %p250 = pneg %p60
      %p251 = pneg %p57
      %p252 = pneg %p81
      %p253 = pneg %p78
      %p254 = pneg %p102
      %p255 = pneg %p99
      %p256 = pneg %p123
      %p257 = pneg %p120
      %p258 = pneg %p144
      %p259 = pneg %p141
      %p260 = pneg %p165
      %p261 = pneg %p162
      %p262 = pneg %p191
      %p263 = pneg %p188
      %p264 = scmp.lt.s32.totalorder %s18, 1
      %s265 = scalar_select %p264, %s18, 1
      %s266 = smul.addr %s265, 32
      %s267 = smul.addr %s266, 4
      %s268 = scalar_lea.vmem %s7, %s267
      %p269 = scmp.lt.s32.totalorder %s18, 1
      %s270 = scalar_select %p269, %s18, 1
      %s271 = smul.addr %s270, 32
      %s272 = smul.addr %s271, 4
      %s273 = scalar_lea.vmem %s0, %s272
      %p274 = scmp.lt.s32.totalorder %s18, 1
      %s275 = scalar_select %p274, %s18, 1
      %s276 = smul.addr %s275, 32
      %s277 = smul.addr %s276, 4
      %s278 = scalar_lea.vmem %s7, %s277
      %v280 = vld [vmem:[%s273] sm:$0xf]
      %v281 = vld [vmem:[%s273 + $0x4] sm:$0xf]
      %v282 = vld [vmem:[%s273 + $0x8] sm:$0xf]
      %v283 = vld [vmem:[%s273 + $0xc] sm:$0xf]
      %v284 = vld [vmem:[%s273 + $0x10] sm:$0xf]
      %v285 = vld [vmem:[%s273 + $0x14] sm:$0xf]
      %v286 = vld [vmem:[%s273 + $0x18] sm:$0xf]
      %v287 = vld [vmem:[%s273 + $0x1c] sm:$0xf]
      %v288 = vld [vmem:[%s273 + $0x20] sm:$0xf]
      %v289 = vld [vmem:[%s273 + $0x24] sm:$0xf]
      %v290 = vld [vmem:[%s273 + $0x28] sm:$0xf]
      %v291 = vld [vmem:[%s273 + $0x2c] sm:$0xf]
      %v292 = vld [vmem:[%s273 + $0x30] sm:$0xf]
      %v293 = vld [vmem:[%s273 + $0x34] sm:$0xf]
      %v294 = vld [vmem:[%s273 + $0x38] sm:$0xf]
      %v295 = vld [vmem:[%s273 + $0x3c] sm:$0xf]
      %v296 = vld [vmem:[%s273 + $0x40] sm:$0xf]
      %v297 = vld [vmem:[%s273 + $0x44] sm:$0xf]
      %v298 = vld [vmem:[%s273 + $0x48] sm:$0xf]
      %v299 = vld [vmem:[%s273 + $0x4c] sm:$0xf]
      %v300 = vld [vmem:[%s273 + $0x50] sm:$0xf]
      %v301 = vld [vmem:[%s273 + $0x54] sm:$0xf]
      %v302 = vld [vmem:[%s273 + $0x58] sm:$0xf]
      %v303 = vld [vmem:[%s273 + $0x5c] sm:$0xf]
      %v304 = vld [vmem:[%s273 + $0x60] sm:$0xf]
      %v305 = vld [vmem:[%s273 + $0x64] sm:$0xf]
      %v306 = vld [vmem:[%s273 + $0x68] sm:$0xf]
      %v307 = vld [vmem:[%s273 + $0x6c] sm:$0xf]
      %v308 = vld [vmem:[%s273 + $0x70] sm:$0xf]
      %v309 = vld [vmem:[%s273 + $0x74] sm:$0xf]
      %v310 = vld [vmem:[%s273 + $0x78] sm:$0xf]
      %v311 = vld [vmem:[%s273 + $0x7c] sm:$0xf]
      %v312 = vld [vmem:[%s1] sm:$0x3]
      %v313 = vld [vmem:[%s2] sm:$0x1]
      %v315 = vlaneseq
      %v316 = vshrl.u32 %v315, 7
      %v317 = vsub.s32 0, %v316
      %v318 = vrot.slane %v313, %v317
      %v352 = vunpack.c.l.b16 %v280
      %v353 = vunpack.c.l.b16 %v281
      %v354 = vunpack.c.l.b16 %v282
      %v355 = vunpack.c.l.b16 %v283
      %v356 = vunpack.c.l.b16 %v284
      %v357 = vunpack.c.l.b16 %v285
      %v358 = vunpack.c.l.b16 %v286
      %v359 = vunpack.c.l.b16 %v287
      %v360 = vunpack.c.l.b16 %v288
      %v361 = vunpack.c.l.b16 %v289
      %v362 = vunpack.c.l.b16 %v290
      %v363 = vunpack.c.l.b16 %v291
      %v364 = vunpack.c.l.b16 %v292
      %v365 = vunpack.c.l.b16 %v293
      %v366 = vunpack.c.l.b16 %v294
      %v367 = vunpack.c.l.b16 %v295
      %v368 = vunpack.c.l.b16 %v296
      %v369 = vunpack.c.l.b16 %v297
      %v370 = vunpack.c.l.b16 %v298
      %v371 = vunpack.c.l.b16 %v299
      %v372 = vunpack.c.l.b16 %v300
      %v373 = vunpack.c.l.b16 %v301
      %v374 = vunpack.c.l.b16 %v302
      %v375 = vunpack.c.l.b16 %v303
      %v376 = vunpack.c.l.b16 %v304
      %v377 = vunpack.c.l.b16 %v305
      %v378 = vunpack.c.l.b16 %v306
      %v379 = vunpack.c.l.b16 %v307
      %v380 = vunpack.c.l.b16 %v308
      %v381 = vunpack.c.l.b16 %v309
      %v382 = vunpack.c.l.b16 %v310
      %v383 = vunpack.c.l.b16 %v311
      %v384 = vpack.c.b16 %v353, %v352
      %v385 = vpack.c.b16 %v355, %v354
      %v386 = vpack.c.b16 %v357, %v356
      %v387 = vpack.c.b16 %v359, %v358
      %v388 = vpack.c.b16 %v361, %v360
      %v389 = vpack.c.b16 %v363, %v362
      %v390 = vpack.c.b16 %v365, %v364
      %v391 = vpack.c.b16 %v367, %v366
      %v392 = vpack.c.b16 %v369, %v368
      %v393 = vpack.c.b16 %v371, %v370
      %v394 = vpack.c.b16 %v373, %v372
      %v395 = vpack.c.b16 %v375, %v374
      %v396 = vpack.c.b16 %v377, %v376
      %v397 = vpack.c.b16 %v379, %v378
      %v398 = vpack.c.b16 %v381, %v380
      %v399 = vpack.c.b16 %v383, %v382
      %vm400 = vcmask 31744
      %v402 = vsel %vm400, %v384, 0
      %v405 = vsel %vm400, %v385, 0
      %v408 = vsel %vm400, %v386, 0
      %v411 = vsel %vm400, %v387, 0
      %v414 = vsel %vm400, %v388, 0
      %v417 = vsel %vm400, %v389, 0
      %v420 = vsel %vm400, %v390, 0
      %v423 = vsel %vm400, %v391, 0
      %v426 = vsel %vm400, %v392, 0
      %v429 = vsel %vm400, %v393, 0
      %v432 = vsel %vm400, %v394, 0
      %v435 = vsel %vm400, %v395, 0
      %v438 = vsel %vm400, %v396, 0
      %v441 = vsel %vm400, %v397, 0
      %v444 = vsel %vm400, %v398, 0
      %v447 = vsel %vm400, %v399, 0
      %vm449 = vcmask 1041408
      %v451 = vsel %vm449, %v312, 0
      %453 = vmatprep.subr.bf16.mxu0 0
      %454 = vmatpush1.bf16.msra.mxu0 0
      %455 = vmatprep.subr.bf16.mxu0 0
      %456 = vmatpush1.bf16.msra.mxu0 0
      %457 = vmatprep.subr.bf16.mxu0 0
      %458 = vmatpush1.bf16.msra.mxu0 0
      %459 = vmatprep.subr.bf16.mxu0 0
      %460 = vmatpush1.bf16.msra.mxu0 0
      %461 = vmatprep.subr.bf16.mxu0 0
      %462 = vmatpush1.bf16.msra.mxu0 0
      %463 = vmatprep.subr.bf16.mxu0 0
      %464 = vmatpush1.bf16.msra.mxu0 0
      %465 = vmatprep.subr.bf16.mxu0 0
      %466 = vmatpush1.bf16.msra.mxu0 0
      %467 = vmatprep.subr.bf16.mxu0 0
      %468 = vmatpush1.bf16.msra.mxu0 %v451
      %469 = vmatprep.subr.bf16.mxu0 0
      %470 = vmatpush2.bf16.msra.mxu0 0
      %471 = vmatprep.subr.bf16.mxu0 0
      %472 = vmatpush2.bf16.msra.mxu0 0
      %473 = vmatprep.subr.bf16.mxu0 0
      %474 = vmatpush2.bf16.msra.mxu0 0
      %475 = vmatprep.subr.bf16.mxu0 0
      %476 = vmatpush2.bf16.msra.mxu0 0
      %477 = vmatprep.subr.bf16.mxu0 0
      %478 = vmatpush2.bf16.msra.mxu0 0
      %479 = vmatprep.subr.bf16.mxu0 0
      %480 = vmatpush2.bf16.msra.mxu0 0
      %481 = vmatprep.subr.bf16.mxu0 0
      %482 = vmatpush2.bf16.msra.mxu0 0
      %483 = vmatprep.subr.bf16.mxu0 0
      %484 = vmatpush2.bf16.msra.mxu0 0
      %485 = vmatprep.mubr.bf16.mxu0 0
      %486 = vmatmul.mubr.bf16.gmra.mxu0 %v402
      %v487 = vpop.f32.mrf.mxu0
      %v488 = vadd.f32 %v318, %v487
      %v489 = vpop.f32.mrf.mxu0
      %v490 = vpop.f32.mrf.mxu0
      %v491 = vadd.f32 %v318, %v490
      %v492 = vpop.f32.mrf.mxu0
      %493 = vmatprep.mubr.bf16.mxu0 0
      %494 = vmatmul.mubr.bf16.gmra.mxu0 %v405
      %v495 = vpop.f32.mrf.mxu0
      %v496 = vadd.f32 %v318, %v495
      %v497 = vpop.f32.mrf.mxu0
      %v498 = vpop.f32.mrf.mxu0
      %v499 = vadd.f32 %v318, %v498
      %v500 = vpop.f32.mrf.mxu0
      %501 = vmatprep.mubr.bf16.mxu0 0
      %502 = vmatmul.mubr.bf16.gmra.mxu0 %v408
      %v503 = vpop.f32.mrf.mxu0
      %v504 = vadd.f32 %v318, %v503
      %v505 = vpop.f32.mrf.mxu0
      %v506 = vpop.f32.mrf.mxu0
      %v507 = vadd.f32 %v318, %v506
      %v508 = vpop.f32.mrf.mxu0
      %509 = vmatprep.mubr.bf16.mxu0 0
      %510 = vmatmul.mubr.bf16.gmra.mxu0 %v411
      %v511 = vpop.f32.mrf.mxu0
      %v512 = vadd.f32 %v318, %v511
      %v513 = vpop.f32.mrf.mxu0
      %v514 = vpop.f32.mrf.mxu0
      %v515 = vadd.f32 %v318, %v514
      %v516 = vpop.f32.mrf.mxu0
      %517 = vmatprep.mubr.bf16.mxu0 0
      %518 = vmatmul.mubr.bf16.gmra.mxu0 %v414
      %v519 = vpop.f32.mrf.mxu0
      %v520 = vadd.f32 %v318, %v519
      %v521 = vpop.f32.mrf.mxu0
      %v522 = vpop.f32.mrf.mxu0
      %v523 = vadd.f32 %v318, %v522
      %v524 = vpop.f32.mrf.mxu0
      %525 = vmatprep.mubr.bf16.mxu0 0
      %526 = vmatmul.mubr.bf16.gmra.mxu0 %v417
      %v527 = vpop.f32.mrf.mxu0
      %v528 = vadd.f32 %v318, %v527
      %v529 = vpop.f32.mrf.mxu0
      %v530 = vpop.f32.mrf.mxu0
      %v531 = vadd.f32 %v318, %v530
      %v532 = vpop.f32.mrf.mxu0
      %533 = vmatprep.mubr.bf16.mxu0 0
      %534 = vmatmul.mubr.bf16.gmra.mxu0 %v420
      %v535 = vpop.f32.mrf.mxu0
      %v536 = vadd.f32 %v318, %v535
      %v537 = vpop.f32.mrf.mxu0
      %v538 = vpop.f32.mrf.mxu0
      %v539 = vadd.f32 %v318, %v538
      %v540 = vpop.f32.mrf.mxu0
      %541 = vmatprep.mubr.bf16.mxu0 0
      %542 = vmatmul.mubr.bf16.gmra.mxu0 %v423
      %v543 = vpop.f32.mrf.mxu0
      %v544 = vadd.f32 %v318, %v543
      %v545 = vpop.f32.mrf.mxu0
      %v546 = vpop.f32.mrf.mxu0
      %v547 = vadd.f32 %v318, %v546
      %v548 = vpop.f32.mrf.mxu0
      %549 = vmatprep.mubr.bf16.mxu0 0
      %550 = vmatmul.mubr.bf16.gmra.mxu0 %v426
      %v551 = vpop.f32.mrf.mxu0
      %v552 = vadd.f32 %v318, %v551
      %v553 = vpop.f32.mrf.mxu0
      %v554 = vpop.f32.mrf.mxu0
      %v555 = vadd.f32 %v318, %v554
      %v556 = vpop.f32.mrf.mxu0
      %557 = vmatprep.mubr.bf16.mxu0 0
      %558 = vmatmul.mubr.bf16.gmra.mxu0 %v429
      %v559 = vpop.f32.mrf.mxu0
      %v560 = vadd.f32 %v318, %v559
      %v561 = vpop.f32.mrf.mxu0
      %v562 = vpop.f32.mrf.mxu0
      %v563 = vadd.f32 %v318, %v562
      %v564 = vpop.f32.mrf.mxu0
      %565 = vmatprep.mubr.bf16.mxu0 0
      %566 = vmatmul.mubr.bf16.gmra.mxu0 %v432
      %v567 = vpop.f32.mrf.mxu0
      %v568 = vadd.f32 %v318, %v567
      %v569 = vpop.f32.mrf.mxu0
      %v570 = vpop.f32.mrf.mxu0
      %v571 = vadd.f32 %v318, %v570
      %v572 = vpop.f32.mrf.mxu0
      %573 = vmatprep.mubr.bf16.mxu0 0
      %574 = vmatmul.mubr.bf16.gmra.mxu0 %v435
      %v575 = vpop.f32.mrf.mxu0
      %v576 = vadd.f32 %v318, %v575
      %v577 = vpop.f32.mrf.mxu0
      %v578 = vpop.f32.mrf.mxu0
      %v579 = vadd.f32 %v318, %v578
      %v580 = vpop.f32.mrf.mxu0
      %581 = vmatprep.mubr.bf16.mxu0 0
      %582 = vmatmul.mubr.bf16.gmra.mxu0 %v438
      %v583 = vpop.f32.mrf.mxu0
      %v584 = vadd.f32 %v318, %v583
      %v585 = vpop.f32.mrf.mxu0
      %v586 = vpop.f32.mrf.mxu0
      %v587 = vadd.f32 %v318, %v586
      %v588 = vpop.f32.mrf.mxu0
      %589 = vmatprep.mubr.bf16.mxu0 0
      %590 = vmatmul.mubr.bf16.gmra.mxu0 %v441
      %v591 = vpop.f32.mrf.mxu0
      %v592 = vadd.f32 %v318, %v591
      %v593 = vpop.f32.mrf.mxu0
      %v594 = vpop.f32.mrf.mxu0
      %v595 = vadd.f32 %v318, %v594
      %v596 = vpop.f32.mrf.mxu0
      %597 = vmatprep.mubr.bf16.mxu0 0
      %598 = vmatmul.mubr.bf16.gmra.mxu0 %v444
      %v599 = vpop.f32.mrf.mxu0
      %v600 = vadd.f32 %v318, %v599
      %v601 = vpop.f32.mrf.mxu0
      %v602 = vpop.f32.mrf.mxu0
      %v603 = vadd.f32 %v318, %v602
      %v604 = vpop.f32.mrf.mxu0
      %605 = vmatprep.mubr.bf16.mxu0 0
      %606 = vmatmul.mubr.bf16.gmra.mxu0 %v447
      %v607 = vpop.f32.mrf.mxu0
      %v608 = vadd.f32 %v318, %v607
      %v609 = vpop.f32.mrf.mxu0
      %v610 = vpop.f32.mrf.mxu0
      %v611 = vadd.f32 %v318, %v610
      %v612 = vpop.f32.mrf.mxu0
      %613 = vdwg.mxu0
      %v614 = vmax.f32 %v488, 0.0
      %v615 = vmax.f32 %v491, 0.0
      %v616 = vmax.f32 %v496, 0.0
      %v617 = vmax.f32 %v499, 0.0
      %v618 = vmax.f32 %v504, 0.0
      %v619 = vmax.f32 %v507, 0.0
      %v620 = vmax.f32 %v512, 0.0
      %v621 = vmax.f32 %v515, 0.0
      %v622 = vmax.f32 %v520, 0.0
      %v623 = vmax.f32 %v523, 0.0
      %v624 = vmax.f32 %v528, 0.0
      %v625 = vmax.f32 %v531, 0.0
      %v626 = vmax.f32 %v536, 0.0
      %v627 = vmax.f32 %v539, 0.0
      %v628 = vmax.f32 %v544, 0.0
      %v629 = vmax.f32 %v547, 0.0
      %v630 = vmax.f32 %v552, 0.0
      %v631 = vmax.f32 %v555, 0.0
      %v632 = vmax.f32 %v560, 0.0
      %v633 = vmax.f32 %v563, 0.0
      %v634 = vmax.f32 %v568, 0.0
      %v635 = vmax.f32 %v571, 0.0
      %v636 = vmax.f32 %v576, 0.0
      %v637 = vmax.f32 %v579, 0.0
      %v638 = vmax.f32 %v584, 0.0
      %v639 = vmax.f32 %v587, 0.0
      %v640 = vmax.f32 %v592, 0.0
      %v641 = vmax.f32 %v595, 0.0
      %v642 = vmax.f32 %v600, 0.0
      %v643 = vmax.f32 %v603, 0.0
      %v644 = vmax.f32 %v608, 0.0
      %v645 = vmax.f32 %v611, 0.0
      %v646 = vpack.c.bf16 %v615, %v614
      %v647 = vpack.c.bf16 %v617, %v616
      %v648 = vpack.c.bf16 %v619, %v618
      %v649 = vpack.c.bf16 %v621, %v620
      %v650 = vpack.c.bf16 %v623, %v622
      %v651 = vpack.c.bf16 %v625, %v624
      %v652 = vpack.c.bf16 %v627, %v626
      %v653 = vpack.c.bf16 %v629, %v628
      %v654 = vpack.c.bf16 %v631, %v630
      %v655 = vpack.c.bf16 %v633, %v632
      %v656 = vpack.c.bf16 %v635, %v634
      %v657 = vpack.c.bf16 %v637, %v636
      %v658 = vpack.c.bf16 %v639, %v638
      %v659 = vpack.c.bf16 %v641, %v640
      %v660 = vpack.c.bf16 %v643, %v642
      %v661 = vpack.c.bf16 %v645, %v644
      %v662 = vld [vmem:[%s3] sm:$0x3]
      %v663 = vld [vmem:[%s4] sm:$0x1]
      %v665 = vlaneseq
      %v666 = vshrl.u32 %v665, 7
      %v667 = vsub.s32 0, %v666
      %v668 = vrot.slane %v663, %v667
      %vm670 = vcmask 23552
      %v672 = vsel %vm670, %v646, 0
      %v675 = vsel %vm670, %v647, 0
      %v678 = vsel %vm670, %v648, 0
      %v681 = vsel %vm670, %v649, 0
      %v684 = vsel %vm670, %v650, 0
      %v687 = vsel %vm670, %v651, 0
      %v690 = vsel %vm670, %v652, 0
      %v693 = vsel %vm670, %v653, 0
      %v696 = vsel %vm670, %v654, 0
      %v699 = vsel %vm670, %v655, 0
      %v702 = vsel %vm670, %v656, 0
      %v705 = vsel %vm670, %v657, 0
      %v708 = vsel %vm670, %v658, 0
      %v711 = vsel %vm670, %v659, 0
      %v714 = vsel %vm670, %v660, 0
      %v717 = vsel %vm670, %v661, 0
      %vm719 = vcmask 1040384
      %v720 = vsel %vm719, 4294967295, 65535
      %v721 = vsel %vm449, %v720, 0
      %v723 = vand.u32 %v662, %v721
      %725 = vmatprep.subr.bf16.mxu0 0
      %726 = vmatpush1.bf16.msra.mxu0 0
      %727 = vmatprep.subr.bf16.mxu0 0
      %728 = vmatpush1.bf16.msra.mxu0 0
      %729 = vmatprep.subr.bf16.mxu0 0
      %730 = vmatpush1.bf16.msra.mxu0 0
      %731 = vmatprep.subr.bf16.mxu0 0
      %732 = vmatpush1.bf16.msra.mxu0 0
      %733 = vmatprep.subr.bf16.mxu0 0
      %734 = vmatpush1.bf16.msra.mxu0 0
      %735 = vmatprep.subr.bf16.mxu0 0
      %736 = vmatpush1.bf16.msra.mxu0 0
      %737 = vmatprep.subr.bf16.mxu0 0
      %738 = vmatpush1.bf16.msra.mxu0 0
      %739 = vmatprep.subr.bf16.mxu0 0
      %740 = vmatpush1.bf16.msra.mxu0 %v723
      %741 = vmatprep.subr.bf16.mxu0 0
      %742 = vmatpush2.bf16.msra.mxu0 0
      %743 = vmatprep.subr.bf16.mxu0 0
      %744 = vmatpush2.bf16.msra.mxu0 0
      %745 = vmatprep.subr.bf16.mxu0 0
      %746 = vmatpush2.bf16.msra.mxu0 0
      %747 = vmatprep.subr.bf16.mxu0 0
      %748 = vmatpush2.bf16.msra.mxu0 0
      %749 = vmatprep.subr.bf16.mxu0 0
      %750 = vmatpush2.bf16.msra.mxu0 0
      %751 = vmatprep.subr.bf16.mxu0 0
      %752 = vmatpush2.bf16.msra.mxu0 0
      %753 = vmatprep.subr.bf16.mxu0 0
      %754 = vmatpush2.bf16.msra.mxu0 0
      %755 = vmatprep.subr.bf16.mxu0 0
      %756 = vmatpush2.bf16.msra.mxu0 0
      %757 = vmatprep.mubr.bf16.mxu0 0
      %758 = vmatmul.mubr.bf16.gmra.mxu0 %v672
      %v759 = vpop.f32.mrf.mxu0
      %v760 = vadd.f32 %v668, %v759
      %v761 = vpop.f32.mrf.mxu0
      %v762 = vpop.f32.mrf.mxu0
      %v763 = vadd.f32 %v668, %v762
      %v764 = vpop.f32.mrf.mxu0
      %765 = vmatprep.mubr.bf16.mxu0 0
      %766 = vmatmul.mubr.bf16.gmra.mxu0 %v675
      %v767 = vpop.f32.mrf.mxu0
      %v768 = vadd.f32 %v668, %v767
      %v769 = vpop.f32.mrf.mxu0
      %v770 = vpop.f32.mrf.mxu0
      %v771 = vadd.f32 %v668, %v770
      %v772 = vpop.f32.mrf.mxu0
      %773 = vmatprep.mubr.bf16.mxu0 0
      %774 = vmatmul.mubr.bf16.gmra.mxu0 %v678
      %v775 = vpop.f32.mrf.mxu0
      %v776 = vadd.f32 %v668, %v775
      %v777 = vpop.f32.mrf.mxu0
      %v778 = vpop.f32.mrf.mxu0
      %v779 = vadd.f32 %v668, %v778
      %v780 = vpop.f32.mrf.mxu0
      %781 = vmatprep.mubr.bf16.mxu0 0
      %782 = vmatmul.mubr.bf16.gmra.mxu0 %v681
      %v783 = vpop.f32.mrf.mxu0
      %v784 = vadd.f32 %v668, %v783
      %v785 = vpop.f32.mrf.mxu0
      %v786 = vpop.f32.mrf.mxu0
      %v787 = vadd.f32 %v668, %v786
      %v788 = vpop.f32.mrf.mxu0
      %789 = vmatprep.mubr.bf16.mxu0 0
      %790 = vmatmul.mubr.bf16.gmra.mxu0 %v684
      %v791 = vpop.f32.mrf.mxu0
      %v792 = vadd.f32 %v668, %v791
      %v793 = vpop.f32.mrf.mxu0
      %v794 = vpop.f32.mrf.mxu0
      %v795 = vadd.f32 %v668, %v794
      %v796 = vpop.f32.mrf.mxu0
      %797 = vmatprep.mubr.bf16.mxu0 0
      %798 = vmatmul.mubr.bf16.gmra.mxu0 %v687
      %v799 = vpop.f32.mrf.mxu0
      %v800 = vadd.f32 %v668, %v799
      %v801 = vpop.f32.mrf.mxu0
      %v802 = vpop.f32.mrf.mxu0
      %v803 = vadd.f32 %v668, %v802
      %v804 = vpop.f32.mrf.mxu0
      %805 = vmatprep.mubr.bf16.mxu0 0
      %806 = vmatmul.mubr.bf16.gmra.mxu0 %v690
      %v807 = vpop.f32.mrf.mxu0
      %v808 = vadd.f32 %v668, %v807
      %v809 = vpop.f32.mrf.mxu0
      %v810 = vpop.f32.mrf.mxu0
      %v811 = vadd.f32 %v668, %v810
      %v812 = vpop.f32.mrf.mxu0
      %813 = vmatprep.mubr.bf16.mxu0 0
      %814 = vmatmul.mubr.bf16.gmra.mxu0 %v693
      %v815 = vpop.f32.mrf.mxu0
      %v816 = vadd.f32 %v668, %v815
      %v817 = vpop.f32.mrf.mxu0
      %v818 = vpop.f32.mrf.mxu0
      %v819 = vadd.f32 %v668, %v818
      %v820 = vpop.f32.mrf.mxu0
      %821 = vmatprep.mubr.bf16.mxu0 0
      %822 = vmatmul.mubr.bf16.gmra.mxu0 %v696
      %v823 = vpop.f32.mrf.mxu0
      %v824 = vadd.f32 %v668, %v823
      %v825 = vpop.f32.mrf.mxu0
      %v826 = vpop.f32.mrf.mxu0
      %v827 = vadd.f32 %v668, %v826
      %v828 = vpop.f32.mrf.mxu0
      %829 = vmatprep.mubr.bf16.mxu0 0
      %830 = vmatmul.mubr.bf16.gmra.mxu0 %v699
      %v831 = vpop.f32.mrf.mxu0
      %v832 = vadd.f32 %v668, %v831
      %v833 = vpop.f32.mrf.mxu0
      %v834 = vpop.f32.mrf.mxu0
      %v835 = vadd.f32 %v668, %v834
      %v836 = vpop.f32.mrf.mxu0
      %837 = vmatprep.mubr.bf16.mxu0 0
      %838 = vmatmul.mubr.bf16.gmra.mxu0 %v702
      %v839 = vpop.f32.mrf.mxu0
      %v840 = vadd.f32 %v668, %v839
      %v841 = vpop.f32.mrf.mxu0
      %v842 = vpop.f32.mrf.mxu0
      %v843 = vadd.f32 %v668, %v842
      %v844 = vpop.f32.mrf.mxu0
      %845 = vmatprep.mubr.bf16.mxu0 0
      %846 = vmatmul.mubr.bf16.gmra.mxu0 %v705
      %v847 = vpop.f32.mrf.mxu0
      %v848 = vadd.f32 %v668, %v847
      %v849 = vpop.f32.mrf.mxu0
      %v850 = vpop.f32.mrf.mxu0
      %v851 = vadd.f32 %v668, %v850
      %v852 = vpop.f32.mrf.mxu0
      %853 = vmatprep.mubr.bf16.mxu0 0
      %854 = vmatmul.mubr.bf16.gmra.mxu0 %v708
      %v855 = vpop.f32.mrf.mxu0
      %v856 = vadd.f32 %v668, %v855
      %v857 = vpop.f32.mrf.mxu0
      %v858 = vpop.f32.mrf.mxu0
      %v859 = vadd.f32 %v668, %v858
      %v860 = vpop.f32.mrf.mxu0
      %861 = vmatprep.mubr.bf16.mxu0 0
      %862 = vmatmul.mubr.bf16.gmra.mxu0 %v711
      %v863 = vpop.f32.mrf.mxu0
      %v864 = vadd.f32 %v668, %v863
      %v865 = vpop.f32.mrf.mxu0
      %v866 = vpop.f32.mrf.mxu0
      %v867 = vadd.f32 %v668, %v866
      %v868 = vpop.f32.mrf.mxu0
      %869 = vmatprep.mubr.bf16.mxu0 0
      %870 = vmatmul.mubr.bf16.gmra.mxu0 %v714
      %v871 = vpop.f32.mrf.mxu0
      %v872 = vadd.f32 %v668, %v871
      %v873 = vpop.f32.mrf.mxu0
      %v874 = vpop.f32.mrf.mxu0
      %v875 = vadd.f32 %v668, %v874
      %v876 = vpop.f32.mrf.mxu0
      %877 = vmatprep.mubr.bf16.mxu0 0
      %878 = vmatmul.mubr.bf16.gmra.mxu0 %v717
      %v879 = vpop.f32.mrf.mxu0
      %v880 = vadd.f32 %v668, %v879
      %v881 = vpop.f32.mrf.mxu0
      %v882 = vpop.f32.mrf.mxu0
      %v883 = vadd.f32 %v668, %v882
      %v884 = vpop.f32.mrf.mxu0
      %885 = vdwg.mxu0
      %vm886 = vcmask 19456
      %887 = vst.msk [vmem:[#allocation2] sm:$0xf] %vm886, 0
      %888 = vst.msk [vmem:[#allocation2 + $0x4] sm:$0xf] %vm886, 0
      %vm889 = vcmask 16384
      %890 = vst.msk [vmem:[#allocation2 + $0x8] sm:$0x1] %vm889, 0
      %s891 = scalar_lea.vmem [#allocation2], 204
      %892 = vst.msk [vmem:[%s891] sm:$0xf] %vm886, 0
      %893 = vst.msk [vmem:[%s891 + $0x4] sm:$0xf] %vm886, 0
      %894 = vst.msk [vmem:[%s891 + $0x8] sm:$0x1] %vm889, 0
      %s895 = scalar_lea.vmem [#allocation2], 12
      %vm896 = vcmask 16384
      %vm897 = vsmask.f32 256
      %vm898 = vmand %vm896, %vm897
      %v899 = vld [vmem:[%s895] sm:$0x1]
      %v900 = vsel %vm898, 0, %v899
      %901 = vst [vmem:[%s895] sm:$0x1] %v900
      %v902 = vld [vmem:[%s895 + $0xc] sm:$0x1]
      %v903 = vsel %vm898, 0, %v902
      %904 = vst [vmem:[%s895 + $0xc] sm:$0x1] %v903
      %v905 = vld [vmem:[%s895 + $0x18] sm:$0x1]
      %v906 = vsel %vm898, 0, %v905
      %907 = vst [vmem:[%s895 + $0x18] sm:$0x1] %v906
      %v908 = vld [vmem:[%s895 + $0x24] sm:$0x1]
      %v909 = vsel %vm898, 0, %v908
      %910 = vst [vmem:[%s895 + $0x24] sm:$0x1] %v909
      %v911 = vld [vmem:[%s895 + $0x30] sm:$0x1]
      %v912 = vsel %vm898, 0, %v911
      %913 = vst [vmem:[%s895 + $0x30] sm:$0x1] %v912
      %v914 = vld [vmem:[%s895 + $0x3c] sm:$0x1]
      %v915 = vsel %vm898, 0, %v914
      %916 = vst [vmem:[%s895 + $0x3c] sm:$0x1] %v915
      %v917 = vld [vmem:[%s895 + $0x48] sm:$0x1]
      %v918 = vsel %vm898, 0, %v917
      %919 = vst [vmem:[%s895 + $0x48] sm:$0x1] %v918
      %v920 = vld [vmem:[%s895 + $0x54] sm:$0x1]
      %v921 = vsel %vm898, 0, %v920
      %922 = vst [vmem:[%s895 + $0x54] sm:$0x1] %v921
      %v923 = vld [vmem:[%s895 + $0x60] sm:$0x1]
      %v924 = vsel %vm898, 0, %v923
      %925 = vst [vmem:[%s895 + $0x60] sm:$0x1] %v924
      %v926 = vld [vmem:[%s895 + $0x6c] sm:$0x1]
      %v927 = vsel %vm898, 0, %v926
      %928 = vst [vmem:[%s895 + $0x6c] sm:$0x1] %v927
      %v929 = vld [vmem:[%s895 + $0x78] sm:$0x1]
      %v930 = vsel %vm898, 0, %v929
      %931 = vst [vmem:[%s895 + $0x78] sm:$0x1] %v930
      %v932 = vld [vmem:[%s895 + $0x84] sm:$0x1]
      %v933 = vsel %vm898, 0, %v932
      %934 = vst [vmem:[%s895 + $0x84] sm:$0x1] %v933
      %v935 = vld [vmem:[%s895 + $0x90] sm:$0x1]
      %v936 = vsel %vm898, 0, %v935
      %937 = vst [vmem:[%s895 + $0x90] sm:$0x1] %v936
      %v938 = vld [vmem:[%s895 + $0x9c] sm:$0x1]
      %v939 = vsel %vm898, 0, %v938
      %940 = vst [vmem:[%s895 + $0x9c] sm:$0x1] %v939
      %v941 = vld [vmem:[%s895 + $0xa8] sm:$0x1]
      %v942 = vsel %vm898, 0, %v941
      %943 = vst [vmem:[%s895 + $0xa8] sm:$0x1] %v942
      %v944 = vld [vmem:[%s895 + $0xb4] sm:$0x1]
      %v945 = vsel %vm898, 0, %v944
      %946 = vst [vmem:[%s895 + $0xb4] sm:$0x1] %v945
      %vm947 = vsmask.f32 7938
      %vm948 = vmand %vm896, %vm947
      %v949 = vld [vmem:[%s895 + $0x8] sm:$0x1]
      %v950 = vsel %vm948, 0, %v949
      %951 = vst [vmem:[%s895 + $0x8] sm:$0x1] %v950
      %v952 = vld [vmem:[%s895 + $0x14] sm:$0x1]
      %v953 = vsel %vm948, 0, %v952
      %954 = vst [vmem:[%s895 + $0x14] sm:$0x1] %v953
      %v955 = vld [vmem:[%s895 + $0x20] sm:$0x1]
      %v956 = vsel %vm948, 0, %v955
      %957 = vst [vmem:[%s895 + $0x20] sm:$0x1] %v956
      %v958 = vld [vmem:[%s895 + $0x2c] sm:$0x1]
      %v959 = vsel %vm948, 0, %v958
      %960 = vst [vmem:[%s895 + $0x2c] sm:$0x1] %v959
      %v961 = vld [vmem:[%s895 + $0x38] sm:$0x1]
      %v962 = vsel %vm948, 0, %v961
      %963 = vst [vmem:[%s895 + $0x38] sm:$0x1] %v962
      %v964 = vld [vmem:[%s895 + $0x44] sm:$0x1]
      %v965 = vsel %vm948, 0, %v964
      %966 = vst [vmem:[%s895 + $0x44] sm:$0x1] %v965
      %v967 = vld [vmem:[%s895 + $0x50] sm:$0x1]
      %v968 = vsel %vm948, 0, %v967
      %969 = vst [vmem:[%s895 + $0x50] sm:$0x1] %v968
      %v970 = vld [vmem:[%s895 + $0x5c] sm:$0x1]
      %v971 = vsel %vm948, 0, %v970
      %972 = vst [vmem:[%s895 + $0x5c] sm:$0x1] %v971
      %v973 = vld [vmem:[%s895 + $0x68] sm:$0x1]
      %v974 = vsel %vm948, 0, %v973
      %975 = vst [vmem:[%s895 + $0x68] sm:$0x1] %v974
      %v976 = vld [vmem:[%s895 + $0x74] sm:$0x1]
      %v977 = vsel %vm948, 0, %v976
      %978 = vst [vmem:[%s895 + $0x74] sm:$0x1] %v977
      %v979 = vld [vmem:[%s895 + $0x80] sm:$0x1]
      %v980 = vsel %vm948, 0, %v979
      %981 = vst [vmem:[%s895 + $0x80] sm:$0x1] %v980
      %v982 = vld [vmem:[%s895 + $0x8c] sm:$0x1]
      %v983 = vsel %vm948, 0, %v982
      %984 = vst [vmem:[%s895 + $0x8c] sm:$0x1] %v983
      %v985 = vld [vmem:[%s895 + $0x98] sm:$0x1]
      %v986 = vsel %vm948, 0, %v985
      %987 = vst [vmem:[%s895 + $0x98] sm:$0x1] %v986
      %v988 = vld [vmem:[%s895 + $0xa4] sm:$0x1]
      %v989 = vsel %vm948, 0, %v988
      %990 = vst [vmem:[%s895 + $0xa4] sm:$0x1] %v989
      %v991 = vld [vmem:[%s895 + $0xb0] sm:$0x1]
      %v992 = vsel %vm948, 0, %v991
      %993 = vst [vmem:[%s895 + $0xb0] sm:$0x1] %v992
      %v994 = vld [vmem:[%s895 + $0xbc] sm:$0x1]
      %v995 = vsel %vm948, 0, %v994
      %996 = vst [vmem:[%s895 + $0xbc] sm:$0x1] %v995
      %v1013 = vunpack.c.l.b16 %v646
      %v1014 = vunpack.c.h.b16 %v646
      %v1015 = vunpack.c.l.b16 %v647
      %v1016 = vunpack.c.h.b16 %v647
      %v1017 = vunpack.c.l.b16 %v648
      %v1018 = vunpack.c.h.b16 %v648
      %v1019 = vunpack.c.l.b16 %v649
      %v1020 = vunpack.c.h.b16 %v649
      %v1021 = vunpack.c.l.b16 %v650
      %v1022 = vunpack.c.h.b16 %v650
      %v1023 = vunpack.c.l.b16 %v651
      %v1024 = vunpack.c.h.b16 %v651
      %v1025 = vunpack.c.l.b16 %v652
      %v1026 = vunpack.c.h.b16 %v652
      %v1027 = vunpack.c.l.b16 %v653
      %v1028 = vunpack.c.h.b16 %v653
      %v1029 = vunpack.c.l.b16 %v654
      %v1030 = vunpack.c.h.b16 %v654
      %v1031 = vunpack.c.l.b16 %v655
      %v1032 = vunpack.c.h.b16 %v655
      %v1033 = vunpack.c.l.b16 %v656
      %v1034 = vunpack.c.h.b16 %v656
      %v1035 = vunpack.c.l.b16 %v657
      %v1036 = vunpack.c.h.b16 %v657
      %v1037 = vunpack.c.l.b16 %v658
      %v1038 = vunpack.c.h.b16 %v658
      %v1039 = vunpack.c.l.b16 %v659
      %v1040 = vunpack.c.h.b16 %v659
      %v1041 = vunpack.c.l.b16 %v660
      %v1042 = vunpack.c.h.b16 %v660
      %v1043 = vunpack.c.l.b16 %v661
      %v1044 = vunpack.c.h.b16 %v661
      %v1045 = vpack.c.b16 %v1013, %v1013
      %v1046 = vpack.c.b16 %v1014, %v1014
      %v1047 = vpack.c.b16 %v1015, %v1015
      %v1048 = vpack.c.b16 %v1016, %v1016
      %v1049 = vpack.c.b16 %v1017, %v1017
      %v1050 = vpack.c.b16 %v1018, %v1018
      %v1051 = vpack.c.b16 %v1019, %v1019
      %v1052 = vpack.c.b16 %v1020, %v1020
      %v1053 = vpack.c.b16 %v1021, %v1021
      %v1054 = vpack.c.b16 %v1022, %v1022
      %v1055 = vpack.c.b16 %v1023, %v1023
      %v1056 = vpack.c.b16 %v1024, %v1024
      %v1057 = vpack.c.b16 %v1025, %v1025
      %v1058 = vpack.c.b16 %v1026, %v1026
      %v1059 = vpack.c.b16 %v1027, %v1027
      %v1060 = vpack.c.b16 %v1028, %v1028
      %v1061 = vpack.c.b16 %v1029, %v1029
      %v1062 = vpack.c.b16 %v1030, %v1030
      %v1063 = vpack.c.b16 %v1031, %v1031
      %v1064 = vpack.c.b16 %v1032, %v1032
      %v1065 = vpack.c.b16 %v1033, %v1033
      %v1066 = vpack.c.b16 %v1034, %v1034
      %v1067 = vpack.c.b16 %v1035, %v1035
      %v1068 = vpack.c.b16 %v1036, %v1036
      %v1069 = vpack.c.b16 %v1037, %v1037
      %v1070 = vpack.c.b16 %v1038, %v1038
      %v1071 = vpack.c.b16 %v1039, %v1039
      %v1072 = vpack.c.b16 %v1040, %v1040
      %v1073 = vpack.c.b16 %v1041, %v1041
      %v1074 = vpack.c.b16 %v1042, %v1042
      %v1075 = vpack.c.b16 %v1043, %v1043
      %v1076 = vpack.c.b16 %v1044, %v1044
      %vm1077 = vsmask.f32 4368
      %vm1078 = vmor %vm897, %vm1077
      %v1080 = vshrl.u32 %v1045, 16
      %v1082 = vrot.slane %v1080, 7
      %v1083 = vshll.u32 %v1045, 16
      %v1085 = vor.u32 %v1082, %v1083
      %v1086 = vrot.slane %v1082, 4
      %v1088 = vshrl.u32 %v1046, 16
      %v1090 = vrot.slane %v1088, 7
      %v1091 = vshll.u32 %v1046, 16
      %v1093 = vor.u32 %v1090, %v1091
      %v1094 = vsel %vm1078, %v1086, %v1093
      %v1095 = vrot.slane %v1090, 4
      %v1097 = vshrl.u32 %v1047, 16
      %v1099 = vrot.slane %v1097, 7
      %v1100 = vshll.u32 %v1047, 16
      %v1102 = vor.u32 %v1099, %v1100
      %v1103 = vrot.slane %v1099, 4
      %v1105 = vshrl.u32 %v1048, 16
      %v1107 = vrot.slane %v1105, 7
      %v1108 = vshll.u32 %v1048, 16
      %v1110 = vor.u32 %v1107, %v1108
      %v1111 = vsel %vm1078, %v1103, %v1110
      %v1112 = vrot.slane %v1107, 4
      %v1114 = vshrl.u32 %v1049, 16
      %v1116 = vrot.slane %v1114, 7
      %v1117 = vshll.u32 %v1049, 16
      %v1119 = vor.u32 %v1116, %v1117
      %v1120 = vrot.slane %v1116, 4
      %v1122 = vshrl.u32 %v1050, 16
      %v1124 = vrot.slane %v1122, 7
      %v1125 = vshll.u32 %v1050, 16
      %v1127 = vor.u32 %v1124, %v1125
      %v1128 = vsel %vm1078, %v1120, %v1127
      %v1129 = vrot.slane %v1124, 4
      %v1131 = vshrl.u32 %v1051, 16
      %v1133 = vrot.slane %v1131, 7
      %v1134 = vshll.u32 %v1051, 16
      %v1136 = vor.u32 %v1133, %v1134
      %v1137 = vrot.slane %v1133, 4
      %v1139 = vshrl.u32 %v1052, 16
      %v1141 = vrot.slane %v1139, 7
      %v1142 = vshll.u32 %v1052, 16
      %v1144 = vor.u32 %v1141, %v1142
      %v1145 = vsel %vm1078, %v1137, %v1144
      %v1146 = vrot.slane %v1141, 4
      %v1148 = vshrl.u32 %v1053, 16
      %v1150 = vrot.slane %v1148, 7
      %v1151 = vshll.u32 %v1053, 16
      %v1153 = vor.u32 %v1150, %v1151
      %v1154 = vrot.slane %v1150, 4
      %v1156 = vshrl.u32 %v1054, 16
      %v1158 = vrot.slane %v1156, 7
      %v1159 = vshll.u32 %v1054, 16
      %v1161 = vor.u32 %v1158, %v1159
      %v1162 = vsel %vm1078, %v1154, %v1161
      %v1163 = vrot.slane %v1158, 4
      %v1165 = vshrl.u32 %v1055, 16
      %v1167 = vrot.slane %v1165, 7
      %v1168 = vshll.u32 %v1055, 16
      %v1170 = vor.u32 %v1167, %v1168
      %v1171 = vrot.slane %v1167, 4
      %v1173 = vshrl.u32 %v1056, 16
      %v1175 = vrot.slane %v1173, 7
      %v1176 = vshll.u32 %v1056, 16
      %v1178 = vor.u32 %v1175, %v1176
      %v1179 = vsel %vm1078, %v1171, %v1178
      %v1180 = vrot.slane %v1175, 4
      %v1182 = vshrl.u32 %v1057, 16
      %v1184 = vrot.slane %v1182, 7
      %v1185 = vshll.u32 %v1057, 16
      %v1187 = vor.u32 %v1184, %v1185
      %v1188 = vrot.slane %v1184, 4
      %v1190 = vshrl.u32 %v1058, 16
      %v1192 = vrot.slane %v1190, 7
      %v1193 = vshll.u32 %v1058, 16
      %v1195 = vor.u32 %v1192, %v1193
      %v1196 = vsel %vm1078, %v1188, %v1195
      %v1197 = vrot.slane %v1192, 4
      %v1199 = vshrl.u32 %v1059, 16
      %v1201 = vrot.slane %v1199, 7
      %v1202 = vshll.u32 %v1059, 16
      %v1204 = vor.u32 %v1201, %v1202
      %v1205 = vrot.slane %v1201, 4
      %v1207 = vshrl.u32 %v1060, 16
      %v1209 = vrot.slane %v1207, 7
      %v1210 = vshll.u32 %v1060, 16
      %v1212 = vor.u32 %v1209, %v1210
      %v1213 = vsel %vm1078, %v1205, %v1212
      %v1214 = vrot.slane %v1209, 4
      %v1216 = vshrl.u32 %v1061, 16
      %v1218 = vrot.slane %v1216, 7
      %v1219 = vshll.u32 %v1061, 16
      %v1221 = vor.u32 %v1218, %v1219
      %v1222 = vrot.slane %v1218, 4
      %v1224 = vshrl.u32 %v1062, 16
      %v1226 = vrot.slane %v1224, 7
      %v1227 = vshll.u32 %v1062, 16
      %v1229 = vor.u32 %v1226, %v1227
      %v1230 = vsel %vm1078, %v1222, %v1229
      %v1231 = vrot.slane %v1226, 4
      %v1233 = vshrl.u32 %v1063, 16
      %v1235 = vrot.slane %v1233, 7
      %v1236 = vshll.u32 %v1063, 16
      %v1238 = vor.u32 %v1235, %v1236
      %v1239 = vrot.slane %v1235, 4
      %v1241 = vshrl.u32 %v1064, 16
      %v1243 = vrot.slane %v1241, 7
      %v1244 = vshll.u32 %v1064, 16
      %v1246 = vor.u32 %v1243, %v1244
      %v1247 = vsel %vm1078, %v1239, %v1246
      %v1248 = vrot.slane %v1243, 4
      %v1250 = vshrl.u32 %v1065, 16
      %v1252 = vrot.slane %v1250, 7
      %v1253 = vshll.u32 %v1065, 16
      %v1255 = vor.u32 %v1252, %v1253
      %v1256 = vrot.slane %v1252, 4
      %v1258 = vshrl.u32 %v1066, 16
      %v1260 = vrot.slane %v1258, 7
      %v1261 = vshll.u32 %v1066, 16
      %v1263 = vor.u32 %v1260, %v1261
      %v1264 = vsel %vm1078, %v1256, %v1263
      %v1265 = vrot.slane %v1260, 4
      %v1267 = vshrl.u32 %v1067, 16
      %v1269 = vrot.slane %v1267, 7
      %v1270 = vshll.u32 %v1067, 16
      %v1272 = vor.u32 %v1269, %v1270
      %v1273 = vrot.slane %v1269, 4
      %v1275 = vshrl.u32 %v1068, 16
      %v1277 = vrot.slane %v1275, 7
      %v1278 = vshll.u32 %v1068, 16
      %v1280 = vor.u32 %v1277, %v1278
      %v1281 = vsel %vm1078, %v1273, %v1280
      %v1282 = vrot.slane %v1277, 4
      %v1284 = vshrl.u32 %v1069, 16
      %v1286 = vrot.slane %v1284, 7
      %v1287 = vshll.u32 %v1069, 16
      %v1289 = vor.u32 %v1286, %v1287
      %v1290 = vrot.slane %v1286, 4
      %v1292 = vshrl.u32 %v1070, 16
      %v1294 = vrot.slane %v1292, 7
      %v1295 = vshll.u32 %v1070, 16
      %v1297 = vor.u32 %v1294, %v1295
      %v1298 = vsel %vm1078, %v1290, %v1297
      %v1299 = vrot.slane %v1294, 4
      %v1301 = vshrl.u32 %v1071, 16
      %v1303 = vrot.slane %v1301, 7
      %v1304 = vshll.u32 %v1071, 16
      %v1306 = vor.u32 %v1303, %v1304
      %v1307 = vrot.slane %v1303, 4
      %v1309 = vshrl.u32 %v1072, 16
      %v1311 = vrot.slane %v1309, 7
      %v1312 = vshll.u32 %v1072, 16
      %v1314 = vor.u32 %v1311, %v1312
      %v1315 = vsel %vm1078, %v1307, %v1314
      %v1316 = vrot.slane %v1311, 4
      %v1318 = vshrl.u32 %v1073, 16
      %v1320 = vrot.slane %v1318, 7
      %v1321 = vshll.u32 %v1073, 16
      %v1323 = vor.u32 %v1320, %v1321
      %v1324 = vrot.slane %v1320, 4
      %v1326 = vshrl.u32 %v1074, 16
      %v1328 = vrot.slane %v1326, 7
      %v1329 = vshll.u32 %v1074, 16
      %v1331 = vor.u32 %v1328, %v1329
      %v1332 = vsel %vm1078, %v1324, %v1331
      %v1333 = vrot.slane %v1328, 4
      %v1335 = vshrl.u32 %v1075, 16
      %v1337 = vrot.slane %v1335, 7
      %v1338 = vshll.u32 %v1075, 16
      %v1340 = vor.u32 %v1337, %v1338
      %v1341 = vrot.slane %v1337, 4
      %v1343 = vshrl.u32 %v1076, 16
      %v1345 = vrot.slane %v1343, 7
      %v1346 = vshll.u32 %v1076, 16
      %v1348 = vor.u32 %v1345, %v1346
      %v1349 = vsel %vm1078, %v1341, %v1348
      %v1350 = vrot.slane %v1345, 4
      %vm1399 = vcmask 19456
      %vm1400 = vmand %vm1399, %vm947
      %v1401 = vld [vmem:[%s895] sm:$0xf]
      %v1402 = vsel %vm1400, %v1085, %v1401
      %1403 = vst [vmem:[%s895] sm:$0xf] %v1402
      %1404 = vst.msk [vmem:[%s895 + $0x4] sm:$0xf] %vm886, %v1094
      %v1405 = vld [vmem:[%s895 + $0x8] sm:$0x1]
      %v1406 = vsel %vm898, %v1095, %v1405
      %1407 = vst [vmem:[%s895 + $0x8] sm:$0x1] %v1406
      %v1408 = vld [vmem:[%s895 + $0xc] sm:$0xf]
      %v1409 = vsel %vm1400, %v1102, %v1408
      %1410 = vst [vmem:[%s895 + $0xc] sm:$0xf] %v1409
      %1411 = vst.msk [vmem:[%s895 + $0x10] sm:$0xf] %vm886, %v1111
      %v1412 = vld [vmem:[%s895 + $0x14] sm:$0x1]
      %v1413 = vsel %vm898, %v1112, %v1412
      %1414 = vst [vmem:[%s895 + $0x14] sm:$0x1] %v1413
      %v1415 = vld [vmem:[%s895 + $0x18] sm:$0xf]
      %v1416 = vsel %vm1400, %v1119, %v1415
      %1417 = vst [vmem:[%s895 + $0x18] sm:$0xf] %v1416
      %1418 = vst.msk [vmem:[%s895 + $0x1c] sm:$0xf] %vm886, %v1128
      %v1419 = vld [vmem:[%s895 + $0x20] sm:$0x1]
      %v1420 = vsel %vm898, %v1129, %v1419
      %1421 = vst [vmem:[%s895 + $0x20] sm:$0x1] %v1420
      %v1422 = vld [vmem:[%s895 + $0x24] sm:$0xf]
      %v1423 = vsel %vm1400, %v1136, %v1422
      %1424 = vst [vmem:[%s895 + $0x24] sm:$0xf] %v1423
      %1425 = vst.msk [vmem:[%s895 + $0x28] sm:$0xf] %vm886, %v1145
      %v1426 = vld [vmem:[%s895 + $0x2c] sm:$0x1]
      %v1427 = vsel %vm898, %v1146, %v1426
      %1428 = vst [vmem:[%s895 + $0x2c] sm:$0x1] %v1427
      %v1429 = vld [vmem:[%s895 + $0x30] sm:$0xf]
      %v1430 = vsel %vm1400, %v1153, %v1429
      %1431 = vst [vmem:[%s895 + $0x30] sm:$0xf] %v1430
      %1432 = vst.msk [vmem:[%s895 + $0x34] sm:$0xf] %vm886, %v1162
      %v1433 = vld [vmem:[%s895 + $0x38] sm:$0x1]
      %v1434 = vsel %vm898, %v1163, %v1433
      %1435 = vst [vmem:[%s895 + $0x38] sm:$0x1] %v1434
      %v1436 = vld [vmem:[%s895 + $0x3c] sm:$0xf]
      %v1437 = vsel %vm1400, %v1170, %v1436
      %1438 = vst [vmem:[%s895 + $0x3c] sm:$0xf] %v1437
      %1439 = vst.msk [vmem:[%s895 + $0x40] sm:$0xf] %vm886, %v1179
      %v1440 = vld [vmem:[%s895 + $0x44] sm:$0x1]
      %v1441 = vsel %vm898, %v1180, %v1440
      %1442 = vst [vmem:[%s895 + $0x44] sm:$0x1] %v1441
      %v1443 = vld [vmem:[%s895 + $0x48] sm:$0xf]
      %v1444 = vsel %vm1400, %v1187, %v1443
      %1445 = vst [vmem:[%s895 + $0x48] sm:$0xf] %v1444
      %1446 = vst.msk [vmem:[%s895 + $0x4c] sm:$0xf] %vm886, %v1196
      %v1447 = vld [vmem:[%s895 + $0x50] sm:$0x1]
      %v1448 = vsel %vm898, %v1197, %v1447
      %1449 = vst [vmem:[%s895 + $0x50] sm:$0x1] %v1448
      %v1450 = vld [vmem:[%s895 + $0x54] sm:$0xf]
      %v1451 = vsel %vm1400, %v1204, %v1450
      %1452 = vst [vmem:[%s895 + $0x54] sm:$0xf] %v1451
      %1453 = vst.msk [vmem:[%s895 + $0x58] sm:$0xf] %vm886, %v1213
      %v1454 = vld [vmem:[%s895 + $0x5c] sm:$0x1]
      %v1455 = vsel %vm898, %v1214, %v1454
      %1456 = vst [vmem:[%s895 + $0x5c] sm:$0x1] %v1455
      %v1457 = vld [vmem:[%s895 + $0x60] sm:$0xf]
      %v1458 = vsel %vm1400, %v1221, %v1457
      %1459 = vst [vmem:[%s895 + $0x60] sm:$0xf] %v1458
      %1460 = vst.msk [vmem:[%s895 + $0x64] sm:$0xf] %vm886, %v1230
      %v1461 = vld [vmem:[%s895 + $0x68] sm:$0x1]
      %v1462 = vsel %vm898, %v1231, %v1461
      %1463 = vst [vmem:[%s895 + $0x68] sm:$0x1] %v1462
      %v1464 = vld [vmem:[%s895 + $0x6c] sm:$0xf]
      %v1465 = vsel %vm1400, %v1238, %v1464
      %1466 = vst [vmem:[%s895 + $0x6c] sm:$0xf] %v1465
      %1467 = vst.msk [vmem:[%s895 + $0x70] sm:$0xf] %vm886, %v1247
      %v1468 = vld [vmem:[%s895 + $0x74] sm:$0x1]
      %v1469 = vsel %vm898, %v1248, %v1468
      %1470 = vst [vmem:[%s895 + $0x74] sm:$0x1] %v1469
      %v1471 = vld [vmem:[%s895 + $0x78] sm:$0xf]
      %v1472 = vsel %vm1400, %v1255, %v1471
      %1473 = vst [vmem:[%s895 + $0x78] sm:$0xf] %v1472
      %1474 = vst.msk [vmem:[%s895 + $0x7c] sm:$0xf] %vm886, %v1264
      %v1475 = vld [vmem:[%s895 + $0x80] sm:$0x1]
      %v1476 = vsel %vm898, %v1265, %v1475
      %1477 = vst [vmem:[%s895 + $0x80] sm:$0x1] %v1476
      %v1478 = vld [vmem:[%s895 + $0x84] sm:$0xf]
      %v1479 = vsel %vm1400, %v1272, %v1478
      %1480 = vst [vmem:[%s895 + $0x84] sm:$0xf] %v1479
      %1481 = vst.msk [vmem:[%s895 + $0x88] sm:$0xf] %vm886, %v1281
      %v1482 = vld [vmem:[%s895 + $0x8c] sm:$0x1]
      %v1483 = vsel %vm898, %v1282, %v1482
      %1484 = vst [vmem:[%s895 + $0x8c] sm:$0x1] %v1483
      %v1485 = vld [vmem:[%s895 + $0x90] sm:$0xf]
      %v1486 = vsel %vm1400, %v1289, %v1485
      %1487 = vst [vmem:[%s895 + $0x90] sm:$0xf] %v1486
      %1488 = vst.msk [vmem:[%s895 + $0x94] sm:$0xf] %vm886, %v1298
      %v1489 = vld [vmem:[%s895 + $0x98] sm:$0x1]
      %v1490 = vsel %vm898, %v1299, %v1489
      %1491 = vst [vmem:[%s895 + $0x98] sm:$0x1] %v1490
      %v1492 = vld [vmem:[%s895 + $0x9c] sm:$0xf]
      %v1493 = vsel %vm1400, %v1306, %v1492
      %1494 = vst [vmem:[%s895 + $0x9c] sm:$0xf] %v1493
      %1495 = vst.msk [vmem:[%s895 + $0xa0] sm:$0xf] %vm886, %v1315
      %v1496 = vld [vmem:[%s895 + $0xa4] sm:$0x1]
      %v1497 = vsel %vm898, %v1316, %v1496
      %1498 = vst [vmem:[%s895 + $0xa4] sm:$0x1] %v1497
      %v1499 = vld [vmem:[%s895 + $0xa8] sm:$0xf]
      %v1500 = vsel %vm1400, %v1323, %v1499
      %1501 = vst [vmem:[%s895 + $0xa8] sm:$0xf] %v1500
      %1502 = vst.msk [vmem:[%s895 + $0xac] sm:$0xf] %vm886, %v1332
      %v1503 = vld [vmem:[%s895 + $0xb0] sm:$0x1]
      %v1504 = vsel %vm898, %v1333, %v1503
      %1505 = vst [vmem:[%s895 + $0xb0] sm:$0x1] %v1504
      %v1506 = vld [vmem:[%s895 + $0xb4] sm:$0xf]
      %v1507 = vsel %vm1400, %v1340, %v1506
      %1508 = vst [vmem:[%s895 + $0xb4] sm:$0xf] %v1507
      %1509 = vst.msk [vmem:[%s895 + $0xb8] sm:$0xf] %vm886, %v1349
      %v1510 = vld [vmem:[%s895 + $0xbc] sm:$0x1]
      %v1511 = vsel %vm898, %v1350, %v1510
      %1512 = vst [vmem:[%s895 + $0xbc] sm:$0x1] %v1511
      %v1513 = vld [vmem:[#allocation2] sm:$0xf]
      %v1514 = vld [vmem:[#allocation2 + $0x4] sm:$0xf]
      %v1515 = vld [vmem:[#allocation2 + $0xc] sm:$0xf]
      %v1516 = vld [vmem:[#allocation2 + $0x10] sm:$0xf]
      %v1517 = vld [vmem:[#allocation2 + $0x18] sm:$0xf]
      %v1518 = vld [vmem:[#allocation2 + $0x1c] sm:$0xf]
      %v1519 = vld [vmem:[#allocation2 + $0x24] sm:$0xf]
      %v1520 = vld [vmem:[#allocation2 + $0x28] sm:$0xf]
      %v1521 = vld [vmem:[#allocation2 + $0x30] sm:$0xf]
      %v1522 = vld [vmem:[#allocation2 + $0x34] sm:$0xf]
      %v1523 = vld [vmem:[#allocation2 + $0x3c] sm:$0xf]
      %v1524 = vld [vmem:[#allocation2 + $0x40] sm:$0xf]
      %v1525 = vld [vmem:[#allocation2 + $0x48] sm:$0xf]
      %v1526 = vld [vmem:[#allocation2 + $0x4c] sm:$0xf]
      %v1527 = vld [vmem:[#allocation2 + $0x54] sm:$0xf]
      %v1528 = vld [vmem:[#allocation2 + $0x58] sm:$0xf]
      %v1529 = vld [vmem:[#allocation2 + $0x60] sm:$0xf]
      %v1530 = vld [vmem:[#allocation2 + $0x64] sm:$0xf]
      %v1531 = vld [vmem:[#allocation2 + $0x6c] sm:$0xf]
      %v1532 = vld [vmem:[#allocation2 + $0x70] sm:$0xf]
      %v1533 = vld [vmem:[#allocation2 + $0x78] sm:$0xf]
      %v1534 = vld [vmem:[#allocation2 + $0x7c] sm:$0xf]
      %v1535 = vld [vmem:[#allocation2 + $0x84] sm:$0xf]
      %v1536 = vld [vmem:[#allocation2 + $0x88] sm:$0xf]
      %v1537 = vld [vmem:[#allocation2 + $0x90] sm:$0xf]
      %v1538 = vld [vmem:[#allocation2 + $0x94] sm:$0xf]
      %v1539 = vld [vmem:[#allocation2 + $0x9c] sm:$0xf]
      %v1540 = vld [vmem:[#allocation2 + $0xa0] sm:$0xf]
      %v1541 = vld [vmem:[#allocation2 + $0xa8] sm:$0xf]
      %v1542 = vld [vmem:[#allocation2 + $0xac] sm:$0xf]
      %v1543 = vld [vmem:[#allocation2 + $0xb4] sm:$0xf]
      %v1544 = vld [vmem:[#allocation2 + $0xb8] sm:$0xf]
      %1545 = vst.msk [vmem:[#allocation3] sm:$0xf] %vm886, %v1513
      %1546 = vst.msk [vmem:[#allocation3 + $0x4] sm:$0xf] %vm886, %v1514
      %1547 = vst.msk [vmem:[#allocation3 + $0x8] sm:$0xf] %vm886, %v1515
      %1548 = vst.msk [vmem:[#allocation3 + $0xc] sm:$0xf] %vm886, %v1516
      %1549 = vst.msk [vmem:[#allocation3 + $0x10] sm:$0xf] %vm886, %v1517
      %1550 = vst.msk [vmem:[#allocation3 + $0x14] sm:$0xf] %vm886, %v1518
      %1551 = vst.msk [vmem:[#allocation3 + $0x18] sm:$0xf] %vm886, %v1519
      %1552 = vst.msk [vmem:[#allocation3 + $0x1c] sm:$0xf] %vm886, %v1520
      %1553 = vst.msk [vmem:[#allocation3 + $0x20] sm:$0xf] %vm886, %v1521
      %1554 = vst.msk [vmem:[#allocation3 + $0x24] sm:$0xf] %vm886, %v1522
      %1555 = vst.msk [vmem:[#allocation3 + $0x28] sm:$0xf] %vm886, %v1523
      %1556 = vst.msk [vmem:[#allocation3 + $0x2c] sm:$0xf] %vm886, %v1524
      %1557 = vst.msk [vmem:[#allocation3 + $0x30] sm:$0xf] %vm886, %v1525
      %1558 = vst.msk [vmem:[#allocation3 + $0x34] sm:$0xf] %vm886, %v1526
      %1559 = vst.msk [vmem:[#allocation3 + $0x38] sm:$0xf] %vm886, %v1527
      %1560 = vst.msk [vmem:[#allocation3 + $0x3c] sm:$0xf] %vm886, %v1528
      %1561 = vst.msk [vmem:[#allocation3 + $0x40] sm:$0xf] %vm886, %v1529
      %1562 = vst.msk [vmem:[#allocation3 + $0x44] sm:$0xf] %vm886, %v1530
      %1563 = vst.msk [vmem:[#allocation3 + $0x48] sm:$0xf] %vm886, %v1531
      %1564 = vst.msk [vmem:[#allocation3 + $0x4c] sm:$0xf] %vm886, %v1532
      %1565 = vst.msk [vmem:[#allocation3 + $0x50] sm:$0xf] %vm886, %v1533
      %1566 = vst.msk [vmem:[#allocation3 + $0x54] sm:$0xf] %vm886, %v1534
      %1567 = vst.msk [vmem:[#allocation3 + $0x58] sm:$0xf] %vm886, %v1535
      %1568 = vst.msk [vmem:[#allocation3 + $0x5c] sm:$0xf] %vm886, %v1536
      %1569 = vst.msk [vmem:[#allocation3 + $0x60] sm:$0xf] %vm886, %v1537
      %1570 = vst.msk [vmem:[#allocation3 + $0x64] sm:$0xf] %vm886, %v1538
      %1571 = vst.msk [vmem:[#allocation3 + $0x68] sm:$0xf] %vm886, %v1539
      %1572 = vst.msk [vmem:[#allocation3 + $0x6c] sm:$0xf] %vm886, %v1540
      %1573 = vst.msk [vmem:[#allocation3 + $0x70] sm:$0xf] %vm886, %v1541
      %1574 = vst.msk [vmem:[#allocation3 + $0x74] sm:$0xf] %vm886, %v1542
      %1575 = vst.msk [vmem:[#allocation3 + $0x78] sm:$0xf] %vm886, %v1543
      %1576 = vst.msk [vmem:[#allocation3 + $0x7c] sm:$0xf] %vm886, %v1544
      %v1577 = vld [vmem:[#allocation2] sm:$0xf]
      %v1578 = vld [vmem:[#allocation2 + $0x4] sm:$0xf]
      %v1579 = vld [vmem:[#allocation2 + $0x8] sm:$0x1]
      %v1580 = vld [vmem:[#allocation2 + $0xc] sm:$0xf]
      %v1581 = vld [vmem:[#allocation2 + $0x10] sm:$0xf]
      %v1582 = vld [vmem:[#allocation2 + $0x14] sm:$0x1]
      %v1583 = vld [vmem:[#allocation2 + $0x18] sm:$0xf]
      %v1584 = vld [vmem:[#allocation2 + $0x1c] sm:$0xf]
      %v1585 = vld [vmem:[#allocation2 + $0x20] sm:$0x1]
      %v1586 = vld [vmem:[#allocation2 + $0x24] sm:$0xf]
      %v1587 = vld [vmem:[#allocation2 + $0x28] sm:$0xf]
      %v1588 = vld [vmem:[#allocation2 + $0x2c] sm:$0x1]
      %v1589 = vld [vmem:[#allocation2 + $0x30] sm:$0xf]
      %v1590 = vld [vmem:[#allocation2 + $0x34] sm:$0xf]
      %v1591 = vld [vmem:[#allocation2 + $0x38] sm:$0x1]
      %v1592 = vld [vmem:[#allocation2 + $0x3c] sm:$0xf]
      %v1593 = vld [vmem:[#allocation2 + $0x40] sm:$0xf]
      %v1594 = vld [vmem:[#allocation2 + $0x44] sm:$0x1]
      %v1595 = vld [vmem:[#allocation2 + $0x48] sm:$0xf]
      %v1596 = vld [vmem:[#allocation2 + $0x4c] sm:$0xf]
      %v1597 = vld [vmem:[#allocation2 + $0x50] sm:$0x1]
      %v1598 = vld [vmem:[#allocation2 + $0x54] sm:$0xf]
      %v1599 = vld [vmem:[#allocation2 + $0x58] sm:$0xf]
      %v1600 = vld [vmem:[#allocation2 + $0x5c] sm:$0x1]
      %v1601 = vld [vmem:[#allocation2 + $0x60] sm:$0xf]
      %v1602 = vld [vmem:[#allocation2 + $0x64] sm:$0xf]
      %v1603 = vld [vmem:[#allocation2 + $0x68] sm:$0x1]
      %v1604 = vld [vmem:[#allocation2 + $0x6c] sm:$0xf]
      %v1605 = vld [vmem:[#allocation2 + $0x70] sm:$0xf]
      %v1606 = vld [vmem:[#allocation2 + $0x74] sm:$0x1]
      %v1607 = vld [vmem:[#allocation2 + $0x78] sm:$0xf]
      %v1608 = vld [vmem:[#allocation2 + $0x7c] sm:$0xf]
      %v1609 = vld [vmem:[#allocation2 + $0x80] sm:$0x1]
      %v1610 = vld [vmem:[#allocation2 + $0x84] sm:$0xf]
      %v1611 = vld [vmem:[#allocation2 + $0x88] sm:$0xf]
      %v1612 = vld [vmem:[#allocation2 + $0x8c] sm:$0x1]
      %v1613 = vld [vmem:[#allocation2 + $0x90] sm:$0xf]
      %v1614 = vld [vmem:[#allocation2 + $0x94] sm:$0xf]
      %v1615 = vld [vmem:[#allocation2 + $0x98] sm:$0x1]
      %v1616 = vld [vmem:[#allocation2 + $0x9c] sm:$0xf]
      %v1617 = vld [vmem:[#allocation2 + $0xa0] sm:$0xf]
      %v1618 = vld [vmem:[#allocation2 + $0xa4] sm:$0x1]
      %v1619 = vld [vmem:[#allocation2 + $0xa8] sm:$0xf]
      %v1620 = vld [vmem:[#allocation2 + $0xac] sm:$0xf]
      %v1621 = vld [vmem:[#allocation2 + $0xb0] sm:$0x1]
      %v1622 = vld [vmem:[#allocation2 + $0xb4] sm:$0xf]
      %v1623 = vld [vmem:[#allocation2 + $0xb8] sm:$0xf]
      %v1624 = vld [vmem:[#allocation2 + $0xbc] sm:$0x1]
      %vm1625 = vsmask.f32 3328
      %vm1626 = vsmask.f32 7440
      %vm1627 = vmor %vm1625, %vm1626
      %v1629 = vshrl.u32 %v1577, 16
      %v1631 = vrot.slane %v1629, 4
      %v1632 = vshll.u32 %v1577, 16
      %v1634 = vrot.slane %v1632, 5
      %v1635 = vor.u32 %v1631, %v1634
      %v1636 = vrot.slane %v1635, 4
      %v1638 = vshll.u32 %v1578, 16
      %v1640 = vrot.slane %v1638, 5
      %v1641 = vsel %vm1627, %v1636, %v1640
      %v1642 = vshrl.u32 %v1578, 16
      %v1644 = vrot.slane %v1642, 4
      %v1645 = vor.u32 %v1644, %v1640
      %v1646 = vrot.slane %v1645, 4
      %v1648 = vshll.u32 %v1579, 16
      %v1650 = vrot.slane %v1648, 5
      %v1651 = vsel %vm1627, %v1646, %v1650
      %v1653 = vshrl.u32 %v1580, 16
      %v1655 = vrot.slane %v1653, 4
      %v1656 = vshll.u32 %v1580, 16
      %v1658 = vrot.slane %v1656, 5
      %v1659 = vor.u32 %v1655, %v1658
      %v1660 = vrot.slane %v1659, 4
      %v1662 = vshll.u32 %v1581, 16
      %v1664 = vrot.slane %v1662, 5
      %v1665 = vsel %vm1627, %v1660, %v1664
      %v1666 = vshrl.u32 %v1581, 16
      %v1668 = vrot.slane %v1666, 4
      %v1669 = vor.u32 %v1668, %v1664
      %v1670 = vrot.slane %v1669, 4
      %v1672 = vshll.u32 %v1582, 16
      %v1674 = vrot.slane %v1672, 5
      %v1675 = vsel %vm1627, %v1670, %v1674
      %v1677 = vshrl.u32 %v1583, 16
      %v1679 = vrot.slane %v1677, 4
      %v1680 = vshll.u32 %v1583, 16
      %v1682 = vrot.slane %v1680, 5
      %v1683 = vor.u32 %v1679, %v1682
      %v1684 = vrot.slane %v1683, 4
      %v1686 = vshll.u32 %v1584, 16
      %v1688 = vrot.slane %v1686, 5
      %v1689 = vsel %vm1627, %v1684, %v1688
      %v1690 = vshrl.u32 %v1584, 16
      %v1692 = vrot.slane %v1690, 4
      %v1693 = vor.u32 %v1692, %v1688
      %v1694 = vrot.slane %v1693, 4
      %v1696 = vshll.u32 %v1585, 16
      %v1698 = vrot.slane %v1696, 5
      %v1699 = vsel %vm1627, %v1694, %v1698
      %v1701 = vshrl.u32 %v1586, 16
      %v1703 = vrot.slane %v1701, 4
      %v1704 = vshll.u32 %v1586, 16
      %v1706 = vrot.slane %v1704, 5
      %v1707 = vor.u32 %v1703, %v1706
      %v1708 = vrot.slane %v1707, 4
      %v1710 = vshll.u32 %v1587, 16
      %v1712 = vrot.slane %v1710, 5
      %v1713 = vsel %vm1627, %v1708, %v1712
      %v1714 = vshrl.u32 %v1587, 16
      %v1716 = vrot.slane %v1714, 4
      %v1717 = vor.u32 %v1716, %v1712
      %v1718 = vrot.slane %v1717, 4
      %v1720 = vshll.u32 %v1588, 16
      %v1722 = vrot.slane %v1720, 5
      %v1723 = vsel %vm1627, %v1718, %v1722
      %v1725 = vshrl.u32 %v1589, 16
      %v1727 = vrot.slane %v1725, 4
      %v1728 = vshll.u32 %v1589, 16
      %v1730 = vrot.slane %v1728, 5
      %v1731 = vor.u32 %v1727, %v1730
      %v1732 = vrot.slane %v1731, 4
      %v1734 = vshll.u32 %v1590, 16
      %v1736 = vrot.slane %v1734, 5
      %v1737 = vsel %vm1627, %v1732, %v1736
      %v1738 = vshrl.u32 %v1590, 16
      %v1740 = vrot.slane %v1738, 4
      %v1741 = vor.u32 %v1740, %v1736
      %v1742 = vrot.slane %v1741, 4
      %v1744 = vshll.u32 %v1591, 16
      %v1746 = vrot.slane %v1744, 5
      %v1747 = vsel %vm1627, %v1742, %v1746
      %v1749 = vshrl.u32 %v1592, 16
      %v1751 = vrot.slane %v1749, 4
      %v1752 = vshll.u32 %v1592, 16
      %v1754 = vrot.slane %v1752, 5
      %v1755 = vor.u32 %v1751, %v1754
      %v1756 = vrot.slane %v1755, 4
      %v1758 = vshll.u32 %v1593, 16
      %v1760 = vrot.slane %v1758, 5
      %v1761 = vsel %vm1627, %v1756, %v1760
      %v1762 = vshrl.u32 %v1593, 16
      %v1764 = vrot.slane %v1762, 4
      %v1765 = vor.u32 %v1764, %v1760
      %v1766 = vrot.slane %v1765, 4
      %v1768 = vshll.u32 %v1594, 16
      %v1770 = vrot.slane %v1768, 5
      %v1771 = vsel %vm1627, %v1766, %v1770
      %v1773 = vshrl.u32 %v1595, 16
      %v1775 = vrot.slane %v1773, 4
      %v1776 = vshll.u32 %v1595, 16
      %v1778 = vrot.slane %v1776, 5
      %v1779 = vor.u32 %v1775, %v1778
      %v1780 = vrot.slane %v1779, 4
      %v1782 = vshll.u32 %v1596, 16
      %v1784 = vrot.slane %v1782, 5
      %v1785 = vsel %vm1627, %v1780, %v1784
      %v1786 = vshrl.u32 %v1596, 16
      %v1788 = vrot.slane %v1786, 4
      %v1789 = vor.u32 %v1788, %v1784
      %v1790 = vrot.slane %v1789, 4
      %v1792 = vshll.u32 %v1597, 16
      %v1794 = vrot.slane %v1792, 5
      %v1795 = vsel %vm1627, %v1790, %v1794
      %v1797 = vshrl.u32 %v1598, 16
      %v1799 = vrot.slane %v1797, 4
      %v1800 = vshll.u32 %v1598, 16
      %v1802 = vrot.slane %v1800, 5
      %v1803 = vor.u32 %v1799, %v1802
      %v1804 = vrot.slane %v1803, 4
      %v1806 = vshll.u32 %v1599, 16
      %v1808 = vrot.slane %v1806, 5
      %v1809 = vsel %vm1627, %v1804, %v1808
      %v1810 = vshrl.u32 %v1599, 16
      %v1812 = vrot.slane %v1810, 4
      %v1813 = vor.u32 %v1812, %v1808
      %v1814 = vrot.slane %v1813, 4
      %v1816 = vshll.u32 %v1600, 16
      %v1818 = vrot.slane %v1816, 5
      %v1819 = vsel %vm1627, %v1814, %v1818
      %v1821 = vshrl.u32 %v1601, 16
      %v1823 = vrot.slane %v1821, 4
      %v1824 = vshll.u32 %v1601, 16
      %v1826 = vrot.slane %v1824, 5
      %v1827 = vor.u32 %v1823, %v1826
      %v1828 = vrot.slane %v1827, 4
      %v1830 = vshll.u32 %v1602, 16
      %v1832 = vrot.slane %v1830, 5
      %v1833 = vsel %vm1627, %v1828, %v1832
      %v1834 = vshrl.u32 %v1602, 16
      %v1836 = vrot.slane %v1834, 4
      %v1837 = vor.u32 %v1836, %v1832
      %v1838 = vrot.slane %v1837, 4
      %v1840 = vshll.u32 %v1603, 16
      %v1842 = vrot.slane %v1840, 5
      %v1843 = vsel %vm1627, %v1838, %v1842
      %v1845 = vshrl.u32 %v1604, 16
      %v1847 = vrot.slane %v1845, 4
      %v1848 = vshll.u32 %v1604, 16
      %v1850 = vrot.slane %v1848, 5
      %v1851 = vor.u32 %v1847, %v1850
      %v1852 = vrot.slane %v1851, 4
      %v1854 = vshll.u32 %v1605, 16
      %v1856 = vrot.slane %v1854, 5
      %v1857 = vsel %vm1627, %v1852, %v1856
      %v1858 = vshrl.u32 %v1605, 16
      %v1860 = vrot.slane %v1858, 4
      %v1861 = vor.u32 %v1860, %v1856
      %v1862 = vrot.slane %v1861, 4
      %v1864 = vshll.u32 %v1606, 16
      %v1866 = vrot.slane %v1864, 5
      %v1867 = vsel %vm1627, %v1862, %v1866
      %v1869 = vshrl.u32 %v1607, 16
      %v1871 = vrot.slane %v1869, 4
      %v1872 = vshll.u32 %v1607, 16
      %v1874 = vrot.slane %v1872, 5
      %v1875 = vor.u32 %v1871, %v1874
      %v1876 = vrot.slane %v1875, 4
      %v1878 = vshll.u32 %v1608, 16
      %v1880 = vrot.slane %v1878, 5
      %v1881 = vsel %vm1627, %v1876, %v1880
      %v1882 = vshrl.u32 %v1608, 16
      %v1884 = vrot.slane %v1882, 4
      %v1885 = vor.u32 %v1884, %v1880
      %v1886 = vrot.slane %v1885, 4
      %v1888 = vshll.u32 %v1609, 16
      %v1890 = vrot.slane %v1888, 5
      %v1891 = vsel %vm1627, %v1886, %v1890
      %v1893 = vshrl.u32 %v1610, 16
      %v1895 = vrot.slane %v1893, 4
      %v1896 = vshll.u32 %v1610, 16
      %v1898 = vrot.slane %v1896, 5
      %v1899 = vor.u32 %v1895, %v1898
      %v1900 = vrot.slane %v1899, 4
      %v1902 = vshll.u32 %v1611, 16
      %v1904 = vrot.slane %v1902, 5
      %v1905 = vsel %vm1627, %v1900, %v1904
      %v1906 = vshrl.u32 %v1611, 16
      %v1908 = vrot.slane %v1906, 4
      %v1909 = vor.u32 %v1908, %v1904
      %v1910 = vrot.slane %v1909, 4
      %v1912 = vshll.u32 %v1612, 16
      %v1914 = vrot.slane %v1912, 5
      %v1915 = vsel %vm1627, %v1910, %v1914
      %v1917 = vshrl.u32 %v1613, 16
      %v1919 = vrot.slane %v1917, 4
      %v1920 = vshll.u32 %v1613, 16
      %v1922 = vrot.slane %v1920, 5
      %v1923 = vor.u32 %v1919, %v1922
      %v1924 = vrot.slane %v1923, 4
      %v1926 = vshll.u32 %v1614, 16
      %v1928 = vrot.slane %v1926, 5
      %v1929 = vsel %vm1627, %v1924, %v1928
      %v1930 = vshrl.u32 %v1614, 16
      %v1932 = vrot.slane %v1930, 4
      %v1933 = vor.u32 %v1932, %v1928
      %v1934 = vrot.slane %v1933, 4
      %v1936 = vshll.u32 %v1615, 16
      %v1938 = vrot.slane %v1936, 5
      %v1939 = vsel %vm1627, %v1934, %v1938
      %v1941 = vshrl.u32 %v1616, 16
      %v1943 = vrot.slane %v1941, 4
      %v1944 = vshll.u32 %v1616, 16
      %v1946 = vrot.slane %v1944, 5
      %v1947 = vor.u32 %v1943, %v1946
      %v1948 = vrot.slane %v1947, 4
      %v1950 = vshll.u32 %v1617, 16
      %v1952 = vrot.slane %v1950, 5
      %v1953 = vsel %vm1627, %v1948, %v1952
      %v1954 = vshrl.u32 %v1617, 16
      %v1956 = vrot.slane %v1954, 4
      %v1957 = vor.u32 %v1956, %v1952
      %v1958 = vrot.slane %v1957, 4
      %v1960 = vshll.u32 %v1618, 16
      %v1962 = vrot.slane %v1960, 5
      %v1963 = vsel %vm1627, %v1958, %v1962
      %v1965 = vshrl.u32 %v1619, 16
      %v1967 = vrot.slane %v1965, 4
      %v1968 = vshll.u32 %v1619, 16
      %v1970 = vrot.slane %v1968, 5
      %v1971 = vor.u32 %v1967, %v1970
      %v1972 = vrot.slane %v1971, 4
      %v1974 = vshll.u32 %v1620, 16
      %v1976 = vrot.slane %v1974, 5
      %v1977 = vsel %vm1627, %v1972, %v1976
      %v1978 = vshrl.u32 %v1620, 16
      %v1980 = vrot.slane %v1978, 4
      %v1981 = vor.u32 %v1980, %v1976
      %v1982 = vrot.slane %v1981, 4
      %v1984 = vshll.u32 %v1621, 16
      %v1986 = vrot.slane %v1984, 5
      %v1987 = vsel %vm1627, %v1982, %v1986
      %v1989 = vshrl.u32 %v1622, 16
      %v1991 = vrot.slane %v1989, 4
      %v1992 = vshll.u32 %v1622, 16
      %v1994 = vrot.slane %v1992, 5
      %v1995 = vor.u32 %v1991, %v1994
      %v1996 = vrot.slane %v1995, 4
      %v1998 = vshll.u32 %v1623, 16
      %v2000 = vrot.slane %v1998, 5
      %v2001 = vsel %vm1627, %v1996, %v2000
      %v2002 = vshrl.u32 %v1623, 16
      %v2004 = vrot.slane %v2002, 4
      %v2005 = vor.u32 %v2004, %v2000
      %v2006 = vrot.slane %v2005, 4
      %v2008 = vshll.u32 %v1624, 16
      %v2010 = vrot.slane %v2008, 5
      %v2011 = vsel %vm1627, %v2006, %v2010
      %2012 = vrot.lane.b32.xlu0 %v1641, 3
      %v2013 = vpop.permute.xlu0 %2012
      %2014 = vrot.lane.b32.xlu0 %v1651, 3
      %v2015 = vpop.permute.xlu0 %2014
      %2016 = vrot.lane.b32.xlu0 %v1665, 3
      %v2017 = vpop.permute.xlu0 %2016
      %2018 = vrot.lane.b32.xlu0 %v1675, 3
      %v2019 = vpop.permute.xlu0 %2018
      %2020 = vrot.lane.b32.xlu0 %v1689, 3
      %v2021 = vpop.permute.xlu0 %2020
      %2022 = vrot.lane.b32.xlu0 %v1699, 3
      %v2023 = vpop.permute.xlu0 %2022
      %2024 = vrot.lane.b32.xlu0 %v1713, 3
      %v2025 = vpop.permute.xlu0 %2024
      %2026 = vrot.lane.b32.xlu0 %v1723, 3
      %v2027 = vpop.permute.xlu0 %2026
      %2028 = vrot.lane.b32.xlu0 %v1737, 3
      %v2029 = vpop.permute.xlu0 %2028
      %2030 = vrot.lane.b32.xlu0 %v1747, 3
      %v2031 = vpop.permute.xlu0 %2030
      %2032 = vrot.lane.b32.xlu0 %v1761, 3
      %v2033 = vpop.permute.xlu0 %2032
      %2034 = vrot.lane.b32.xlu0 %v1771, 3
      %v2035 = vpop.permute.xlu0 %2034
      %2036 = vrot.lane.b32.xlu0 %v1785, 3
      %v2037 = vpop.permute.xlu0 %2036
      %2038 = vrot.lane.b32.xlu0 %v1795, 3
      %v2039 = vpop.permute.xlu0 %2038
      %2040 = vrot.lane.b32.xlu0 %v1809, 3
      %v2041 = vpop.permute.xlu0 %2040
      %2042 = vrot.lane.b32.xlu0 %v1819, 3
      %v2043 = vpop.permute.xlu0 %2042
      %2044 = vrot.lane.b32.xlu0 %v1833, 3
      %v2045 = vpop.permute.xlu0 %2044
      %2046 = vrot.lane.b32.xlu0 %v1843, 3
      %v2047 = vpop.permute.xlu0 %2046
      %2048 = vrot.lane.b32.xlu0 %v1857, 3
      %v2049 = vpop.permute.xlu0 %2048
      %2050 = vrot.lane.b32.xlu0 %v1867, 3
      %v2051 = vpop.permute.xlu0 %2050
      %2052 = vrot.lane.b32.xlu0 %v1881, 3
      %v2053 = vpop.permute.xlu0 %2052
      %2054 = vrot.lane.b32.xlu0 %v1891, 3
      %v2055 = vpop.permute.xlu0 %2054
      %2056 = vrot.lane.b32.xlu0 %v1905, 3
      %v2057 = vpop.permute.xlu0 %2056
      %2058 = vrot.lane.b32.xlu0 %v1915, 3
      %v2059 = vpop.permute.xlu0 %2058
      %2060 = vrot.lane.b32.xlu0 %v1929, 3
      %v2061 = vpop.permute.xlu0 %2060
      %2062 = vrot.lane.b32.xlu0 %v1939, 3
      %v2063 = vpop.permute.xlu0 %2062
      %2064 = vrot.lane.b32.xlu0 %v1953, 3
      %v2065 = vpop.permute.xlu0 %2064
      %2066 = vrot.lane.b32.xlu0 %v1963, 3
      %v2067 = vpop.permute.xlu0 %2066
      %2068 = vrot.lane.b32.xlu0 %v1977, 3
      %v2069 = vpop.permute.xlu0 %2068
      %2070 = vrot.lane.b32.xlu0 %v1987, 3
      %v2071 = vpop.permute.xlu0 %2070
      %2072 = vrot.lane.b32.xlu0 %v2001, 3
      %v2073 = vpop.permute.xlu0 %2072
      %2074 = vrot.lane.b32.xlu0 %v2011, 3
      %v2075 = vpop.permute.xlu0 %2074
      %vm2108 = vcmask 44056
      %2109 = vst.msk [vmem:[#allocation3] sm:$0xf] %vm2108, %v2013
      %2110 = vst.msk [vmem:[#allocation3 + $0x4] sm:$0xf] %vm2108, %v2015
      %2111 = vst.msk [vmem:[#allocation3 + $0x8] sm:$0xf] %vm2108, %v2017
      %2112 = vst.msk [vmem:[#allocation3 + $0xc] sm:$0xf] %vm2108, %v2019
      %2113 = vst.msk [vmem:[#allocation3 + $0x10] sm:$0xf] %vm2108, %v2021
      %2114 = vst.msk [vmem:[#allocation3 + $0x14] sm:$0xf] %vm2108, %v2023
      %2115 = vst.msk [vmem:[#allocation3 + $0x18] sm:$0xf] %vm2108, %v2025
      %2116 = vst.msk [vmem:[#allocation3 + $0x1c] sm:$0xf] %vm2108, %v2027
      %2117 = vst.msk [vmem:[#allocation3 + $0x20] sm:$0xf] %vm2108, %v2029
      %2118 = vst.msk [vmem:[#allocation3 + $0x24] sm:$0xf] %vm2108, %v2031
      %2119 = vst.msk [vmem:[#allocation3 + $0x28] sm:$0xf] %vm2108, %v2033
      %2120 = vst.msk [vmem:[#allocation3 + $0x2c] sm:$0xf] %vm2108, %v2035
      %2121 = vst.msk [vmem:[#allocation3 + $0x30] sm:$0xf] %vm2108, %v2037
      %2122 = vst.msk [vmem:[#allocation3 + $0x34] sm:$0xf] %vm2108, %v2039
      %2123 = vst.msk [vmem:[#allocation3 + $0x38] sm:$0xf] %vm2108, %v2041
      %2124 = vst.msk [vmem:[#allocation3 + $0x3c] sm:$0xf] %vm2108, %v2043
      %2125 = vst.msk [vmem:[#allocation3 + $0x40] sm:$0xf] %vm2108, %v2045
      %2126 = vst.msk [vmem:[#allocation3 + $0x44] sm:$0xf] %vm2108, %v2047
      %2127 = vst.msk [vmem:[#allocation3 + $0x48] sm:$0xf] %vm2108, %v2049
      %2128 = vst.msk [vmem:[#allocation3 + $0x4c] sm:$0xf] %vm2108, %v2051
      %2129 = vst.msk [vmem:[#allocation3 + $0x50] sm:$0xf] %vm2108, %v2053
      %2130 = vst.msk [vmem:[#allocation3 + $0x54] sm:$0xf] %vm2108, %v2055
      %2131 = vst.msk [vmem:[#allocation3 + $0x58] sm:$0xf] %vm2108, %v2057
      %2132 = vst.msk [vmem:[#allocation3 + $0x5c] sm:$0xf] %vm2108, %v2059
      %2133 = vst.msk [vmem:[#allocation3 + $0x60] sm:$0xf] %vm2108, %v2061
      %2134 = vst.msk [vmem:[#allocation3 + $0x64] sm:$0xf] %vm2108, %v2063
      %2135 = vst.msk [vmem:[#allocation3 + $0x68] sm:$0xf] %vm2108, %v2065
      %2136 = vst.msk [vmem:[#allocation3 + $0x6c] sm:$0xf] %vm2108, %v2067
      %2137 = vst.msk [vmem:[#allocation3 + $0x70] sm:$0xf] %vm2108, %v2069
      %2138 = vst.msk [vmem:[#allocation3 + $0x74] sm:$0xf] %vm2108, %v2071
      %2139 = vst.msk [vmem:[#allocation3 + $0x78] sm:$0xf] %vm2108, %v2073
      %2140 = vst.msk [vmem:[#allocation3 + $0x7c] sm:$0xf] %vm2108, %v2075
      %v2141 = vld [vmem:[#allocation2] sm:$0xe]
      %v2142 = vld [vmem:[#allocation2 + $0x4] sm:$0xf]
      %v2143 = vld [vmem:[#allocation2 + $0x8] sm:$0x1]
      %v2144 = vld [vmem:[#allocation2 + $0xc] sm:$0xe]
      %v2145 = vld [vmem:[#allocation2 + $0x10] sm:$0xf]
      %v2146 = vld [vmem:[#allocation2 + $0x14] sm:$0x1]
      %v2147 = vld [vmem:[#allocation2 + $0x18] sm:$0xe]
      %v2148 = vld [vmem:[#allocation2 + $0x1c] sm:$0xf]
      %v2149 = vld [vmem:[#allocation2 + $0x20] sm:$0x1]
      %v2150 = vld [vmem:[#allocation2 + $0x24] sm:$0xe]
      %v2151 = vld [vmem:[#allocation2 + $0x28] sm:$0xf]
      %v2152 = vld [vmem:[#allocation2 + $0x2c] sm:$0x1]
      %v2153 = vld [vmem:[#allocation2 + $0x30] sm:$0xe]
      %v2154 = vld [vmem:[#allocation2 + $0x34] sm:$0xf]
      %v2155 = vld [vmem:[#allocation2 + $0x38] sm:$0x1]
      %v2156 = vld [vmem:[#allocation2 + $0x3c] sm:$0xe]
      %v2157 = vld [vmem:[#allocation2 + $0x40] sm:$0xf]
      %v2158 = vld [vmem:[#allocation2 + $0x44] sm:$0x1]
      %v2159 = vld [vmem:[#allocation2 + $0x48] sm:$0xe]
      %v2160 = vld [vmem:[#allocation2 + $0x4c] sm:$0xf]
      %v2161 = vld [vmem:[#allocation2 + $0x50] sm:$0x1]
      %v2162 = vld [vmem:[#allocation2 + $0x54] sm:$0xe]
      %v2163 = vld [vmem:[#allocation2 + $0x58] sm:$0xf]
      %v2164 = vld [vmem:[#allocation2 + $0x5c] sm:$0x1]
      %v2165 = vld [vmem:[#allocation2 + $0x60] sm:$0xe]
      %v2166 = vld [vmem:[#allocation2 + $0x64] sm:$0xf]
      %v2167 = vld [vmem:[#allocation2 + $0x68] sm:$0x1]
      %v2168 = vld [vmem:[#allocation2 + $0x6c] sm:$0xe]
      %v2169 = vld [vmem:[#allocation2 + $0x70] sm:$0xf]
      %v2170 = vld [vmem:[#allocation2 + $0x74] sm:$0x1]
      %v2171 = vld [vmem:[#allocation2 + $0x78] sm:$0xe]
      %v2172 = vld [vmem:[#allocation2 + $0x7c] sm:$0xf]
      %v2173 = vld [vmem:[#allocation2 + $0x80] sm:$0x1]
      %v2174 = vld [vmem:[#allocation2 + $0x84] sm:$0xe]
      %v2175 = vld [vmem:[#allocation2 + $0x88] sm:$0xf]
      %v2176 = vld [vmem:[#allocation2 + $0x8c] sm:$0x1]
      %v2177 = vld [vmem:[#allocation2 + $0x90] sm:$0xe]
      %v2178 = vld [vmem:[#allocation2 + $0x94] sm:$0xf]
      %v2179 = vld [vmem:[#allocation2 + $0x98] sm:$0x1]
      %v2180 = vld [vmem:[#allocation2 + $0x9c] sm:$0xe]
      %v2181 = vld [vmem:[#allocation2 + $0xa0] sm:$0xf]
      %v2182 = vld [vmem:[#allocation2 + $0xa4] sm:$0x1]
      %v2183 = vld [vmem:[#allocation2 + $0xa8] sm:$0xe]
      %v2184 = vld [vmem:[#allocation2 + $0xac] sm:$0xf]
      %v2185 = vld [vmem:[#allocation2 + $0xb0] sm:$0x1]
      %v2186 = vld [vmem:[#allocation2 + $0xb4] sm:$0xe]
      %v2187 = vld [vmem:[#allocation2 + $0xb8] sm:$0xf]
      %v2188 = vld [vmem:[#allocation2 + $0xbc] sm:$0x1]
      %vm2237 = vcmask 1042432
      %vm2238 = vcmask 1046532
      %vm2239 = vmor %vm2237, %vm2238
      %v2240 = vrot.slane %v2141, 5
      %v2241 = vrot.slane %v2240, 4
      %v2242 = vrot.slane %v2142, 5
      %v2243 = vsel %vm2239, %v2241, %v2242
      %v2244 = vrot.slane %v2242, 4
      %v2245 = vrot.slane %v2143, 5
      %v2246 = vsel %vm2239, %v2244, %v2245
      %v2247 = vrot.slane %v2144, 5
      %v2248 = vrot.slane %v2247, 4
      %v2249 = vrot.slane %v2145, 5
      %v2250 = vsel %vm2239, %v2248, %v2249
      %v2251 = vrot.slane %v2249, 4
      %v2252 = vrot.slane %v2146, 5
      %v2253 = vsel %vm2239, %v2251, %v2252
      %v2254 = vrot.slane %v2147, 5
      %v2255 = vrot.slane %v2254, 4
      %v2256 = vrot.slane %v2148, 5
      %v2257 = vsel %vm2239, %v2255, %v2256
      %v2258 = vrot.slane %v2256, 4
      %v2259 = vrot.slane %v2149, 5
      %v2260 = vsel %vm2239, %v2258, %v2259
      %v2261 = vrot.slane %v2150, 5
      %v2262 = vrot.slane %v2261, 4
      %v2263 = vrot.slane %v2151, 5
      %v2264 = vsel %vm2239, %v2262, %v2263
      %v2265 = vrot.slane %v2263, 4
      %v2266 = vrot.slane %v2152, 5
      %v2267 = vsel %vm2239, %v2265, %v2266
      %v2268 = vrot.slane %v2153, 5
      %v2269 = vrot.slane %v2268, 4
      %v2270 = vrot.slane %v2154, 5
      %v2271 = vsel %vm2239, %v2269, %v2270
      %v2272 = vrot.slane %v2270, 4
      %v2273 = vrot.slane %v2155, 5
      %v2274 = vsel %vm2239, %v2272, %v2273
      %v2275 = vrot.slane %v2156, 5
      %v2276 = vrot.slane %v2275, 4
      %v2277 = vrot.slane %v2157, 5
      %v2278 = vsel %vm2239, %v2276, %v2277
      %v2279 = vrot.slane %v2277, 4
      %v2280 = vrot.slane %v2158, 5
      %v2281 = vsel %vm2239, %v2279, %v2280
      %v2282 = vrot.slane %v2159, 5
      %v2283 = vrot.slane %v2282, 4
      %v2284 = vrot.slane %v2160, 5
      %v2285 = vsel %vm2239, %v2283, %v2284
      %v2286 = vrot.slane %v2284, 4
      %v2287 = vrot.slane %v2161, 5
      %v2288 = vsel %vm2239, %v2286, %v2287
      %v2289 = vrot.slane %v2162, 5
      %v2290 = vrot.slane %v2289, 4
      %v2291 = vrot.slane %v2163, 5
      %v2292 = vsel %vm2239, %v2290, %v2291
      %v2293 = vrot.slane %v2291, 4
      %v2294 = vrot.slane %v2164, 5
      %v2295 = vsel %vm2239, %v2293, %v2294
      %v2296 = vrot.slane %v2165, 5
      %v2297 = vrot.slane %v2296, 4
      %v2298 = vrot.slane %v2166, 5
      %v2299 = vsel %vm2239, %v2297, %v2298
      %v2300 = vrot.slane %v2298, 4
      %v2301 = vrot.slane %v2167, 5
      %v2302 = vsel %vm2239, %v2300, %v2301
      %v2303 = vrot.slane %v2168, 5
      %v2304 = vrot.slane %v2303, 4
      %v2305 = vrot.slane %v2169, 5
      %v2306 = vsel %vm2239, %v2304, %v2305
      %v2307 = vrot.slane %v2305, 4
      %v2308 = vrot.slane %v2170, 5
      %v2309 = vsel %vm2239, %v2307, %v2308
      %v2310 = vrot.slane %v2171, 5
      %v2311 = vrot.slane %v2310, 4
      %v2312 = vrot.slane %v2172, 5
      %v2313 = vsel %vm2239, %v2311, %v2312
      %v2314 = vrot.slane %v2312, 4
      %v2315 = vrot.slane %v2173, 5
      %v2316 = vsel %vm2239, %v2314, %v2315
      %v2317 = vrot.slane %v2174, 5
      %v2318 = vrot.slane %v2317, 4
      %v2319 = vrot.slane %v2175, 5
      %v2320 = vsel %vm2239, %v2318, %v2319
      %v2321 = vrot.slane %v2319, 4
      %v2322 = vrot.slane %v2176, 5
      %v2323 = vsel %vm2239, %v2321, %v2322
      %v2324 = vrot.slane %v2177, 5
      %v2325 = vrot.slane %v2324, 4
      %v2326 = vrot.slane %v2178, 5
      %v2327 = vsel %vm2239, %v2325, %v2326
      %v2328 = vrot.slane %v2326, 4
      %v2329 = vrot.slane %v2179, 5
      %v2330 = vsel %vm2239, %v2328, %v2329
      %v2331 = vrot.slane %v2180, 5
      %v2332 = vrot.slane %v2331, 4
      %v2333 = vrot.slane %v2181, 5
      %v2334 = vsel %vm2239, %v2332, %v2333
      %v2335 = vrot.slane %v2333, 4
      %v2336 = vrot.slane %v2182, 5
      %v2337 = vsel %vm2239, %v2335, %v2336
      %v2338 = vrot.slane %v2183, 5
      %v2339 = vrot.slane %v2338, 4
      %v2340 = vrot.slane %v2184, 5
      %v2341 = vsel %vm2239, %v2339, %v2340
      %v2342 = vrot.slane %v2340, 4
      %v2343 = vrot.slane %v2185, 5
      %v2344 = vsel %vm2239, %v2342, %v2343
      %v2345 = vrot.slane %v2186, 5
      %v2346 = vrot.slane %v2345, 4
      %v2347 = vrot.slane %v2187, 5
      %v2348 = vsel %vm2239, %v2346, %v2347
      %v2349 = vrot.slane %v2347, 4
      %v2350 = vrot.slane %v2188, 5
      %v2351 = vsel %vm2239, %v2349, %v2350
      %2352 = vrot.lane.b32.xlu0 %v2243, 6
      %v2353 = vpop.permute.xlu0 %2352
      %2354 = vrot.lane.b32.xlu0 %v2246, 6
      %v2355 = vpop.permute.xlu0 %2354
      %2356 = vrot.lane.b32.xlu0 %v2250, 6
      %v2357 = vpop.permute.xlu0 %2356
      %2358 = vrot.lane.b32.xlu0 %v2253, 6
      %v2359 = vpop.permute.xlu0 %2358
      %2360 = vrot.lane.b32.xlu0 %v2257, 6
      %v2361 = vpop.permute.xlu0 %2360
      %2362 = vrot.lane.b32.xlu0 %v2260, 6
      %v2363 = vpop.permute.xlu0 %2362
      %2364 = vrot.lane.b32.xlu0 %v2264, 6
      %v2365 = vpop.permute.xlu0 %2364
      %2366 = vrot.lane.b32.xlu0 %v2267, 6
      %v2367 = vpop.permute.xlu0 %2366
      %2368 = vrot.lane.b32.xlu0 %v2271, 6
      %v2369 = vpop.permute.xlu0 %2368
      %2370 = vrot.lane.b32.xlu0 %v2274, 6
      %v2371 = vpop.permute.xlu0 %2370
      %2372 = vrot.lane.b32.xlu0 %v2278, 6
      %v2373 = vpop.permute.xlu0 %2372
      %2374 = vrot.lane.b32.xlu0 %v2281, 6
      %v2375 = vpop.permute.xlu0 %2374
      %2376 = vrot.lane.b32.xlu0 %v2285, 6
      %v2377 = vpop.permute.xlu0 %2376
      %2378 = vrot.lane.b32.xlu0 %v2288, 6
      %v2379 = vpop.permute.xlu0 %2378
      %2380 = vrot.lane.b32.xlu0 %v2292, 6
      %v2381 = vpop.permute.xlu0 %2380
      %2382 = vrot.lane.b32.xlu0 %v2295, 6
      %v2383 = vpop.permute.xlu0 %2382
      %2384 = vrot.lane.b32.xlu0 %v2299, 6
      %v2385 = vpop.permute.xlu0 %2384
      %2386 = vrot.lane.b32.xlu0 %v2302, 6
      %v2387 = vpop.permute.xlu0 %2386
      %2388 = vrot.lane.b32.xlu0 %v2306, 6
      %v2389 = vpop.permute.xlu0 %2388
      %2390 = vrot.lane.b32.xlu0 %v2309, 6
      %v2391 = vpop.permute.xlu0 %2390
      %2392 = vrot.lane.b32.xlu0 %v2313, 6
      %v2393 = vpop.permute.xlu0 %2392
      %2394 = vrot.lane.b32.xlu0 %v2316, 6
      %v2395 = vpop.permute.xlu0 %2394
      %2396 = vrot.lane.b32.xlu0 %v2320, 6
      %v2397 = vpop.permute.xlu0 %2396
      %2398 = vrot.lane.b32.xlu0 %v2323, 6
      %v2399 = vpop.permute.xlu0 %2398
      %2400 = vrot.lane.b32.xlu0 %v2327, 6
      %v2401 = vpop.permute.xlu0 %2400
      %2402 = vrot.lane.b32.xlu0 %v2330, 6
      %v2403 = vpop.permute.xlu0 %2402
      %2404 = vrot.lane.b32.xlu0 %v2334, 6
      %v2405 = vpop.permute.xlu0 %2404
      %2406 = vrot.lane.b32.xlu0 %v2337, 6
      %v2407 = vpop.permute.xlu0 %2406
      %2408 = vrot.lane.b32.xlu0 %v2341, 6
      %v2409 = vpop.permute.xlu0 %2408
      %2410 = vrot.lane.b32.xlu0 %v2344, 6
      %v2411 = vpop.permute.xlu0 %2410
      %2412 = vrot.lane.b32.xlu0 %v2348, 6
      %v2413 = vpop.permute.xlu0 %2412
      %2414 = vrot.lane.b32.xlu0 %v2351, 6
      %v2415 = vpop.permute.xlu0 %2414
      %vm2448 = vcmask 68656
      %2449 = vst.msk [vmem:[#allocation3] sm:$0xf] %vm2448, %v2353
      %2450 = vst.msk [vmem:[#allocation3 + $0x4] sm:$0xf] %vm2448, %v2355
      %2451 = vst.msk [vmem:[#allocation3 + $0x8] sm:$0xf] %vm2448, %v2357
      %2452 = vst.msk [vmem:[#allocation3 + $0xc] sm:$0xf] %vm2448, %v2359
      %2453 = vst.msk [vmem:[#allocation3 + $0x10] sm:$0xf] %vm2448, %v2361
      %2454 = vst.msk [vmem:[#allocation3 + $0x14] sm:$0xf] %vm2448, %v2363
      %2455 = vst.msk [vmem:[#allocation3 + $0x18] sm:$0xf] %vm2448, %v2365
      %2456 = vst.msk [vmem:[#allocation3 + $0x1c] sm:$0xf] %vm2448, %v2367
      %2457 = vst.msk [vmem:[#allocation3 + $0x20] sm:$0xf] %vm2448, %v2369
      %2458 = vst.msk [vmem:[#allocation3 + $0x24] sm:$0xf] %vm2448, %v2371
      %2459 = vst.msk [vmem:[#allocation3 + $0x28] sm:$0xf] %vm2448, %v2373
      %2460 = vst.msk [vmem:[#allocation3 + $0x2c] sm:$0xf] %vm2448, %v2375
      %2461 = vst.msk [vmem:[#allocation3 + $0x30] sm:$0xf] %vm2448, %v2377
      %2462 = vst.msk [vmem:[#allocation3 + $0x34] sm:$0xf] %vm2448, %v2379
      %2463 = vst.msk [vmem:[#allocation3 + $0x38] sm:$0xf] %vm2448, %v2381
      %2464 = vst.msk [vmem:[#allocation3 + $0x3c] sm:$0xf] %vm2448, %v2383
      %2465 = vst.msk [vmem:[#allocation3 + $0x40] sm:$0xf] %vm2448, %v2385
      %2466 = vst.msk [vmem:[#allocation3 + $0x44] sm:$0xf] %vm2448, %v2387
      %2467 = vst.msk [vmem:[#allocation3 + $0x48] sm:$0xf] %vm2448, %v2389
      %2468 = vst.msk [vmem:[#allocation3 + $0x4c] sm:$0xf] %vm2448, %v2391
      %2469 = vst.msk [vmem:[#allocation3 + $0x50] sm:$0xf] %vm2448, %v2393
      %2470 = vst.msk [vmem:[#allocation3 + $0x54] sm:$0xf] %vm2448, %v2395
      %2471 = vst.msk [vmem:[#allocation3 + $0x58] sm:$0xf] %vm2448, %v2397
      %2472 = vst.msk [vmem:[#allocation3 + $0x5c] sm:$0xf] %vm2448, %v2399
      %2473 = vst.msk [vmem:[#allocation3 + $0x60] sm:$0xf] %vm2448, %v2401
      %2474 = vst.msk [vmem:[#allocation3 + $0x64] sm:$0xf] %vm2448, %v2403
      %2475 = vst.msk [vmem:[#allocation3 + $0x68] sm:$0xf] %vm2448, %v2405
      %2476 = vst.msk [vmem:[#allocation3 + $0x6c] sm:$0xf] %vm2448, %v2407
      %2477 = vst.msk [vmem:[#allocation3 + $0x70] sm:$0xf] %vm2448, %v2409
      %2478 = vst.msk [vmem:[#allocation3 + $0x74] sm:$0xf] %vm2448, %v2411
      %2479 = vst.msk [vmem:[#allocation3 + $0x78] sm:$0xf] %vm2448, %v2413
      %2480 = vst.msk [vmem:[#allocation3 + $0x7c] sm:$0xf] %vm2448, %v2415
      %v2481 = vld [vmem:[%s895] sm:$0xf]
      %v2482 = vld [vmem:[%s895 + $0x4] sm:$0xf]
      %v2483 = vld [vmem:[%s895 + $0xc] sm:$0xf]
      %v2484 = vld [vmem:[%s895 + $0x10] sm:$0xf]
      %v2485 = vld [vmem:[%s895 + $0x18] sm:$0xf]
      %v2486 = vld [vmem:[%s895 + $0x1c] sm:$0xf]
      %v2487 = vld [vmem:[%s895 + $0x24] sm:$0xf]
      %v2488 = vld [vmem:[%s895 + $0x28] sm:$0xf]
      %v2489 = vld [vmem:[%s895 + $0x30] sm:$0xf]
      %v2490 = vld [vmem:[%s895 + $0x34] sm:$0xf]
      %v2491 = vld [vmem:[%s895 + $0x3c] sm:$0xf]
      %v2492 = vld [vmem:[%s895 + $0x40] sm:$0xf]
      %v2493 = vld [vmem:[%s895 + $0x48] sm:$0xf]
      %v2494 = vld [vmem:[%s895 + $0x4c] sm:$0xf]
      %v2495 = vld [vmem:[%s895 + $0x54] sm:$0xf]
      %v2496 = vld [vmem:[%s895 + $0x58] sm:$0xf]
      %v2497 = vld [vmem:[%s895 + $0x60] sm:$0xf]
      %v2498 = vld [vmem:[%s895 + $0x64] sm:$0xf]
      %v2499 = vld [vmem:[%s895 + $0x6c] sm:$0xf]
      %v2500 = vld [vmem:[%s895 + $0x70] sm:$0xf]
      %v2501 = vld [vmem:[%s895 + $0x78] sm:$0xf]
      %v2502 = vld [vmem:[%s895 + $0x7c] sm:$0xf]
      %v2503 = vld [vmem:[%s895 + $0x84] sm:$0xf]
      %v2504 = vld [vmem:[%s895 + $0x88] sm:$0xf]
      %v2505 = vld [vmem:[%s895 + $0x90] sm:$0xf]
      %v2506 = vld [vmem:[%s895 + $0x94] sm:$0xf]
      %v2507 = vld [vmem:[%s895 + $0x9c] sm:$0xf]
      %v2508 = vld [vmem:[%s895 + $0xa0] sm:$0xf]
      %v2509 = vld [vmem:[%s895 + $0xa8] sm:$0xf]
      %v2510 = vld [vmem:[%s895 + $0xac] sm:$0xf]
      %v2511 = vld [vmem:[%s895 + $0xb4] sm:$0xf]
      %v2512 = vld [vmem:[%s895 + $0xb8] sm:$0xf]
      %2545 = vrot.lane.b32.xlu0 %v2481, 9
      %v2546 = vpop.permute.xlu0 %2545
      %2547 = vrot.lane.b32.xlu0 %v2482, 9
      %v2548 = vpop.permute.xlu0 %2547
      %2549 = vrot.lane.b32.xlu0 %v2483, 9
      %v2550 = vpop.permute.xlu0 %2549
      %2551 = vrot.lane.b32.xlu0 %v2484, 9
      %v2552 = vpop.permute.xlu0 %2551
      %2553 = vrot.lane.b32.xlu0 %v2485, 9
      %v2554 = vpop.permute.xlu0 %2553
      %2555 = vrot.lane.b32.xlu0 %v2486, 9
      %v2556 = vpop.permute.xlu0 %2555
      %2557 = vrot.lane.b32.xlu0 %v2487, 9
      %v2558 = vpop.permute.xlu0 %2557
      %2559 = vrot.lane.b32.xlu0 %v2488, 9
      %v2560 = vpop.permute.xlu0 %2559
      %2561 = vrot.lane.b32.xlu0 %v2489, 9
      %v2562 = vpop.permute.xlu0 %2561
      %2563 = vrot.lane.b32.xlu0 %v2490, 9
      %v2564 = vpop.permute.xlu0 %2563
      %2565 = vrot.lane.b32.xlu0 %v2491, 9
      %v2566 = vpop.permute.xlu0 %2565
      %2567 = vrot.lane.b32.xlu0 %v2492, 9
      %v2568 = vpop.permute.xlu0 %2567
      %2569 = vrot.lane.b32.xlu0 %v2493, 9
      %v2570 = vpop.permute.xlu0 %2569
      %2571 = vrot.lane.b32.xlu0 %v2494, 9
      %v2572 = vpop.permute.xlu0 %2571
      %2573 = vrot.lane.b32.xlu0 %v2495, 9
      %v2574 = vpop.permute.xlu0 %2573
      %2575 = vrot.lane.b32.xlu0 %v2496, 9
      %v2576 = vpop.permute.xlu0 %2575
      %2577 = vrot.lane.b32.xlu0 %v2497, 9
      %v2578 = vpop.permute.xlu0 %2577
      %2579 = vrot.lane.b32.xlu0 %v2498, 9
      %v2580 = vpop.permute.xlu0 %2579
      %2581 = vrot.lane.b32.xlu0 %v2499, 9
      %v2582 = vpop.permute.xlu0 %2581
      %2583 = vrot.lane.b32.xlu0 %v2500, 9
      %v2584 = vpop.permute.xlu0 %2583
      %2585 = vrot.lane.b32.xlu0 %v2501, 9
      %v2586 = vpop.permute.xlu0 %2585
      %2587 = vrot.lane.b32.xlu0 %v2502, 9
      %v2588 = vpop.permute.xlu0 %2587
      %2589 = vrot.lane.b32.xlu0 %v2503, 9
      %v2590 = vpop.permute.xlu0 %2589
      %2591 = vrot.lane.b32.xlu0 %v2504, 9
      %v2592 = vpop.permute.xlu0 %2591
      %2593 = vrot.lane.b32.xlu0 %v2505, 9
      %v2594 = vpop.permute.xlu0 %2593
      %2595 = vrot.lane.b32.xlu0 %v2506, 9
      %v2596 = vpop.permute.xlu0 %2595
      %2597 = vrot.lane.b32.xlu0 %v2507, 9
      %v2598 = vpop.permute.xlu0 %2597
      %2599 = vrot.lane.b32.xlu0 %v2508, 9
      %v2600 = vpop.permute.xlu0 %2599
      %2601 = vrot.lane.b32.xlu0 %v2509, 9
      %v2602 = vpop.permute.xlu0 %2601
      %2603 = vrot.lane.b32.xlu0 %v2510, 9
      %v2604 = vpop.permute.xlu0 %2603
      %2605 = vrot.lane.b32.xlu0 %v2511, 9
      %v2606 = vpop.permute.xlu0 %2605
      %2607 = vrot.lane.b32.xlu0 %v2512, 9
      %v2608 = vpop.permute.xlu0 %2607
      %vm2641 = vcmask 93256
      %2642 = vst.msk [vmem:[#allocation3] sm:$0xf] %vm2641, %v2546
      %2643 = vst.msk [vmem:[#allocation3 + $0x4] sm:$0xf] %vm2641, %v2548
      %2644 = vst.msk [vmem:[#allocation3 + $0x8] sm:$0xf] %vm2641, %v2550
      %2645 = vst.msk [vmem:[#allocation3 + $0xc] sm:$0xf] %vm2641, %v2552
      %2646 = vst.msk [vmem:[#allocation3 + $0x10] sm:$0xf] %vm2641, %v2554
      %2647 = vst.msk [vmem:[#allocation3 + $0x14] sm:$0xf] %vm2641, %v2556
      %2648 = vst.msk [vmem:[#allocation3 + $0x18] sm:$0xf] %vm2641, %v2558
      %2649 = vst.msk [vmem:[#allocation3 + $0x1c] sm:$0xf] %vm2641, %v2560
      %2650 = vst.msk [vmem:[#allocation3 + $0x20] sm:$0xf] %vm2641, %v2562
      %2651 = vst.msk [vmem:[#allocation3 + $0x24] sm:$0xf] %vm2641, %v2564
      %2652 = vst.msk [vmem:[#allocation3 + $0x28] sm:$0xf] %vm2641, %v2566
      %2653 = vst.msk [vmem:[#allocation3 + $0x2c] sm:$0xf] %vm2641, %v2568
      %2654 = vst.msk [vmem:[#allocation3 + $0x30] sm:$0xf] %vm2641, %v2570
      %2655 = vst.msk [vmem:[#allocation3 + $0x34] sm:$0xf] %vm2641, %v2572
      %2656 = vst.msk [vmem:[#allocation3 + $0x38] sm:$0xf] %vm2641, %v2574
      %2657 = vst.msk [vmem:[#allocation3 + $0x3c] sm:$0xf] %vm2641, %v2576
      %2658 = vst.msk [vmem:[#allocation3 + $0x40] sm:$0xf] %vm2641, %v2578
      %2659 = vst.msk [vmem:[#allocation3 + $0x44] sm:$0xf] %vm2641, %v2580
      %2660 = vst.msk [vmem:[#allocation3 + $0x48] sm:$0xf] %vm2641, %v2582
      %2661 = vst.msk [vmem:[#allocation3 + $0x4c] sm:$0xf] %vm2641, %v2584
      %2662 = vst.msk [vmem:[#allocation3 + $0x50] sm:$0xf] %vm2641, %v2586
      %2663 = vst.msk [vmem:[#allocation3 + $0x54] sm:$0xf] %vm2641, %v2588
      %2664 = vst.msk [vmem:[#allocation3 + $0x58] sm:$0xf] %vm2641, %v2590
      %2665 = vst.msk [vmem:[#allocation3 + $0x5c] sm:$0xf] %vm2641, %v2592
      %2666 = vst.msk [vmem:[#allocation3 + $0x60] sm:$0xf] %vm2641, %v2594
      %2667 = vst.msk [vmem:[#allocation3 + $0x64] sm:$0xf] %vm2641, %v2596
      %2668 = vst.msk [vmem:[#allocation3 + $0x68] sm:$0xf] %vm2641, %v2598
      %2669 = vst.msk [vmem:[#allocation3 + $0x6c] sm:$0xf] %vm2641, %v2600
      %2670 = vst.msk [vmem:[#allocation3 + $0x70] sm:$0xf] %vm2641, %v2602
      %2671 = vst.msk [vmem:[#allocation3 + $0x74] sm:$0xf] %vm2641, %v2604
      %2672 = vst.msk [vmem:[#allocation3 + $0x78] sm:$0xf] %vm2641, %v2606
      %2673 = vst.msk [vmem:[#allocation3 + $0x7c] sm:$0xf] %vm2641, %v2608
      %v2674 = vld [vmem:[%s895] sm:$0xf]
      %v2675 = vld [vmem:[%s895 + $0x4] sm:$0xf]
      %v2676 = vld [vmem:[%s895 + $0x8] sm:$0x1]
      %v2677 = vld [vmem:[%s895 + $0xc] sm:$0xf]
      %v2678 = vld [vmem:[%s895 + $0x10] sm:$0xf]
      %v2679 = vld [vmem:[%s895 + $0x14] sm:$0x1]
      %v2680 = vld [vmem:[%s895 + $0x18] sm:$0xf]
      %v2681 = vld [vmem:[%s895 + $0x1c] sm:$0xf]
      %v2682 = vld [vmem:[%s895 + $0x20] sm:$0x1]
      %v2683 = vld [vmem:[%s895 + $0x24] sm:$0xf]
      %v2684 = vld [vmem:[%s895 + $0x28] sm:$0xf]
      %v2685 = vld [vmem:[%s895 + $0x2c] sm:$0x1]
      %v2686 = vld [vmem:[%s895 + $0x30] sm:$0xf]
      %v2687 = vld [vmem:[%s895 + $0x34] sm:$0xf]
      %v2688 = vld [vmem:[%s895 + $0x38] sm:$0x1]
      %v2689 = vld [vmem:[%s895 + $0x3c] sm:$0xf]
      %v2690 = vld [vmem:[%s895 + $0x40] sm:$0xf]
      %v2691 = vld [vmem:[%s895 + $0x44] sm:$0x1]
      %v2692 = vld [vmem:[%s895 + $0x48] sm:$0xf]
      %v2693 = vld [vmem:[%s895 + $0x4c] sm:$0xf]
      %v2694 = vld [vmem:[%s895 + $0x50] sm:$0x1]
      %v2695 = vld [vmem:[%s895 + $0x54] sm:$0xf]
      %v2696 = vld [vmem:[%s895 + $0x58] sm:$0xf]
      %v2697 = vld [vmem:[%s895 + $0x5c] sm:$0x1]
      %v2698 = vld [vmem:[%s895 + $0x60] sm:$0xf]
      %v2699 = vld [vmem:[%s895 + $0x64] sm:$0xf]
      %v2700 = vld [vmem:[%s895 + $0x68] sm:$0x1]
      %v2701 = vld [vmem:[%s895 + $0x6c] sm:$0xf]
      %v2702 = vld [vmem:[%s895 + $0x70] sm:$0xf]
      %v2703 = vld [vmem:[%s895 + $0x74] sm:$0x1]
      %v2704 = vld [vmem:[%s895 + $0x78] sm:$0xf]
      %v2705 = vld [vmem:[%s895 + $0x7c] sm:$0xf]
      %v2706 = vld [vmem:[%s895 + $0x80] sm:$0x1]
      %v2707 = vld [vmem:[%s895 + $0x84] sm:$0xf]
      %v2708 = vld [vmem:[%s895 + $0x88] sm:$0xf]
      %v2709 = vld [vmem:[%s895 + $0x8c] sm:$0x1]
      %v2710 = vld [vmem:[%s895 + $0x90] sm:$0xf]
      %v2711 = vld [vmem:[%s895 + $0x94] sm:$0xf]
      %v2712 = vld [vmem:[%s895 + $0x98] sm:$0x1]
      %v2713 = vld [vmem:[%s895 + $0x9c] sm:$0xf]
      %v2714 = vld [vmem:[%s895 + $0xa0] sm:$0xf]
      %v2715 = vld [vmem:[%s895 + $0xa4] sm:$0x1]
      %v2716 = vld [vmem:[%s895 + $0xa8] sm:$0xf]
      %v2717 = vld [vmem:[%s895 + $0xac] sm:$0xf]
      %v2718 = vld [vmem:[%s895 + $0xb0] sm:$0x1]
      %v2719 = vld [vmem:[%s895 + $0xb4] sm:$0xf]
      %v2720 = vld [vmem:[%s895 + $0xb8] sm:$0xf]
      %v2721 = vld [vmem:[%s895 + $0xbc] sm:$0x1]
      %v2723 = vshrl.u32 %v2674, 16
      %v2725 = vrot.slane %v2723, 4
      %v2726 = vshll.u32 %v2674, 16
      %v2728 = vrot.slane %v2726, 5
      %v2729 = vor.u32 %v2725, %v2728
      %v2730 = vrot.slane %v2729, 4
      %v2732 = vshll.u32 %v2675, 16
      %v2734 = vrot.slane %v2732, 5
      %v2735 = vsel %vm1627, %v2730, %v2734
      %v2736 = vshrl.u32 %v2675, 16
      %v2738 = vrot.slane %v2736, 4
      %v2739 = vor.u32 %v2738, %v2734
      %v2740 = vrot.slane %v2739, 4
      %v2742 = vshll.u32 %v2676, 16
      %v2744 = vrot.slane %v2742, 5
      %v2745 = vsel %vm1627, %v2740, %v2744
      %v2747 = vshrl.u32 %v2677, 16
      %v2749 = vrot.slane %v2747, 4
      %v2750 = vshll.u32 %v2677, 16
      %v2752 = vrot.slane %v2750, 5
      %v2753 = vor.u32 %v2749, %v2752
      %v2754 = vrot.slane %v2753, 4
      %v2756 = vshll.u32 %v2678, 16
      %v2758 = vrot.slane %v2756, 5
      %v2759 = vsel %vm1627, %v2754, %v2758
      %v2760 = vshrl.u32 %v2678, 16
      %v2762 = vrot.slane %v2760, 4
      %v2763 = vor.u32 %v2762, %v2758
      %v2764 = vrot.slane %v2763, 4
      %v2766 = vshll.u32 %v2679, 16
      %v2768 = vrot.slane %v2766, 5
      %v2769 = vsel %vm1627, %v2764, %v2768
      %v2771 = vshrl.u32 %v2680, 16
      %v2773 = vrot.slane %v2771, 4
      %v2774 = vshll.u32 %v2680, 16
      %v2776 = vrot.slane %v2774, 5
      %v2777 = vor.u32 %v2773, %v2776
      %v2778 = vrot.slane %v2777, 4
      %v2780 = vshll.u32 %v2681, 16
      %v2782 = vrot.slane %v2780, 5
      %v2783 = vsel %vm1627, %v2778, %v2782
      %v2784 = vshrl.u32 %v2681, 16
      %v2786 = vrot.slane %v2784, 4
      %v2787 = vor.u32 %v2786, %v2782
      %v2788 = vrot.slane %v2787, 4
      %v2790 = vshll.u32 %v2682, 16
      %v2792 = vrot.slane %v2790, 5
      %v2793 = vsel %vm1627, %v2788, %v2792
      %v2795 = vshrl.u32 %v2683, 16
      %v2797 = vrot.slane %v2795, 4
      %v2798 = vshll.u32 %v2683, 16
      %v2800 = vrot.slane %v2798, 5
      %v2801 = vor.u32 %v2797, %v2800
      %v2802 = vrot.slane %v2801, 4
      %v2804 = vshll.u32 %v2684, 16
      %v2806 = vrot.slane %v2804, 5
      %v2807 = vsel %vm1627, %v2802, %v2806
      %v2808 = vshrl.u32 %v2684, 16
      %v2810 = vrot.slane %v2808, 4
      %v2811 = vor.u32 %v2810, %v2806
      %v2812 = vrot.slane %v2811, 4
      %v2814 = vshll.u32 %v2685, 16
      %v2816 = vrot.slane %v2814, 5
      %v2817 = vsel %vm1627, %v2812, %v2816
      %v2819 = vshrl.u32 %v2686, 16
      %v2821 = vrot.slane %v2819, 4
      %v2822 = vshll.u32 %v2686, 16
      %v2824 = vrot.slane %v2822, 5
      %v2825 = vor.u32 %v2821, %v2824
      %v2826 = vrot.slane %v2825, 4
      %v2828 = vshll.u32 %v2687, 16
      %v2830 = vrot.slane %v2828, 5
      %v2831 = vsel %vm1627, %v2826, %v2830
      %v2832 = vshrl.u32 %v2687, 16
      %v2834 = vrot.slane %v2832, 4
      %v2835 = vor.u32 %v2834, %v2830
      %v2836 = vrot.slane %v2835, 4
      %v2838 = vshll.u32 %v2688, 16
      %v2840 = vrot.slane %v2838, 5
      %v2841 = vsel %vm1627, %v2836, %v2840
      %v2843 = vshrl.u32 %v2689, 16
      %v2845 = vrot.slane %v2843, 4
      %v2846 = vshll.u32 %v2689, 16
      %v2848 = vrot.slane %v2846, 5
      %v2849 = vor.u32 %v2845, %v2848
      %v2850 = vrot.slane %v2849, 4
      %v2852 = vshll.u32 %v2690, 16
      %v2854 = vrot.slane %v2852, 5
      %v2855 = vsel %vm1627, %v2850, %v2854
      %v2856 = vshrl.u32 %v2690, 16
      %v2858 = vrot.slane %v2856, 4
      %v2859 = vor.u32 %v2858, %v2854
      %v2860 = vrot.slane %v2859, 4
      %v2862 = vshll.u32 %v2691, 16
      %v2864 = vrot.slane %v2862, 5
      %v2865 = vsel %vm1627, %v2860, %v2864
      %v2867 = vshrl.u32 %v2692, 16
      %v2869 = vrot.slane %v2867, 4
      %v2870 = vshll.u32 %v2692, 16
      %v2872 = vrot.slane %v2870, 5
      %v2873 = vor.u32 %v2869, %v2872
      %v2874 = vrot.slane %v2873, 4
      %v2876 = vshll.u32 %v2693, 16
      %v2878 = vrot.slane %v2876, 5
      %v2879 = vsel %vm1627, %v2874, %v2878
      %v2880 = vshrl.u32 %v2693, 16
      %v2882 = vrot.slane %v2880, 4
      %v2883 = vor.u32 %v2882, %v2878
      %v2884 = vrot.slane %v2883, 4
      %v2886 = vshll.u32 %v2694, 16
      %v2888 = vrot.slane %v2886, 5
      %v2889 = vsel %vm1627, %v2884, %v2888
      %v2891 = vshrl.u32 %v2695, 16
      %v2893 = vrot.slane %v2891, 4
      %v2894 = vshll.u32 %v2695, 16
      %v2896 = vrot.slane %v2894, 5
      %v2897 = vor.u32 %v2893, %v2896
      %v2898 = vrot.slane %v2897, 4
      %v2900 = vshll.u32 %v2696, 16
      %v2902 = vrot.slane %v2900, 5
      %v2903 = vsel %vm1627, %v2898, %v2902
      %v2904 = vshrl.u32 %v2696, 16
      %v2906 = vrot.slane %v2904, 4
      %v2907 = vor.u32 %v2906, %v2902
      %v2908 = vrot.slane %v2907, 4
      %v2910 = vshll.u32 %v2697, 16
      %v2912 = vrot.slane %v2910, 5
      %v2913 = vsel %vm1627, %v2908, %v2912
      %v2915 = vshrl.u32 %v2698, 16
      %v2917 = vrot.slane %v2915, 4
      %v2918 = vshll.u32 %v2698, 16
      %v2920 = vrot.slane %v2918, 5
      %v2921 = vor.u32 %v2917, %v2920
      %v2922 = vrot.slane %v2921, 4
      %v2924 = vshll.u32 %v2699, 16
      %v2926 = vrot.slane %v2924, 5
      %v2927 = vsel %vm1627, %v2922, %v2926
      %v2928 = vshrl.u32 %v2699, 16
      %v2930 = vrot.slane %v2928, 4
      %v2931 = vor.u32 %v2930, %v2926
      %v2932 = vrot.slane %v2931, 4
      %v2934 = vshll.u32 %v2700, 16
      %v2936 = vrot.slane %v2934, 5
      %v2937 = vsel %vm1627, %v2932, %v2936
      %v2939 = vshrl.u32 %v2701, 16
      %v2941 = vrot.slane %v2939, 4
      %v2942 = vshll.u32 %v2701, 16
      %v2944 = vrot.slane %v2942, 5
      %v2945 = vor.u32 %v2941, %v2944
      %v2946 = vrot.slane %v2945, 4
      %v2948 = vshll.u32 %v2702, 16
      %v2950 = vrot.slane %v2948, 5
      %v2951 = vsel %vm1627, %v2946, %v2950
      %v2952 = vshrl.u32 %v2702, 16
      %v2954 = vrot.slane %v2952, 4
      %v2955 = vor.u32 %v2954, %v2950
      %v2956 = vrot.slane %v2955, 4
      %v2958 = vshll.u32 %v2703, 16
      %v2960 = vrot.slane %v2958, 5
      %v2961 = vsel %vm1627, %v2956, %v2960
      %v2963 = vshrl.u32 %v2704, 16
      %v2965 = vrot.slane %v2963, 4
      %v2966 = vshll.u32 %v2704, 16
      %v2968 = vrot.slane %v2966, 5
      %v2969 = vor.u32 %v2965, %v2968
      %v2970 = vrot.slane %v2969, 4
      %v2972 = vshll.u32 %v2705, 16
      %v2974 = vrot.slane %v2972, 5
      %v2975 = vsel %vm1627, %v2970, %v2974
      %v2976 = vshrl.u32 %v2705, 16
      %v2978 = vrot.slane %v2976, 4
      %v2979 = vor.u32 %v2978, %v2974
      %v2980 = vrot.slane %v2979, 4
      %v2982 = vshll.u32 %v2706, 16
      %v2984 = vrot.slane %v2982, 5
      %v2985 = vsel %vm1627, %v2980, %v2984
      %v2987 = vshrl.u32 %v2707, 16
      %v2989 = vrot.slane %v2987, 4
      %v2990 = vshll.u32 %v2707, 16
      %v2992 = vrot.slane %v2990, 5
      %v2993 = vor.u32 %v2989, %v2992
      %v2994 = vrot.slane %v2993, 4
      %v2996 = vshll.u32 %v2708, 16
      %v2998 = vrot.slane %v2996, 5
      %v2999 = vsel %vm1627, %v2994, %v2998
      %v3000 = vshrl.u32 %v2708, 16
      %v3002 = vrot.slane %v3000, 4
      %v3003 = vor.u32 %v3002, %v2998
      %v3004 = vrot.slane %v3003, 4
      %v3006 = vshll.u32 %v2709, 16
      %v3008 = vrot.slane %v3006, 5
      %v3009 = vsel %vm1627, %v3004, %v3008
      %v3011 = vshrl.u32 %v2710, 16
      %v3013 = vrot.slane %v3011, 4
      %v3014 = vshll.u32 %v2710, 16
      %v3016 = vrot.slane %v3014, 5
      %v3017 = vor.u32 %v3013, %v3016
      %v3018 = vrot.slane %v3017, 4
      %v3020 = vshll.u32 %v2711, 16
      %v3022 = vrot.slane %v3020, 5
      %v3023 = vsel %vm1627, %v3018, %v3022
      %v3024 = vshrl.u32 %v2711, 16
      %v3026 = vrot.slane %v3024, 4
      %v3027 = vor.u32 %v3026, %v3022
      %v3028 = vrot.slane %v3027, 4
      %v3030 = vshll.u32 %v2712, 16
      %v3032 = vrot.slane %v3030, 5
      %v3033 = vsel %vm1627, %v3028, %v3032
      %v3035 = vshrl.u32 %v2713, 16
      %v3037 = vrot.slane %v3035, 4
      %v3038 = vshll.u32 %v2713, 16
      %v3040 = vrot.slane %v3038, 5
      %v3041 = vor.u32 %v3037, %v3040
      %v3042 = vrot.slane %v3041, 4
      %v3044 = vshll.u32 %v2714, 16
      %v3046 = vrot.slane %v3044, 5
      %v3047 = vsel %vm1627, %v3042, %v3046
      %v3048 = vshrl.u32 %v2714, 16
      %v3050 = vrot.slane %v3048, 4
      %v3051 = vor.u32 %v3050, %v3046
      %v3052 = vrot.slane %v3051, 4
      %v3054 = vshll.u32 %v2715, 16
      %v3056 = vrot.slane %v3054, 5
      %v3057 = vsel %vm1627, %v3052, %v3056
      %v3059 = vshrl.u32 %v2716, 16
      %v3061 = vrot.slane %v3059, 4
      %v3062 = vshll.u32 %v2716, 16
      %v3064 = vrot.slane %v3062, 5
      %v3065 = vor.u32 %v3061, %v3064
      %v3066 = vrot.slane %v3065, 4
      %v3068 = vshll.u32 %v2717, 16
      %v3070 = vrot.slane %v3068, 5
      %v3071 = vsel %vm1627, %v3066, %v3070
      %v3072 = vshrl.u32 %v2717, 16
      %v3074 = vrot.slane %v3072, 4
      %v3075 = vor.u32 %v3074, %v3070
      %v3076 = vrot.slane %v3075, 4
      %v3078 = vshll.u32 %v2718, 16
      %v3080 = vrot.slane %v3078, 5
      %v3081 = vsel %vm1627, %v3076, %v3080
      %v3083 = vshrl.u32 %v2719, 16
      %v3085 = vrot.slane %v3083, 4
      %v3086 = vshll.u32 %v2719, 16
      %v3088 = vrot.slane %v3086, 5
      %v3089 = vor.u32 %v3085, %v3088
      %v3090 = vrot.slane %v3089, 4
      %v3092 = vshll.u32 %v2720, 16
      %v3094 = vrot.slane %v3092, 5
      %v3095 = vsel %vm1627, %v3090, %v3094
      %v3096 = vshrl.u32 %v2720, 16
      %v3098 = vrot.slane %v3096, 4
      %v3099 = vor.u32 %v3098, %v3094
      %v3100 = vrot.slane %v3099, 4
      %v3102 = vshll.u32 %v2721, 16
      %v3104 = vrot.slane %v3102, 5
      %v3105 = vsel %vm1627, %v3100, %v3104
      %3106 = vrot.lane.b32.xlu0 %v2735, 12
      %v3107 = vpop.permute.xlu0 %3106
      %3108 = vrot.lane.b32.xlu0 %v2745, 12
      %v3109 = vpop.permute.xlu0 %3108
      %3110 = vrot.lane.b32.xlu0 %v2759, 12
      %v3111 = vpop.permute.xlu0 %3110
      %3112 = vrot.lane.b32.xlu0 %v2769, 12
      %v3113 = vpop.permute.xlu0 %3112
      %3114 = vrot.lane.b32.xlu0 %v2783, 12
      %v3115 = vpop.permute.xlu0 %3114
      %3116 = vrot.lane.b32.xlu0 %v2793, 12
      %v3117 = vpop.permute.xlu0 %3116
      %3118 = vrot.lane.b32.xlu0 %v2807, 12
      %v3119 = vpop.permute.xlu0 %3118
      %3120 = vrot.lane.b32.xlu0 %v2817, 12
      %v3121 = vpop.permute.xlu0 %3120
      %3122 = vrot.lane.b32.xlu0 %v2831, 12
      %v3123 = vpop.permute.xlu0 %3122
      %3124 = vrot.lane.b32.xlu0 %v2841, 12
      %v3125 = vpop.permute.xlu0 %3124
      %3126 = vrot.lane.b32.xlu0 %v2855, 12
      %v3127 = vpop.permute.xlu0 %3126
      %3128 = vrot.lane.b32.xlu0 %v2865, 12
      %v3129 = vpop.permute.xlu0 %3128
      %3130 = vrot.lane.b32.xlu0 %v2879, 12
      %v3131 = vpop.permute.xlu0 %3130
      %3132 = vrot.lane.b32.xlu0 %v2889, 12
      %v3133 = vpop.permute.xlu0 %3132
      %3134 = vrot.lane.b32.xlu0 %v2903, 12
      %v3135 = vpop.permute.xlu0 %3134
      %3136 = vrot.lane.b32.xlu0 %v2913, 12
      %v3137 = vpop.permute.xlu0 %3136
      %3138 = vrot.lane.b32.xlu0 %v2927, 12
      %v3139 = vpop.permute.xlu0 %3138
      %3140 = vrot.lane.b32.xlu0 %v2937, 12
      %v3141 = vpop.permute.xlu0 %3140
      %3142 = vrot.lane.b32.xlu0 %v2951, 12
      %v3143 = vpop.permute.xlu0 %3142
      %3144 = vrot.lane.b32.xlu0 %v2961, 12
      %v3145 = vpop.permute.xlu0 %3144
      %3146 = vrot.lane.b32.xlu0 %v2975, 12
      %v3147 = vpop.permute.xlu0 %3146
      %3148 = vrot.lane.b32.xlu0 %v2985, 12
      %v3149 = vpop.permute.xlu0 %3148
      %3150 = vrot.lane.b32.xlu0 %v2999, 12
      %v3151 = vpop.permute.xlu0 %3150
      %3152 = vrot.lane.b32.xlu0 %v3009, 12
      %v3153 = vpop.permute.xlu0 %3152
      %3154 = vrot.lane.b32.xlu0 %v3023, 12
      %v3155 = vpop.permute.xlu0 %3154
      %3156 = vrot.lane.b32.xlu0 %v3033, 12
      %v3157 = vpop.permute.xlu0 %3156
      %3158 = vrot.lane.b32.xlu0 %v3047, 12
      %v3159 = vpop.permute.xlu0 %3158
      %3160 = vrot.lane.b32.xlu0 %v3057, 12
      %v3161 = vpop.permute.xlu0 %3160
      %3162 = vrot.lane.b32.xlu0 %v3071, 12
      %v3163 = vpop.permute.xlu0 %3162
      %3164 = vrot.lane.b32.xlu0 %v3081, 12
      %v3165 = vpop.permute.xlu0 %3164
      %3166 = vrot.lane.b32.xlu0 %v3095, 12
      %v3167 = vpop.permute.xlu0 %3166
      %3168 = vrot.lane.b32.xlu0 %v3105, 12
      %v3169 = vpop.permute.xlu0 %3168
      %vm3202 = vcmask 117856
      %3203 = vst.msk [vmem:[#allocation3] sm:$0xf] %vm3202, %v3107
      %3204 = vst.msk [vmem:[#allocation3 + $0x4] sm:$0xf] %vm3202, %v3109
      %3205 = vst.msk [vmem:[#allocation3 + $0x8] sm:$0xf] %vm3202, %v3111
      %3206 = vst.msk [vmem:[#allocation3 + $0xc] sm:$0xf] %vm3202, %v3113
      %3207 = vst.msk [vmem:[#allocation3 + $0x10] sm:$0xf] %vm3202, %v3115
      %3208 = vst.msk [vmem:[#allocation3 + $0x14] sm:$0xf] %vm3202, %v3117
      %3209 = vst.msk [vmem:[#allocation3 + $0x18] sm:$0xf] %vm3202, %v3119
      %3210 = vst.msk [vmem:[#allocation3 + $0x1c] sm:$0xf] %vm3202, %v3121
      %3211 = vst.msk [vmem:[#allocation3 + $0x20] sm:$0xf] %vm3202, %v3123
      %3212 = vst.msk [vmem:[#allocation3 + $0x24] sm:$0xf] %vm3202, %v3125
      %3213 = vst.msk [vmem:[#allocation3 + $0x28] sm:$0xf] %vm3202, %v3127
      %3214 = vst.msk [vmem:[#allocation3 + $0x2c] sm:$0xf] %vm3202, %v3129
      %3215 = vst.msk [vmem:[#allocation3 + $0x30] sm:$0xf] %vm3202, %v3131
      %3216 = vst.msk [vmem:[#allocation3 + $0x34] sm:$0xf] %vm3202, %v3133
      %3217 = vst.msk [vmem:[#allocation3 + $0x38] sm:$0xf] %vm3202, %v3135
      %3218 = vst.msk [vmem:[#allocation3 + $0x3c] sm:$0xf] %vm3202, %v3137
      %3219 = vst.msk [vmem:[#allocation3 + $0x40] sm:$0xf] %vm3202, %v3139
      %3220 = vst.msk [vmem:[#allocation3 + $0x44] sm:$0xf] %vm3202, %v3141
      %3221 = vst.msk [vmem:[#allocation3 + $0x48] sm:$0xf] %vm3202, %v3143
      %3222 = vst.msk [vmem:[#allocation3 + $0x4c] sm:$0xf] %vm3202, %v3145
      %3223 = vst.msk [vmem:[#allocation3 + $0x50] sm:$0xf] %vm3202, %v3147
      %3224 = vst.msk [vmem:[#allocation3 + $0x54] sm:$0xf] %vm3202, %v3149
      %3225 = vst.msk [vmem:[#allocation3 + $0x58] sm:$0xf] %vm3202, %v3151
      %3226 = vst.msk [vmem:[#allocation3 + $0x5c] sm:$0xf] %vm3202, %v3153
      %3227 = vst.msk [vmem:[#allocation3 + $0x60] sm:$0xf] %vm3202, %v3155
      %3228 = vst.msk [vmem:[#allocation3 + $0x64] sm:$0xf] %vm3202, %v3157
      %3229 = vst.msk [vmem:[#allocation3 + $0x68] sm:$0xf] %vm3202, %v3159
      %3230 = vst.msk [vmem:[#allocation3 + $0x6c] sm:$0xf] %vm3202, %v3161
      %3231 = vst.msk [vmem:[#allocation3 + $0x70] sm:$0xf] %vm3202, %v3163
      %3232 = vst.msk [vmem:[#allocation3 + $0x74] sm:$0xf] %vm3202, %v3165
      %3233 = vst.msk [vmem:[#allocation3 + $0x78] sm:$0xf] %vm3202, %v3167
      %3234 = vst.msk [vmem:[#allocation3 + $0x7c] sm:$0xf] %vm3202, %v3169
      %v3235 = vld [vmem:[%s895] sm:$0xe]
      %v3236 = vld [vmem:[%s895 + $0x4] sm:$0xf]
      %v3237 = vld [vmem:[%s895 + $0x8] sm:$0x1]
      %v3238 = vld [vmem:[%s895 + $0xc] sm:$0xe]
      %v3239 = vld [vmem:[%s895 + $0x10] sm:$0xf]
      %v3240 = vld [vmem:[%s895 + $0x14] sm:$0x1]
      %v3241 = vld [vmem:[%s895 + $0x18] sm:$0xe]
      %v3242 = vld [vmem:[%s895 + $0x1c] sm:$0xf]
      %v3243 = vld [vmem:[%s895 + $0x20] sm:$0x1]
      %v3244 = vld [vmem:[%s895 + $0x24] sm:$0xe]
      %v3245 = vld [vmem:[%s895 + $0x28] sm:$0xf]
      %v3246 = vld [vmem:[%s895 + $0x2c] sm:$0x1]
      %v3247 = vld [vmem:[%s895 + $0x30] sm:$0xe]
      %v3248 = vld [vmem:[%s895 + $0x34] sm:$0xf]
      %v3249 = vld [vmem:[%s895 + $0x38] sm:$0x1]
      %v3250 = vld [vmem:[%s895 + $0x3c] sm:$0xe]
      %v3251 = vld [vmem:[%s895 + $0x40] sm:$0xf]
      %v3252 = vld [vmem:[%s895 + $0x44] sm:$0x1]
      %v3253 = vld [vmem:[%s895 + $0x48] sm:$0xe]
      %v3254 = vld [vmem:[%s895 + $0x4c] sm:$0xf]
      %v3255 = vld [vmem:[%s895 + $0x50] sm:$0x1]
      %v3256 = vld [vmem:[%s895 + $0x54] sm:$0xe]
      %v3257 = vld [vmem:[%s895 + $0x58] sm:$0xf]
      %v3258 = vld [vmem:[%s895 + $0x5c] sm:$0x1]
      %v3259 = vld [vmem:[%s895 + $0x60] sm:$0xe]
      %v3260 = vld [vmem:[%s895 + $0x64] sm:$0xf]
      %v3261 = vld [vmem:[%s895 + $0x68] sm:$0x1]
      %v3262 = vld [vmem:[%s895 + $0x6c] sm:$0xe]
      %v3263 = vld [vmem:[%s895 + $0x70] sm:$0xf]
      %v3264 = vld [vmem:[%s895 + $0x74] sm:$0x1]
      %v3265 = vld [vmem:[%s895 + $0x78] sm:$0xe]
      %v3266 = vld [vmem:[%s895 + $0x7c] sm:$0xf]
      %v3267 = vld [vmem:[%s895 + $0x80] sm:$0x1]
      %v3268 = vld [vmem:[%s895 + $0x84] sm:$0xe]
      %v3269 = vld [vmem:[%s895 + $0x88] sm:$0xf]
      %v3270 = vld [vmem:[%s895 + $0x8c] sm:$0x1]
      %v3271 = vld [vmem:[%s895 + $0x90] sm:$0xe]
      %v3272 = vld [vmem:[%s895 + $0x94] sm:$0xf]
      %v3273 = vld [vmem:[%s895 + $0x98] sm:$0x1]
      %v3274 = vld [vmem:[%s895 + $0x9c] sm:$0xe]
      %v3275 = vld [vmem:[%s895 + $0xa0] sm:$0xf]
      %v3276 = vld [vmem:[%s895 + $0xa4] sm:$0x1]
      %v3277 = vld [vmem:[%s895 + $0xa8] sm:$0xe]
      %v3278 = vld [vmem:[%s895 + $0xac] sm:$0xf]
      %v3279 = vld [vmem:[%s895 + $0xb0] sm:$0x1]
      %v3280 = vld [vmem:[%s895 + $0xb4] sm:$0xe]
      %v3281 = vld [vmem:[%s895 + $0xb8] sm:$0xf]
      %v3282 = vld [vmem:[%s895 + $0xbc] sm:$0x1]
      %v3331 = vrot.slane %v3235, 5
      %v3332 = vrot.slane %v3331, 4
      %v3333 = vrot.slane %v3236, 5
      %v3334 = vsel %vm2239, %v3332, %v3333
      %v3335 = vrot.slane %v3333, 4
      %v3336 = vrot.slane %v3237, 5
      %v3337 = vsel %vm2239, %v3335, %v3336
      %v3338 = vrot.slane %v3238, 5
      %v3339 = vrot.slane %v3338, 4
      %v3340 = vrot.slane %v3239, 5
      %v3341 = vsel %vm2239, %v3339, %v3340
      %v3342 = vrot.slane %v3340, 4
      %v3343 = vrot.slane %v3240, 5
      %v3344 = vsel %vm2239, %v3342, %v3343
      %v3345 = vrot.slane %v3241, 5
      %v3346 = vrot.slane %v3345, 4
      %v3347 = vrot.slane %v3242, 5
      %v3348 = vsel %vm2239, %v3346, %v3347
      %v3349 = vrot.slane %v3347, 4
      %v3350 = vrot.slane %v3243, 5
      %v3351 = vsel %vm2239, %v3349, %v3350
      %v3352 = vrot.slane %v3244, 5
      %v3353 = vrot.slane %v3352, 4
      %v3354 = vrot.slane %v3245, 5
      %v3355 = vsel %vm2239, %v3353, %v3354
      %v3356 = vrot.slane %v3354, 4
      %v3357 = vrot.slane %v3246, 5
      %v3358 = vsel %vm2239, %v3356, %v3357
      %v3359 = vrot.slane %v3247, 5
      %v3360 = vrot.slane %v3359, 4
      %v3361 = vrot.slane %v3248, 5
      %v3362 = vsel %vm2239, %v3360, %v3361
      %v3363 = vrot.slane %v3361, 4
      %v3364 = vrot.slane %v3249, 5
      %v3365 = vsel %vm2239, %v3363, %v3364
      %v3366 = vrot.slane %v3250, 5
      %v3367 = vrot.slane %v3366, 4
      %v3368 = vrot.slane %v3251, 5
      %v3369 = vsel %vm2239, %v3367, %v3368
      %v3370 = vrot.slane %v3368, 4
      %v3371 = vrot.slane %v3252, 5
      %v3372 = vsel %vm2239, %v3370, %v3371
      %v3373 = vrot.slane %v3253, 5
      %v3374 = vrot.slane %v3373, 4
      %v3375 = vrot.slane %v3254, 5
      %v3376 = vsel %vm2239, %v3374, %v3375
      %v3377 = vrot.slane %v3375, 4
      %v3378 = vrot.slane %v3255, 5
      %v3379 = vsel %vm2239, %v3377, %v3378
      %v3380 = vrot.slane %v3256, 5
      %v3381 = vrot.slane %v3380, 4
      %v3382 = vrot.slane %v3257, 5
      %v3383 = vsel %vm2239, %v3381, %v3382
      %v3384 = vrot.slane %v3382, 4
      %v3385 = vrot.slane %v3258, 5
      %v3386 = vsel %vm2239, %v3384, %v3385
      %v3387 = vrot.slane %v3259, 5
      %v3388 = vrot.slane %v3387, 4
      %v3389 = vrot.slane %v3260, 5
      %v3390 = vsel %vm2239, %v3388, %v3389
      %v3391 = vrot.slane %v3389, 4
      %v3392 = vrot.slane %v3261, 5
      %v3393 = vsel %vm2239, %v3391, %v3392
      %v3394 = vrot.slane %v3262, 5
      %v3395 = vrot.slane %v3394, 4
      %v3396 = vrot.slane %v3263, 5
      %v3397 = vsel %vm2239, %v3395, %v3396
      %v3398 = vrot.slane %v3396, 4
      %v3399 = vrot.slane %v3264, 5
      %v3400 = vsel %vm2239, %v3398, %v3399
      %v3401 = vrot.slane %v3265, 5
      %v3402 = vrot.slane %v3401, 4
      %v3403 = vrot.slane %v3266, 5
      %v3404 = vsel %vm2239, %v3402, %v3403
      %v3405 = vrot.slane %v3403, 4
      %v3406 = vrot.slane %v3267, 5
      %v3407 = vsel %vm2239, %v3405, %v3406
      %v3408 = vrot.slane %v3268, 5
      %v3409 = vrot.slane %v3408, 4
      %v3410 = vrot.slane %v3269, 5
      %v3411 = vsel %vm2239, %v3409, %v3410
      %v3412 = vrot.slane %v3410, 4
      %v3413 = vrot.slane %v3270, 5
      %v3414 = vsel %vm2239, %v3412, %v3413
      %v3415 = vrot.slane %v3271, 5
      %v3416 = vrot.slane %v3415, 4
      %v3417 = vrot.slane %v3272, 5
      %v3418 = vsel %vm2239, %v3416, %v3417
      %v3419 = vrot.slane %v3417, 4
      %v3420 = vrot.slane %v3273, 5
      %v3421 = vsel %vm2239, %v3419, %v3420
      %v3422 = vrot.slane %v3274, 5
      %v3423 = vrot.slane %v3422, 4
      %v3424 = vrot.slane %v3275, 5
      %v3425 = vsel %vm2239, %v3423, %v3424
      %v3426 = vrot.slane %v3424, 4
      %v3427 = vrot.slane %v3276, 5
      %v3428 = vsel %vm2239, %v3426, %v3427
      %v3429 = vrot.slane %v3277, 5
      %v3430 = vrot.slane %v3429, 4
      %v3431 = vrot.slane %v3278, 5
      %v3432 = vsel %vm2239, %v3430, %v3431
      %v3433 = vrot.slane %v3431, 4
      %v3434 = vrot.slane %v3279, 5
      %v3435 = vsel %vm2239, %v3433, %v3434
      %v3436 = vrot.slane %v3280, 5
      %v3437 = vrot.slane %v3436, 4
      %v3438 = vrot.slane %v3281, 5
      %v3439 = vsel %vm2239, %v3437, %v3438
      %v3440 = vrot.slane %v3438, 4
      %v3441 = vrot.slane %v3282, 5
      %v3442 = vsel %vm2239, %v3440, %v3441
      %3443 = vrot.lane.b32.xlu0 %v3334, 15
      %v3444 = vpop.permute.xlu0 %3443
      %3445 = vrot.lane.b32.xlu0 %v3337, 15
      %v3446 = vpop.permute.xlu0 %3445
      %3447 = vrot.lane.b32.xlu0 %v3341, 15
      %v3448 = vpop.permute.xlu0 %3447
      %3449 = vrot.lane.b32.xlu0 %v3344, 15
      %v3450 = vpop.permute.xlu0 %3449
      %3451 = vrot.lane.b32.xlu0 %v3348, 15
      %v3452 = vpop.permute.xlu0 %3451
      %3453 = vrot.lane.b32.xlu0 %v3351, 15
      %v3454 = vpop.permute.xlu0 %3453
      %3455 = vrot.lane.b32.xlu0 %v3355, 15
      %v3456 = vpop.permute.xlu0 %3455
      %3457 = vrot.lane.b32.xlu0 %v3358, 15
      %v3458 = vpop.permute.xlu0 %3457
      %3459 = vrot.lane.b32.xlu0 %v3362, 15
      %v3460 = vpop.permute.xlu0 %3459
      %3461 = vrot.lane.b32.xlu0 %v3365, 15
      %v3462 = vpop.permute.xlu0 %3461
      %3463 = vrot.lane.b32.xlu0 %v3369, 15
      %v3464 = vpop.permute.xlu0 %3463
      %3465 = vrot.lane.b32.xlu0 %v3372, 15
      %v3466 = vpop.permute.xlu0 %3465
      %3467 = vrot.lane.b32.xlu0 %v3376, 15
      %v3468 = vpop.permute.xlu0 %3467
      %3469 = vrot.lane.b32.xlu0 %v3379, 15
      %v3470 = vpop.permute.xlu0 %3469
      %3471 = vrot.lane.b32.xlu0 %v3383, 15
      %v3472 = vpop.permute.xlu0 %3471
      %3473 = vrot.lane.b32.xlu0 %v3386, 15
      %v3474 = vpop.permute.xlu0 %3473
      %3475 = vrot.lane.b32.xlu0 %v3390, 15
      %v3476 = vpop.permute.xlu0 %3475
      %3477 = vrot.lane.b32.xlu0 %v3393, 15
      %v3478 = vpop.permute.xlu0 %3477
      %3479 = vrot.lane.b32.xlu0 %v3397, 15
      %v3480 = vpop.permute.xlu0 %3479
      %3481 = vrot.lane.b32.xlu0 %v3400, 15
      %v3482 = vpop.permute.xlu0 %3481
      %3483 = vrot.lane.b32.xlu0 %v3404, 15
      %v3484 = vpop.permute.xlu0 %3483
      %3485 = vrot.lane.b32.xlu0 %v3407, 15
      %v3486 = vpop.permute.xlu0 %3485
      %3487 = vrot.lane.b32.xlu0 %v3411, 15
      %v3488 = vpop.permute.xlu0 %3487
      %3489 = vrot.lane.b32.xlu0 %v3414, 15
      %v3490 = vpop.permute.xlu0 %3489
      %3491 = vrot.lane.b32.xlu0 %v3418, 15
      %v3492 = vpop.permute.xlu0 %3491
      %3493 = vrot.lane.b32.xlu0 %v3421, 15
      %v3494 = vpop.permute.xlu0 %3493
      %3495 = vrot.lane.b32.xlu0 %v3425, 15
      %v3496 = vpop.permute.xlu0 %3495
      %3497 = vrot.lane.b32.xlu0 %v3428, 15
      %v3498 = vpop.permute.xlu0 %3497
      %3499 = vrot.lane.b32.xlu0 %v3432, 15
      %v3500 = vpop.permute.xlu0 %3499
      %3501 = vrot.lane.b32.xlu0 %v3435, 15
      %v3502 = vpop.permute.xlu0 %3501
      %3503 = vrot.lane.b32.xlu0 %v3439, 15
      %v3504 = vpop.permute.xlu0 %3503
      %3505 = vrot.lane.b32.xlu0 %v3442, 15
      %v3506 = vpop.permute.xlu0 %3505
      %vm3539 = vcmask 142456
      %3540 = vst.msk [vmem:[#allocation3] sm:$0xf] %vm3539, %v3444
      %3541 = vst.msk [vmem:[#allocation3 + $0x4] sm:$0xf] %vm3539, %v3446
      %3542 = vst.msk [vmem:[#allocation3 + $0x8] sm:$0xf] %vm3539, %v3448
      %3543 = vst.msk [vmem:[#allocation3 + $0xc] sm:$0xf] %vm3539, %v3450
      %3544 = vst.msk [vmem:[#allocation3 + $0x10] sm:$0xf] %vm3539, %v3452
      %3545 = vst.msk [vmem:[#allocation3 + $0x14] sm:$0xf] %vm3539, %v3454
      %3546 = vst.msk [vmem:[#allocation3 + $0x18] sm:$0xf] %vm3539, %v3456
      %3547 = vst.msk [vmem:[#allocation3 + $0x1c] sm:$0xf] %vm3539, %v3458
      %3548 = vst.msk [vmem:[#allocation3 + $0x20] sm:$0xf] %vm3539, %v3460
      %3549 = vst.msk [vmem:[#allocation3 + $0x24] sm:$0xf] %vm3539, %v3462
      %3550 = vst.msk [vmem:[#allocation3 + $0x28] sm:$0xf] %vm3539, %v3464
      %3551 = vst.msk [vmem:[#allocation3 + $0x2c] sm:$0xf] %vm3539, %v3466
      %3552 = vst.msk [vmem:[#allocation3 + $0x30] sm:$0xf] %vm3539, %v3468
      %3553 = vst.msk [vmem:[#allocation3 + $0x34] sm:$0xf] %vm3539, %v3470
      %3554 = vst.msk [vmem:[#allocation3 + $0x38] sm:$0xf] %vm3539, %v3472
      %3555 = vst.msk [vmem:[#allocation3 + $0x3c] sm:$0xf] %vm3539, %v3474
      %3556 = vst.msk [vmem:[#allocation3 + $0x40] sm:$0xf] %vm3539, %v3476
      %3557 = vst.msk [vmem:[#allocation3 + $0x44] sm:$0xf] %vm3539, %v3478
      %3558 = vst.msk [vmem:[#allocation3 + $0x48] sm:$0xf] %vm3539, %v3480
      %3559 = vst.msk [vmem:[#allocation3 + $0x4c] sm:$0xf] %vm3539, %v3482
      %3560 = vst.msk [vmem:[#allocation3 + $0x50] sm:$0xf] %vm3539, %v3484
      %3561 = vst.msk [vmem:[#allocation3 + $0x54] sm:$0xf] %vm3539, %v3486
      %3562 = vst.msk [vmem:[#allocation3 + $0x58] sm:$0xf] %vm3539, %v3488
      %3563 = vst.msk [vmem:[#allocation3 + $0x5c] sm:$0xf] %vm3539, %v3490
      %3564 = vst.msk [vmem:[#allocation3 + $0x60] sm:$0xf] %vm3539, %v3492
      %3565 = vst.msk [vmem:[#allocation3 + $0x64] sm:$0xf] %vm3539, %v3494
      %3566 = vst.msk [vmem:[#allocation3 + $0x68] sm:$0xf] %vm3539, %v3496
      %3567 = vst.msk [vmem:[#allocation3 + $0x6c] sm:$0xf] %vm3539, %v3498
      %3568 = vst.msk [vmem:[#allocation3 + $0x70] sm:$0xf] %vm3539, %v3500
      %3569 = vst.msk [vmem:[#allocation3 + $0x74] sm:$0xf] %vm3539, %v3502
      %3570 = vst.msk [vmem:[#allocation3 + $0x78] sm:$0xf] %vm3539, %v3504
      %3571 = vst.msk [vmem:[#allocation3 + $0x7c] sm:$0xf] %vm3539, %v3506
      %s3572 = scalar_lea.vmem [#allocation2], 24
      %v3573 = vld [vmem:[%s3572] sm:$0xf]
      %v3574 = vld [vmem:[%s3572 + $0x4] sm:$0xf]
      %v3575 = vld [vmem:[%s3572 + $0xc] sm:$0xf]
      %v3576 = vld [vmem:[%s3572 + $0x10] sm:$0xf]
      %v3577 = vld [vmem:[%s3572 + $0x18] sm:$0xf]
      %v3578 = vld [vmem:[%s3572 + $0x1c] sm:$0xf]
      %v3579 = vld [vmem:[%s3572 + $0x24] sm:$0xf]
      %v3580 = vld [vmem:[%s3572 + $0x28] sm:$0xf]
      %v3581 = vld [vmem:[%s3572 + $0x30] sm:$0xf]
      %v3582 = vld [vmem:[%s3572 + $0x34] sm:$0xf]
      %v3583 = vld [vmem:[%s3572 + $0x3c] sm:$0xf]
      %v3584 = vld [vmem:[%s3572 + $0x40] sm:$0xf]
      %v3585 = vld [vmem:[%s3572 + $0x48] sm:$0xf]
      %v3586 = vld [vmem:[%s3572 + $0x4c] sm:$0xf]
      %v3587 = vld [vmem:[%s3572 + $0x54] sm:$0xf]
      %v3588 = vld [vmem:[%s3572 + $0x58] sm:$0xf]
      %v3589 = vld [vmem:[%s3572 + $0x60] sm:$0xf]
      %v3590 = vld [vmem:[%s3572 + $0x64] sm:$0xf]
      %v3591 = vld [vmem:[%s3572 + $0x6c] sm:$0xf]
      %v3592 = vld [vmem:[%s3572 + $0x70] sm:$0xf]
      %v3593 = vld [vmem:[%s3572 + $0x78] sm:$0xf]
      %v3594 = vld [vmem:[%s3572 + $0x7c] sm:$0xf]
      %v3595 = vld [vmem:[%s3572 + $0x84] sm:$0xf]
      %v3596 = vld [vmem:[%s3572 + $0x88] sm:$0xf]
      %v3597 = vld [vmem:[%s3572 + $0x90] sm:$0xf]
      %v3598 = vld [vmem:[%s3572 + $0x94] sm:$0xf]
      %v3599 = vld [vmem:[%s3572 + $0x9c] sm:$0xf]
      %v3600 = vld [vmem:[%s3572 + $0xa0] sm:$0xf]
      %v3601 = vld [vmem:[%s3572 + $0xa8] sm:$0xf]
      %v3602 = vld [vmem:[%s3572 + $0xac] sm:$0xf]
      %v3603 = vld [vmem:[%s3572 + $0xb4] sm:$0xf]
      %v3604 = vld [vmem:[%s3572 + $0xb8] sm:$0xf]
      %3637 = vrot.lane.b32.xlu0 %v3573, 18
      %v3638 = vpop.permute.xlu0 %3637
      %3639 = vrot.lane.b32.xlu0 %v3574, 18
      %v3640 = vpop.permute.xlu0 %3639
      %3641 = vrot.lane.b32.xlu0 %v3575, 18
      %v3642 = vpop.permute.xlu0 %3641
      %3643 = vrot.lane.b32.xlu0 %v3576, 18
      %v3644 = vpop.permute.xlu0 %3643
      %3645 = vrot.lane.b32.xlu0 %v3577, 18
      %v3646 = vpop.permute.xlu0 %3645
      %3647 = vrot.lane.b32.xlu0 %v3578, 18
      %v3648 = vpop.permute.xlu0 %3647
      %3649 = vrot.lane.b32.xlu0 %v3579, 18
      %v3650 = vpop.permute.xlu0 %3649
      %3651 = vrot.lane.b32.xlu0 %v3580, 18
      %v3652 = vpop.permute.xlu0 %3651
      %3653 = vrot.lane.b32.xlu0 %v3581, 18
      %v3654 = vpop.permute.xlu0 %3653
      %3655 = vrot.lane.b32.xlu0 %v3582, 18
      %v3656 = vpop.permute.xlu0 %3655
      %3657 = vrot.lane.b32.xlu0 %v3583, 18
      %v3658 = vpop.permute.xlu0 %3657
      %3659 = vrot.lane.b32.xlu0 %v3584, 18
      %v3660 = vpop.permute.xlu0 %3659
      %3661 = vrot.lane.b32.xlu0 %v3585, 18
      %v3662 = vpop.permute.xlu0 %3661
      %3663 = vrot.lane.b32.xlu0 %v3586, 18
      %v3664 = vpop.permute.xlu0 %3663
      %3665 = vrot.lane.b32.xlu0 %v3587, 18
      %v3666 = vpop.permute.xlu0 %3665
      %3667 = vrot.lane.b32.xlu0 %v3588, 18
      %v3668 = vpop.permute.xlu0 %3667
      %3669 = vrot.lane.b32.xlu0 %v3589, 18
      %v3670 = vpop.permute.xlu0 %3669
      %3671 = vrot.lane.b32.xlu0 %v3590, 18
      %v3672 = vpop.permute.xlu0 %3671
      %3673 = vrot.lane.b32.xlu0 %v3591, 18
      %v3674 = vpop.permute.xlu0 %3673
      %3675 = vrot.lane.b32.xlu0 %v3592, 18
      %v3676 = vpop.permute.xlu0 %3675
      %3677 = vrot.lane.b32.xlu0 %v3593, 18
      %v3678 = vpop.permute.xlu0 %3677
      %3679 = vrot.lane.b32.xlu0 %v3594, 18
      %v3680 = vpop.permute.xlu0 %3679
      %3681 = vrot.lane.b32.xlu0 %v3595, 18
      %v3682 = vpop.permute.xlu0 %3681
      %3683 = vrot.lane.b32.xlu0 %v3596, 18
      %v3684 = vpop.permute.xlu0 %3683
      %3685 = vrot.lane.b32.xlu0 %v3597, 18
      %v3686 = vpop.permute.xlu0 %3685
      %3687 = vrot.lane.b32.xlu0 %v3598, 18
      %v3688 = vpop.permute.xlu0 %3687
      %3689 = vrot.lane.b32.xlu0 %v3599, 18
      %v3690 = vpop.permute.xlu0 %3689
      %3691 = vrot.lane.b32.xlu0 %v3600, 18
      %v3692 = vpop.permute.xlu0 %3691
      %3693 = vrot.lane.b32.xlu0 %v3601, 18
      %v3694 = vpop.permute.xlu0 %3693
      %3695 = vrot.lane.b32.xlu0 %v3602, 18
      %v3696 = vpop.permute.xlu0 %3695
      %3697 = vrot.lane.b32.xlu0 %v3603, 18
      %v3698 = vpop.permute.xlu0 %3697
      %3699 = vrot.lane.b32.xlu0 %v3604, 18
      %v3700 = vpop.permute.xlu0 %3699
      %vm3733 = vcmask 167056
      %3734 = vst.msk [vmem:[#allocation3] sm:$0xf] %vm3733, %v3638
      %3735 = vst.msk [vmem:[#allocation3 + $0x4] sm:$0xf] %vm3733, %v3640
      %3736 = vst.msk [vmem:[#allocation3 + $0x8] sm:$0xf] %vm3733, %v3642
      %3737 = vst.msk [vmem:[#allocation3 + $0xc] sm:$0xf] %vm3733, %v3644
      %3738 = vst.msk [vmem:[#allocation3 + $0x10] sm:$0xf] %vm3733, %v3646
      %3739 = vst.msk [vmem:[#allocation3 + $0x14] sm:$0xf] %vm3733, %v3648
      %3740 = vst.msk [vmem:[#allocation3 + $0x18] sm:$0xf] %vm3733, %v3650
      %3741 = vst.msk [vmem:[#allocation3 + $0x1c] sm:$0xf] %vm3733, %v3652
      %3742 = vst.msk [vmem:[#allocation3 + $0x20] sm:$0xf] %vm3733, %v3654
      %3743 = vst.msk [vmem:[#allocation3 + $0x24] sm:$0xf] %vm3733, %v3656
      %3744 = vst.msk [vmem:[#allocation3 + $0x28] sm:$0xf] %vm3733, %v3658
      %3745 = vst.msk [vmem:[#allocation3 + $0x2c] sm:$0xf] %vm3733, %v3660
      %3746 = vst.msk [vmem:[#allocation3 + $0x30] sm:$0xf] %vm3733, %v3662
      %3747 = vst.msk [vmem:[#allocation3 + $0x34] sm:$0xf] %vm3733, %v3664
      %3748 = vst.msk [vmem:[#allocation3 + $0x38] sm:$0xf] %vm3733, %v3666
      %3749 = vst.msk [vmem:[#allocation3 + $0x3c] sm:$0xf] %vm3733, %v3668
      %3750 = vst.msk [vmem:[#allocation3 + $0x40] sm:$0xf] %vm3733, %v3670
      %3751 = vst.msk [vmem:[#allocation3 + $0x44] sm:$0xf] %vm3733, %v3672
      %3752 = vst.msk [vmem:[#allocation3 + $0x48] sm:$0xf] %vm3733, %v3674
      %3753 = vst.msk [vmem:[#allocation3 + $0x4c] sm:$0xf] %vm3733, %v3676
      %3754 = vst.msk [vmem:[#allocation3 + $0x50] sm:$0xf] %vm3733, %v3678
      %3755 = vst.msk [vmem:[#allocation3 + $0x54] sm:$0xf] %vm3733, %v3680
      %3756 = vst.msk [vmem:[#allocation3 + $0x58] sm:$0xf] %vm3733, %v3682
      %3757 = vst.msk [vmem:[#allocation3 + $0x5c] sm:$0xf] %vm3733, %v3684
      %3758 = vst.msk [vmem:[#allocation3 + $0x60] sm:$0xf] %vm3733, %v3686
      %3759 = vst.msk [vmem:[#allocation3 + $0x64] sm:$0xf] %vm3733, %v3688
      %3760 = vst.msk [vmem:[#allocation3 + $0x68] sm:$0xf] %vm3733, %v3690
      %3761 = vst.msk [vmem:[#allocation3 + $0x6c] sm:$0xf] %vm3733, %v3692
      %3762 = vst.msk [vmem:[#allocation3 + $0x70] sm:$0xf] %vm3733, %v3694
      %3763 = vst.msk [vmem:[#allocation3 + $0x74] sm:$0xf] %vm3733, %v3696
      %3764 = vst.msk [vmem:[#allocation3 + $0x78] sm:$0xf] %vm3733, %v3698
      %3765 = vst.msk [vmem:[#allocation3 + $0x7c] sm:$0xf] %vm3733, %v3700
      %v3766 = vld [vmem:[%s3572] sm:$0xf]
      %v3767 = vld [vmem:[%s3572 + $0x4] sm:$0xf]
      %v3768 = vld [vmem:[%s3572 + $0x8] sm:$0x1]
      %v3769 = vld [vmem:[%s3572 + $0xc] sm:$0xf]
      %v3770 = vld [vmem:[%s3572 + $0x10] sm:$0xf]
      %v3771 = vld [vmem:[%s3572 + $0x14] sm:$0x1]
      %v3772 = vld [vmem:[%s3572 + $0x18] sm:$0xf]
      %v3773 = vld [vmem:[%s3572 + $0x1c] sm:$0xf]
      %v3774 = vld [vmem:[%s3572 + $0x20] sm:$0x1]
      %v3775 = vld [vmem:[%s3572 + $0x24] sm:$0xf]
      %v3776 = vld [vmem:[%s3572 + $0x28] sm:$0xf]
      %v3777 = vld [vmem:[%s3572 + $0x2c] sm:$0x1]
      %v3778 = vld [vmem:[%s3572 + $0x30] sm:$0xf]
      %v3779 = vld [vmem:[%s3572 + $0x34] sm:$0xf]
      %v3780 = vld [vmem:[%s3572 + $0x38] sm:$0x1]
      %v3781 = vld [vmem:[%s3572 + $0x3c] sm:$0xf]
      %v3782 = vld [vmem:[%s3572 + $0x40] sm:$0xf]
      %v3783 = vld [vmem:[%s3572 + $0x44] sm:$0x1]
      %v3784 = vld [vmem:[%s3572 + $0x48] sm:$0xf]
      %v3785 = vld [vmem:[%s3572 + $0x4c] sm:$0xf]
      %v3786 = vld [vmem:[%s3572 + $0x50] sm:$0x1]
      %v3787 = vld [vmem:[%s3572 + $0x54] sm:$0xf]
      %v3788 = vld [vmem:[%s3572 + $0x58] sm:$0xf]
      %v3789 = vld [vmem:[%s3572 + $0x5c] sm:$0x1]
      %v3790 = vld [vmem:[%s3572 + $0x60] sm:$0xf]
      %v3791 = vld [vmem:[%s3572 + $0x64] sm:$0xf]
      %v3792 = vld [vmem:[%s3572 + $0x68] sm:$0x1]
      %v3793 = vld [vmem:[%s3572 + $0x6c] sm:$0xf]
      %v3794 = vld [vmem:[%s3572 + $0x70] sm:$0xf]
      %v3795 = vld [vmem:[%s3572 + $0x74] sm:$0x1]
      %v3796 = vld [vmem:[%s3572 + $0x78] sm:$0xf]
      %v3797 = vld [vmem:[%s3572 + $0x7c] sm:$0xf]
      %v3798 = vld [vmem:[%s3572 + $0x80] sm:$0x1]
      %v3799 = vld [vmem:[%s3572 + $0x84] sm:$0xf]
      %v3800 = vld [vmem:[%s3572 + $0x88] sm:$0xf]
      %v3801 = vld [vmem:[%s3572 + $0x8c] sm:$0x1]
      %v3802 = vld [vmem:[%s3572 + $0x90] sm:$0xf]
      %v3803 = vld [vmem:[%s3572 + $0x94] sm:$0xf]
      %v3804 = vld [vmem:[%s3572 + $0x98] sm:$0x1]
      %v3805 = vld [vmem:[%s3572 + $0x9c] sm:$0xf]
      %v3806 = vld [vmem:[%s3572 + $0xa0] sm:$0xf]
      %v3807 = vld [vmem:[%s3572 + $0xa4] sm:$0x1]
      %v3808 = vld [vmem:[%s3572 + $0xa8] sm:$0xf]
      %v3809 = vld [vmem:[%s3572 + $0xac] sm:$0xf]
      %v3810 = vld [vmem:[%s3572 + $0xb0] sm:$0x1]
      %v3811 = vld [vmem:[%s3572 + $0xb4] sm:$0xf]
      %v3812 = vld [vmem:[%s3572 + $0xb8] sm:$0xf]
      %v3813 = vld [vmem:[%s3572 + $0xbc] sm:$0x1]
      %v3815 = vshrl.u32 %v3766, 16
      %v3817 = vrot.slane %v3815, 4
      %v3818 = vshll.u32 %v3766, 16
      %v3820 = vrot.slane %v3818, 5
      %v3821 = vor.u32 %v3817, %v3820
      %v3822 = vrot.slane %v3821, 4
      %v3824 = vshll.u32 %v3767, 16
      %v3826 = vrot.slane %v3824, 5
      %v3827 = vsel %vm1627, %v3822, %v3826
      %v3828 = vshrl.u32 %v3767, 16
      %v3830 = vrot.slane %v3828, 4
      %v3831 = vor.u32 %v3830, %v3826
      %v3832 = vrot.slane %v3831, 4
      %v3834 = vshll.u32 %v3768, 16
      %v3836 = vrot.slane %v3834, 5
      %v3837 = vsel %vm1627, %v3832, %v3836
      %v3839 = vshrl.u32 %v3769, 16
      %v3841 = vrot.slane %v3839, 4
      %v3842 = vshll.u32 %v3769, 16
      %v3844 = vrot.slane %v3842, 5
      %v3845 = vor.u32 %v3841, %v3844
      %v3846 = vrot.slane %v3845, 4
      %v3848 = vshll.u32 %v3770, 16
      %v3850 = vrot.slane %v3848, 5
      %v3851 = vsel %vm1627, %v3846, %v3850
      %v3852 = vshrl.u32 %v3770, 16
      %v3854 = vrot.slane %v3852, 4
      %v3855 = vor.u32 %v3854, %v3850
      %v3856 = vrot.slane %v3855, 4
      %v3858 = vshll.u32 %v3771, 16
      %v3860 = vrot.slane %v3858, 5
      %v3861 = vsel %vm1627, %v3856, %v3860
      %v3863 = vshrl.u32 %v3772, 16
      %v3865 = vrot.slane %v3863, 4
      %v3866 = vshll.u32 %v3772, 16
      %v3868 = vrot.slane %v3866, 5
      %v3869 = vor.u32 %v3865, %v3868
      %v3870 = vrot.slane %v3869, 4
      %v3872 = vshll.u32 %v3773, 16
      %v3874 = vrot.slane %v3872, 5
      %v3875 = vsel %vm1627, %v3870, %v3874
      %v3876 = vshrl.u32 %v3773, 16
      %v3878 = vrot.slane %v3876, 4
      %v3879 = vor.u32 %v3878, %v3874
      %v3880 = vrot.slane %v3879, 4
      %v3882 = vshll.u32 %v3774, 16
      %v3884 = vrot.slane %v3882, 5
      %v3885 = vsel %vm1627, %v3880, %v3884
      %v3887 = vshrl.u32 %v3775, 16
      %v3889 = vrot.slane %v3887, 4
      %v3890 = vshll.u32 %v3775, 16
      %v3892 = vrot.slane %v3890, 5
      %v3893 = vor.u32 %v3889, %v3892
      %v3894 = vrot.slane %v3893, 4
      %v3896 = vshll.u32 %v3776, 16
      %v3898 = vrot.slane %v3896, 5
      %v3899 = vsel %vm1627, %v3894, %v3898
      %v3900 = vshrl.u32 %v3776, 16
      %v3902 = vrot.slane %v3900, 4
      %v3903 = vor.u32 %v3902, %v3898
      %v3904 = vrot.slane %v3903, 4
      %v3906 = vshll.u32 %v3777, 16
      %v3908 = vrot.slane %v3906, 5
      %v3909 = vsel %vm1627, %v3904, %v3908
      %v3911 = vshrl.u32 %v3778, 16
      %v3913 = vrot.slane %v3911, 4
      %v3914 = vshll.u32 %v3778, 16
      %v3916 = vrot.slane %v3914, 5
      %v3917 = vor.u32 %v3913, %v3916
      %v3918 = vrot.slane %v3917, 4
      %v3920 = vshll.u32 %v3779, 16
      %v3922 = vrot.slane %v3920, 5
      %v3923 = vsel %vm1627, %v3918, %v3922
      %v3924 = vshrl.u32 %v3779, 16
      %v3926 = vrot.slane %v3924, 4
      %v3927 = vor.u32 %v3926, %v3922
      %v3928 = vrot.slane %v3927, 4
      %v3930 = vshll.u32 %v3780, 16
      %v3932 = vrot.slane %v3930, 5
      %v3933 = vsel %vm1627, %v3928, %v3932
      %v3935 = vshrl.u32 %v3781, 16
      %v3937 = vrot.slane %v3935, 4
      %v3938 = vshll.u32 %v3781, 16
      %v3940 = vrot.slane %v3938, 5
      %v3941 = vor.u32 %v3937, %v3940
      %v3942 = vrot.slane %v3941, 4
      %v3944 = vshll.u32 %v3782, 16
      %v3946 = vrot.slane %v3944, 5
      %v3947 = vsel %vm1627, %v3942, %v3946
      %v3948 = vshrl.u32 %v3782, 16
      %v3950 = vrot.slane %v3948, 4
      %v3951 = vor.u32 %v3950, %v3946
      %v3952 = vrot.slane %v3951, 4
      %v3954 = vshll.u32 %v3783, 16
      %v3956 = vrot.slane %v3954, 5
      %v3957 = vsel %vm1627, %v3952, %v3956
      %v3959 = vshrl.u32 %v3784, 16
      %v3961 = vrot.slane %v3959, 4
      %v3962 = vshll.u32 %v3784, 16
      %v3964 = vrot.slane %v3962, 5
      %v3965 = vor.u32 %v3961, %v3964
      %v3966 = vrot.slane %v3965, 4
      %v3968 = vshll.u32 %v3785, 16
      %v3970 = vrot.slane %v3968, 5
      %v3971 = vsel %vm1627, %v3966, %v3970
      %v3972 = vshrl.u32 %v3785, 16
      %v3974 = vrot.slane %v3972, 4
      %v3975 = vor.u32 %v3974, %v3970
      %v3976 = vrot.slane %v3975, 4
      %v3978 = vshll.u32 %v3786, 16
      %v3980 = vrot.slane %v3978, 5
      %v3981 = vsel %vm1627, %v3976, %v3980
      %v3983 = vshrl.u32 %v3787, 16
      %v3985 = vrot.slane %v3983, 4
      %v3986 = vshll.u32 %v3787, 16
      %v3988 = vrot.slane %v3986, 5
      %v3989 = vor.u32 %v3985, %v3988
      %v3990 = vrot.slane %v3989, 4
      %v3992 = vshll.u32 %v3788, 16
      %v3994 = vrot.slane %v3992, 5
      %v3995 = vsel %vm1627, %v3990, %v3994
      %v3996 = vshrl.u32 %v3788, 16
      %v3998 = vrot.slane %v3996, 4
      %v3999 = vor.u32 %v3998, %v3994
      %v4000 = vrot.slane %v3999, 4
      %v4002 = vshll.u32 %v3789, 16
      %v4004 = vrot.slane %v4002, 5
      %v4005 = vsel %vm1627, %v4000, %v4004
      %v4007 = vshrl.u32 %v3790, 16
      %v4009 = vrot.slane %v4007, 4
      %v4010 = vshll.u32 %v3790, 16
      %v4012 = vrot.slane %v4010, 5
      %v4013 = vor.u32 %v4009, %v4012
      %v4014 = vrot.slane %v4013, 4
      %v4016 = vshll.u32 %v3791, 16
      %v4018 = vrot.slane %v4016, 5
      %v4019 = vsel %vm1627, %v4014, %v4018
      %v4020 = vshrl.u32 %v3791, 16
      %v4022 = vrot.slane %v4020, 4
      %v4023 = vor.u32 %v4022, %v4018
      %v4024 = vrot.slane %v4023, 4
      %v4026 = vshll.u32 %v3792, 16
      %v4028 = vrot.slane %v4026, 5
      %v4029 = vsel %vm1627, %v4024, %v4028
      %v4031 = vshrl.u32 %v3793, 16
      %v4033 = vrot.slane %v4031, 4
      %v4034 = vshll.u32 %v3793, 16
      %v4036 = vrot.slane %v4034, 5
      %v4037 = vor.u32 %v4033, %v4036
      %v4038 = vrot.slane %v4037, 4
      %v4040 = vshll.u32 %v3794, 16
      %v4042 = vrot.slane %v4040, 5
      %v4043 = vsel %vm1627, %v4038, %v4042
      %v4044 = vshrl.u32 %v3794, 16
      %v4046 = vrot.slane %v4044, 4
      %v4047 = vor.u32 %v4046, %v4042
      %v4048 = vrot.slane %v4047, 4
      %v4050 = vshll.u32 %v3795, 16
      %v4052 = vrot.slane %v4050, 5
      %v4053 = vsel %vm1627, %v4048, %v4052
      %v4055 = vshrl.u32 %v3796, 16
      %v4057 = vrot.slane %v4055, 4
      %v4058 = vshll.u32 %v3796, 16
      %v4060 = vrot.slane %v4058, 5
      %v4061 = vor.u32 %v4057, %v4060
      %v4062 = vrot.slane %v4061, 4
      %v4064 = vshll.u32 %v3797, 16
      %v4066 = vrot.slane %v4064, 5
      %v4067 = vsel %vm1627, %v4062, %v4066
      %v4068 = vshrl.u32 %v3797, 16
      %v4070 = vrot.slane %v4068, 4
      %v4071 = vor.u32 %v4070, %v4066
      %v4072 = vrot.slane %v4071, 4
      %v4074 = vshll.u32 %v3798, 16
      %v4076 = vrot.slane %v4074, 5
      %v4077 = vsel %vm1627, %v4072, %v4076
      %v4079 = vshrl.u32 %v3799, 16
      %v4081 = vrot.slane %v4079, 4
      %v4082 = vshll.u32 %v3799, 16
      %v4084 = vrot.slane %v4082, 5
      %v4085 = vor.u32 %v4081, %v4084
      %v4086 = vrot.slane %v4085, 4
      %v4088 = vshll.u32 %v3800, 16
      %v4090 = vrot.slane %v4088, 5
      %v4091 = vsel %vm1627, %v4086, %v4090
      %v4092 = vshrl.u32 %v3800, 16
      %v4094 = vrot.slane %v4092, 4
      %v4095 = vor.u32 %v4094, %v4090
      %v4096 = vrot.slane %v4095, 4
      %v4098 = vshll.u32 %v3801, 16
      %v4100 = vrot.slane %v4098, 5
      %v4101 = vsel %vm1627, %v4096, %v4100
      %v4103 = vshrl.u32 %v3802, 16
      %v4105 = vrot.slane %v4103, 4
      %v4106 = vshll.u32 %v3802, 16
      %v4108 = vrot.slane %v4106, 5
      %v4109 = vor.u32 %v4105, %v4108
      %v4110 = vrot.slane %v4109, 4
      %v4112 = vshll.u32 %v3803, 16
      %v4114 = vrot.slane %v4112, 5
      %v4115 = vsel %vm1627, %v4110, %v4114
      %v4116 = vshrl.u32 %v3803, 16
      %v4118 = vrot.slane %v4116, 4
      %v4119 = vor.u32 %v4118, %v4114
      %v4120 = vrot.slane %v4119, 4
      %v4122 = vshll.u32 %v3804, 16
      %v4124 = vrot.slane %v4122, 5
      %v4125 = vsel %vm1627, %v4120, %v4124
      %v4127 = vshrl.u32 %v3805, 16
      %v4129 = vrot.slane %v4127, 4
      %v4130 = vshll.u32 %v3805, 16
      %v4132 = vrot.slane %v4130, 5
      %v4133 = vor.u32 %v4129, %v4132
      %v4134 = vrot.slane %v4133, 4
      %v4136 = vshll.u32 %v3806, 16
      %v4138 = vrot.slane %v4136, 5
      %v4139 = vsel %vm1627, %v4134, %v4138
      %v4140 = vshrl.u32 %v3806, 16
      %v4142 = vrot.slane %v4140, 4
      %v4143 = vor.u32 %v4142, %v4138
      %v4144 = vrot.slane %v4143, 4
      %v4146 = vshll.u32 %v3807, 16
      %v4148 = vrot.slane %v4146, 5
      %v4149 = vsel %vm1627, %v4144, %v4148
      %v4151 = vshrl.u32 %v3808, 16
      %v4153 = vrot.slane %v4151, 4
      %v4154 = vshll.u32 %v3808, 16
      %v4156 = vrot.slane %v4154, 5
      %v4157 = vor.u32 %v4153, %v4156
      %v4158 = vrot.slane %v4157, 4
      %v4160 = vshll.u32 %v3809, 16
      %v4162 = vrot.slane %v4160, 5
      %v4163 = vsel %vm1627, %v4158, %v4162
      %v4164 = vshrl.u32 %v3809, 16
      %v4166 = vrot.slane %v4164, 4
      %v4167 = vor.u32 %v4166, %v4162
      %v4168 = vrot.slane %v4167, 4
      %v4170 = vshll.u32 %v3810, 16
      %v4172 = vrot.slane %v4170, 5
      %v4173 = vsel %vm1627, %v4168, %v4172
      %v4175 = vshrl.u32 %v3811, 16
      %v4177 = vrot.slane %v4175, 4
      %v4178 = vshll.u32 %v3811, 16
      %v4180 = vrot.slane %v4178, 5
      %v4181 = vor.u32 %v4177, %v4180
      %v4182 = vrot.slane %v4181, 4
      %v4184 = vshll.u32 %v3812, 16
      %v4186 = vrot.slane %v4184, 5
      %v4187 = vsel %vm1627, %v4182, %v4186
      %v4188 = vshrl.u32 %v3812, 16
      %v4190 = vrot.slane %v4188, 4
      %v4191 = vor.u32 %v4190, %v4186
      %v4192 = vrot.slane %v4191, 4
      %v4194 = vshll.u32 %v3813, 16
      %v4196 = vrot.slane %v4194, 5
      %v4197 = vsel %vm1627, %v4192, %v4196
      %4198 = vrot.lane.b32.xlu0 %v3827, 21
      %v4199 = vpop.permute.xlu0 %4198
      %4200 = vrot.lane.b32.xlu0 %v3837, 21
      %v4201 = vpop.permute.xlu0 %4200
      %4202 = vrot.lane.b32.xlu0 %v3851, 21
      %v4203 = vpop.permute.xlu0 %4202
      %4204 = vrot.lane.b32.xlu0 %v3861, 21
      %v4205 = vpop.permute.xlu0 %4204
      %4206 = vrot.lane.b32.xlu0 %v3875, 21
      %v4207 = vpop.permute.xlu0 %4206
      %4208 = vrot.lane.b32.xlu0 %v3885, 21
      %v4209 = vpop.permute.xlu0 %4208
      %4210 = vrot.lane.b32.xlu0 %v3899, 21
      %v4211 = vpop.permute.xlu0 %4210
      %4212 = vrot.lane.b32.xlu0 %v3909, 21
      %v4213 = vpop.permute.xlu0 %4212
      %4214 = vrot.lane.b32.xlu0 %v3923, 21
      %v4215 = vpop.permute.xlu0 %4214
      %4216 = vrot.lane.b32.xlu0 %v3933, 21
      %v4217 = vpop.permute.xlu0 %4216
      %4218 = vrot.lane.b32.xlu0 %v3947, 21
      %v4219 = vpop.permute.xlu0 %4218
      %4220 = vrot.lane.b32.xlu0 %v3957, 21
      %v4221 = vpop.permute.xlu0 %4220
      %4222 = vrot.lane.b32.xlu0 %v3971, 21
      %v4223 = vpop.permute.xlu0 %4222
      %4224 = vrot.lane.b32.xlu0 %v3981, 21
      %v4225 = vpop.permute.xlu0 %4224
      %4226 = vrot.lane.b32.xlu0 %v3995, 21
      %v4227 = vpop.permute.xlu0 %4226
      %4228 = vrot.lane.b32.xlu0 %v4005, 21
      %v4229 = vpop.permute.xlu0 %4228
      %4230 = vrot.lane.b32.xlu0 %v4019, 21
      %v4231 = vpop.permute.xlu0 %4230
      %4232 = vrot.lane.b32.xlu0 %v4029, 21
      %v4233 = vpop.permute.xlu0 %4232
      %4234 = vrot.lane.b32.xlu0 %v4043, 21
      %v4235 = vpop.permute.xlu0 %4234
      %4236 = vrot.lane.b32.xlu0 %v4053, 21
      %v4237 = vpop.permute.xlu0 %4236
      %4238 = vrot.lane.b32.xlu0 %v4067, 21
      %v4239 = vpop.permute.xlu0 %4238
      %4240 = vrot.lane.b32.xlu0 %v4077, 21
      %v4241 = vpop.permute.xlu0 %4240
      %4242 = vrot.lane.b32.xlu0 %v4091, 21
      %v4243 = vpop.permute.xlu0 %4242
      %4244 = vrot.lane.b32.xlu0 %v4101, 21
      %v4245 = vpop.permute.xlu0 %4244
      %4246 = vrot.lane.b32.xlu0 %v4115, 21
      %v4247 = vpop.permute.xlu0 %4246
      %4248 = vrot.lane.b32.xlu0 %v4125, 21
      %v4249 = vpop.permute.xlu0 %4248
      %4250 = vrot.lane.b32.xlu0 %v4139, 21
      %v4251 = vpop.permute.xlu0 %4250
      %4252 = vrot.lane.b32.xlu0 %v4149, 21
      %v4253 = vpop.permute.xlu0 %4252
      %4254 = vrot.lane.b32.xlu0 %v4163, 21
      %v4255 = vpop.permute.xlu0 %4254
      %4256 = vrot.lane.b32.xlu0 %v4173, 21
      %v4257 = vpop.permute.xlu0 %4256
      %4258 = vrot.lane.b32.xlu0 %v4187, 21
      %v4259 = vpop.permute.xlu0 %4258
      %4260 = vrot.lane.b32.xlu0 %v4197, 21
      %v4261 = vpop.permute.xlu0 %4260
      %vm4294 = vcmask 191656
      %4295 = vst.msk [vmem:[#allocation3] sm:$0xf] %vm4294, %v4199
      %4296 = vst.msk [vmem:[#allocation3 + $0x4] sm:$0xf] %vm4294, %v4201
      %4297 = vst.msk [vmem:[#allocation3 + $0x8] sm:$0xf] %vm4294, %v4203
      %4298 = vst.msk [vmem:[#allocation3 + $0xc] sm:$0xf] %vm4294, %v4205
      %4299 = vst.msk [vmem:[#allocation3 + $0x10] sm:$0xf] %vm4294, %v4207
      %4300 = vst.msk [vmem:[#allocation3 + $0x14] sm:$0xf] %vm4294, %v4209
      %4301 = vst.msk [vmem:[#allocation3 + $0x18] sm:$0xf] %vm4294, %v4211
      %4302 = vst.msk [vmem:[#allocation3 + $0x1c] sm:$0xf] %vm4294, %v4213
      %4303 = vst.msk [vmem:[#allocation3 + $0x20] sm:$0xf] %vm4294, %v4215
      %4304 = vst.msk [vmem:[#allocation3 + $0x24] sm:$0xf] %vm4294, %v4217
      %4305 = vst.msk [vmem:[#allocation3 + $0x28] sm:$0xf] %vm4294, %v4219
      %4306 = vst.msk [vmem:[#allocation3 + $0x2c] sm:$0xf] %vm4294, %v4221
      %4307 = vst.msk [vmem:[#allocation3 + $0x30] sm:$0xf] %vm4294, %v4223
      %4308 = vst.msk [vmem:[#allocation3 + $0x34] sm:$0xf] %vm4294, %v4225
      %4309 = vst.msk [vmem:[#allocation3 + $0x38] sm:$0xf] %vm4294, %v4227
      %4310 = vst.msk [vmem:[#allocation3 + $0x3c] sm:$0xf] %vm4294, %v4229
      %4311 = vst.msk [vmem:[#allocation3 + $0x40] sm:$0xf] %vm4294, %v4231
      %4312 = vst.msk [vmem:[#allocation3 + $0x44] sm:$0xf] %vm4294, %v4233
      %4313 = vst.msk [vmem:[#allocation3 + $0x48] sm:$0xf] %vm4294, %v4235
      %4314 = vst.msk [vmem:[#allocation3 + $0x4c] sm:$0xf] %vm4294, %v4237
      %4315 = vst.msk [vmem:[#allocation3 + $0x50] sm:$0xf] %vm4294, %v4239
      %4316 = vst.msk [vmem:[#allocation3 + $0x54] sm:$0xf] %vm4294, %v4241
      %4317 = vst.msk [vmem:[#allocation3 + $0x58] sm:$0xf] %vm4294, %v4243
      %4318 = vst.msk [vmem:[#allocation3 + $0x5c] sm:$0xf] %vm4294, %v4245
      %4319 = vst.msk [vmem:[#allocation3 + $0x60] sm:$0xf] %vm4294, %v4247
      %4320 = vst.msk [vmem:[#allocation3 + $0x64] sm:$0xf] %vm4294, %v4249
      %4321 = vst.msk [vmem:[#allocation3 + $0x68] sm:$0xf] %vm4294, %v4251
      %4322 = vst.msk [vmem:[#allocation3 + $0x6c] sm:$0xf] %vm4294, %v4253
      %4323 = vst.msk [vmem:[#allocation3 + $0x70] sm:$0xf] %vm4294, %v4255
      %4324 = vst.msk [vmem:[#allocation3 + $0x74] sm:$0xf] %vm4294, %v4257
      %4325 = vst.msk [vmem:[#allocation3 + $0x78] sm:$0xf] %vm4294, %v4259
      %4326 = vst.msk [vmem:[#allocation3 + $0x7c] sm:$0xf] %vm4294, %v4261
      %v4327 = vld [vmem:[%s3572] sm:$0xe]
      %v4328 = vld [vmem:[%s3572 + $0x4] sm:$0xf]
      %v4329 = vld [vmem:[%s3572 + $0x8] sm:$0x1]
      %v4330 = vld [vmem:[%s3572 + $0xc] sm:$0xe]
      %v4331 = vld [vmem:[%s3572 + $0x10] sm:$0xf]
      %v4332 = vld [vmem:[%s3572 + $0x14] sm:$0x1]
      %v4333 = vld [vmem:[%s3572 + $0x18] sm:$0xe]
      %v4334 = vld [vmem:[%s3572 + $0x1c] sm:$0xf]
      %v4335 = vld [vmem:[%s3572 + $0x20] sm:$0x1]
      %v4336 = vld [vmem:[%s3572 + $0x24] sm:$0xe]
      %v4337 = vld [vmem:[%s3572 + $0x28] sm:$0xf]
      %v4338 = vld [vmem:[%s3572 + $0x2c] sm:$0x1]
      %v4339 = vld [vmem:[%s3572 + $0x30] sm:$0xe]
      %v4340 = vld [vmem:[%s3572 + $0x34] sm:$0xf]
      %v4341 = vld [vmem:[%s3572 + $0x38] sm:$0x1]
      %v4342 = vld [vmem:[%s3572 + $0x3c] sm:$0xe]
      %v4343 = vld [vmem:[%s3572 + $0x40] sm:$0xf]
      %v4344 = vld [vmem:[%s3572 + $0x44] sm:$0x1]
      %v4345 = vld [vmem:[%s3572 + $0x48] sm:$0xe]
      %v4346 = vld [vmem:[%s3572 + $0x4c] sm:$0xf]
      %v4347 = vld [vmem:[%s3572 + $0x50] sm:$0x1]
      %v4348 = vld [vmem:[%s3572 + $0x54] sm:$0xe]
      %v4349 = vld [vmem:[%s3572 + $0x58] sm:$0xf]
      %v4350 = vld [vmem:[%s3572 + $0x5c] sm:$0x1]
      %v4351 = vld [vmem:[%s3572 + $0x60] sm:$0xe]
      %v4352 = vld [vmem:[%s3572 + $0x64] sm:$0xf]
      %v4353 = vld [vmem:[%s3572 + $0x68] sm:$0x1]
      %v4354 = vld [vmem:[%s3572 + $0x6c] sm:$0xe]
      %v4355 = vld [vmem:[%s3572 + $0x70] sm:$0xf]
      %v4356 = vld [vmem:[%s3572 + $0x74] sm:$0x1]
      %v4357 = vld [vmem:[%s3572 + $0x78] sm:$0xe]
      %v4358 = vld [vmem:[%s3572 + $0x7c] sm:$0xf]
      %v4359 = vld [vmem:[%s3572 + $0x80] sm:$0x1]
      %v4360 = vld [vmem:[%s3572 + $0x84] sm:$0xe]
      %v4361 = vld [vmem:[%s3572 + $0x88] sm:$0xf]
      %v4362 = vld [vmem:[%s3572 + $0x8c] sm:$0x1]
      %v4363 = vld [vmem:[%s3572 + $0x90] sm:$0xe]
      %v4364 = vld [vmem:[%s3572 + $0x94] sm:$0xf]
      %v4365 = vld [vmem:[%s3572 + $0x98] sm:$0x1]
      %v4366 = vld [vmem:[%s3572 + $0x9c] sm:$0xe]
      %v4367 = vld [vmem:[%s3572 + $0xa0] sm:$0xf]
      %v4368 = vld [vmem:[%s3572 + $0xa4] sm:$0x1]
      %v4369 = vld [vmem:[%s3572 + $0xa8] sm:$0xe]
      %v4370 = vld [vmem:[%s3572 + $0xac] sm:$0xf]
      %v4371 = vld [vmem:[%s3572 + $0xb0] sm:$0x1]
      %v4372 = vld [vmem:[%s3572 + $0xb4] sm:$0xe]
      %v4373 = vld [vmem:[%s3572 + $0xb8] sm:$0xf]
      %v4374 = vld [vmem:[%s3572 + $0xbc] sm:$0x1]
      %v4423 = vrot.slane %v4327, 5
      %v4424 = vrot.slane %v4423, 4
      %v4425 = vrot.slane %v4328, 5
      %v4426 = vsel %vm2239, %v4424, %v4425
      %v4427 = vrot.slane %v4425, 4
      %v4428 = vrot.slane %v4329, 5
      %v4429 = vsel %vm2239, %v4427, %v4428
      %v4430 = vrot.slane %v4330, 5
      %v4431 = vrot.slane %v4430, 4
      %v4432 = vrot.slane %v4331, 5
      %v4433 = vsel %vm2239, %v4431, %v4432
      %v4434 = vrot.slane %v4432, 4
      %v4435 = vrot.slane %v4332, 5
      %v4436 = vsel %vm2239, %v4434, %v4435
      %v4437 = vrot.slane %v4333, 5
      %v4438 = vrot.slane %v4437, 4
      %v4439 = vrot.slane %v4334, 5
      %v4440 = vsel %vm2239, %v4438, %v4439
      %v4441 = vrot.slane %v4439, 4
      %v4442 = vrot.slane %v4335, 5
      %v4443 = vsel %vm2239, %v4441, %v4442
      %v4444 = vrot.slane %v4336, 5
      %v4445 = vrot.slane %v4444, 4
      %v4446 = vrot.slane %v4337, 5
      %v4447 = vsel %vm2239, %v4445, %v4446
      %v4448 = vrot.slane %v4446, 4
      %v4449 = vrot.slane %v4338, 5
      %v4450 = vsel %vm2239, %v4448, %v4449
      %v4451 = vrot.slane %v4339, 5
      %v4452 = vrot.slane %v4451, 4
      %v4453 = vrot.slane %v4340, 5
      %v4454 = vsel %vm2239, %v4452, %v4453
      %v4455 = vrot.slane %v4453, 4
      %v4456 = vrot.slane %v4341, 5
      %v4457 = vsel %vm2239, %v4455, %v4456
      %v4458 = vrot.slane %v4342, 5
      %v4459 = vrot.slane %v4458, 4
      %v4460 = vrot.slane %v4343, 5
      %v4461 = vsel %vm2239, %v4459, %v4460
      %v4462 = vrot.slane %v4460, 4
      %v4463 = vrot.slane %v4344, 5
      %v4464 = vsel %vm2239, %v4462, %v4463
      %v4465 = vrot.slane %v4345, 5
      %v4466 = vrot.slane %v4465, 4
      %v4467 = vrot.slane %v4346, 5
      %v4468 = vsel %vm2239, %v4466, %v4467
      %v4469 = vrot.slane %v4467, 4
      %v4470 = vrot.slane %v4347, 5
      %v4471 = vsel %vm2239, %v4469, %v4470
      %v4472 = vrot.slane %v4348, 5
      %v4473 = vrot.slane %v4472, 4
      %v4474 = vrot.slane %v4349, 5
      %v4475 = vsel %vm2239, %v4473, %v4474
      %v4476 = vrot.slane %v4474, 4
      %v4477 = vrot.slane %v4350, 5
      %v4478 = vsel %vm2239, %v4476, %v4477
      %v4479 = vrot.slane %v4351, 5
      %v4480 = vrot.slane %v4479, 4
      %v4481 = vrot.slane %v4352, 5
      %v4482 = vsel %vm2239, %v4480, %v4481
      %v4483 = vrot.slane %v4481, 4
      %v4484 = vrot.slane %v4353, 5
      %v4485 = vsel %vm2239, %v4483, %v4484
      %v4486 = vrot.slane %v4354, 5
      %v4487 = vrot.slane %v4486, 4
      %v4488 = vrot.slane %v4355, 5
      %v4489 = vsel %vm2239, %v4487, %v4488
      %v4490 = vrot.slane %v4488, 4
      %v4491 = vrot.slane %v4356, 5
      %v4492 = vsel %vm2239, %v4490, %v4491
      %v4493 = vrot.slane %v4357, 5
      %v4494 = vrot.slane %v4493, 4
      %v4495 = vrot.slane %v4358, 5
      %v4496 = vsel %vm2239, %v4494, %v4495
      %v4497 = vrot.slane %v4495, 4
      %v4498 = vrot.slane %v4359, 5
      %v4499 = vsel %vm2239, %v4497, %v4498
      %v4500 = vrot.slane %v4360, 5
      %v4501 = vrot.slane %v4500, 4
      %v4502 = vrot.slane %v4361, 5
      %v4503 = vsel %vm2239, %v4501, %v4502
      %v4504 = vrot.slane %v4502, 4
      %v4505 = vrot.slane %v4362, 5
      %v4506 = vsel %vm2239, %v4504, %v4505
      %v4507 = vrot.slane %v4363, 5
      %v4508 = vrot.slane %v4507, 4
      %v4509 = vrot.slane %v4364, 5
      %v4510 = vsel %vm2239, %v4508, %v4509
      %v4511 = vrot.slane %v4509, 4
      %v4512 = vrot.slane %v4365, 5
      %v4513 = vsel %vm2239, %v4511, %v4512
      %v4514 = vrot.slane %v4366, 5
      %v4515 = vrot.slane %v4514, 4
      %v4516 = vrot.slane %v4367, 5
      %v4517 = vsel %vm2239, %v4515, %v4516
      %v4518 = vrot.slane %v4516, 4
      %v4519 = vrot.slane %v4368, 5
      %v4520 = vsel %vm2239, %v4518, %v4519
      %v4521 = vrot.slane %v4369, 5
      %v4522 = vrot.slane %v4521, 4
      %v4523 = vrot.slane %v4370, 5
      %v4524 = vsel %vm2239, %v4522, %v4523
      %v4525 = vrot.slane %v4523, 4
      %v4526 = vrot.slane %v4371, 5
      %v4527 = vsel %vm2239, %v4525, %v4526
      %v4528 = vrot.slane %v4372, 5
      %v4529 = vrot.slane %v4528, 4
      %v4530 = vrot.slane %v4373, 5
      %v4531 = vsel %vm2239, %v4529, %v4530
      %v4532 = vrot.slane %v4530, 4
      %v4533 = vrot.slane %v4374, 5
      %v4534 = vsel %vm2239, %v4532, %v4533
      %4535 = vrot.lane.b32.xlu0 %v4426, 24
      %v4536 = vpop.permute.xlu0 %4535
      %4537 = vrot.lane.b32.xlu0 %v4429, 24
      %v4538 = vpop.permute.xlu0 %4537
      %4539 = vrot.lane.b32.xlu0 %v4433, 24
      %v4540 = vpop.permute.xlu0 %4539
      %4541 = vrot.lane.b32.xlu0 %v4436, 24
      %v4542 = vpop.permute.xlu0 %4541
      %4543 = vrot.lane.b32.xlu0 %v4440, 24
      %v4544 = vpop.permute.xlu0 %4543
      %4545 = vrot.lane.b32.xlu0 %v4443, 24
      %v4546 = vpop.permute.xlu0 %4545
      %4547 = vrot.lane.b32.xlu0 %v4447, 24
      %v4548 = vpop.permute.xlu0 %4547
      %4549 = vrot.lane.b32.xlu0 %v4450, 24
      %v4550 = vpop.permute.xlu0 %4549
      %4551 = vrot.lane.b32.xlu0 %v4454, 24
      %v4552 = vpop.permute.xlu0 %4551
      %4553 = vrot.lane.b32.xlu0 %v4457, 24
      %v4554 = vpop.permute.xlu0 %4553
      %4555 = vrot.lane.b32.xlu0 %v4461, 24
      %v4556 = vpop.permute.xlu0 %4555
      %4557 = vrot.lane.b32.xlu0 %v4464, 24
      %v4558 = vpop.permute.xlu0 %4557
      %4559 = vrot.lane.b32.xlu0 %v4468, 24
      %v4560 = vpop.permute.xlu0 %4559
      %4561 = vrot.lane.b32.xlu0 %v4471, 24
      %v4562 = vpop.permute.xlu0 %4561
      %4563 = vrot.lane.b32.xlu0 %v4475, 24
      %v4564 = vpop.permute.xlu0 %4563
      %4565 = vrot.lane.b32.xlu0 %v4478, 24
      %v4566 = vpop.permute.xlu0 %4565
      %4567 = vrot.lane.b32.xlu0 %v4482, 24
      %v4568 = vpop.permute.xlu0 %4567
      %4569 = vrot.lane.b32.xlu0 %v4485, 24
      %v4570 = vpop.permute.xlu0 %4569
      %4571 = vrot.lane.b32.xlu0 %v4489, 24
      %v4572 = vpop.permute.xlu0 %4571
      %4573 = vrot.lane.b32.xlu0 %v4492, 24
      %v4574 = vpop.permute.xlu0 %4573
      %4575 = vrot.lane.b32.xlu0 %v4496, 24
      %v4576 = vpop.permute.xlu0 %4575
      %4577 = vrot.lane.b32.xlu0 %v4499, 24
      %v4578 = vpop.permute.xlu0 %4577
      %4579 = vrot.lane.b32.xlu0 %v4503, 24
      %v4580 = vpop.permute.xlu0 %4579
      %4581 = vrot.lane.b32.xlu0 %v4506, 24
      %v4582 = vpop.permute.xlu0 %4581
      %4583 = vrot.lane.b32.xlu0 %v4510, 24
      %v4584 = vpop.permute.xlu0 %4583
      %4585 = vrot.lane.b32.xlu0 %v4513, 24
      %v4586 = vpop.permute.xlu0 %4585
      %4587 = vrot.lane.b32.xlu0 %v4517, 24
      %v4588 = vpop.permute.xlu0 %4587
      %4589 = vrot.lane.b32.xlu0 %v4520, 24
      %v4590 = vpop.permute.xlu0 %4589
      %4591 = vrot.lane.b32.xlu0 %v4524, 24
      %v4592 = vpop.permute.xlu0 %4591
      %4593 = vrot.lane.b32.xlu0 %v4527, 24
      %v4594 = vpop.permute.xlu0 %4593
      %4595 = vrot.lane.b32.xlu0 %v4531, 24
      %v4596 = vpop.permute.xlu0 %4595
      %4597 = vrot.lane.b32.xlu0 %v4534, 24
      %v4598 = vpop.permute.xlu0 %4597
      %vm4631 = vcmask 216256
      %4632 = vst.msk [vmem:[#allocation3] sm:$0xf] %vm4631, %v4536
      %4633 = vst.msk [vmem:[#allocation3 + $0x4] sm:$0xf] %vm4631, %v4538
      %4634 = vst.msk [vmem:[#allocation3 + $0x8] sm:$0xf] %vm4631, %v4540
      %4635 = vst.msk [vmem:[#allocation3 + $0xc] sm:$0xf] %vm4631, %v4542
      %4636 = vst.msk [vmem:[#allocation3 + $0x10] sm:$0xf] %vm4631, %v4544
      %4637 = vst.msk [vmem:[#allocation3 + $0x14] sm:$0xf] %vm4631, %v4546
      %4638 = vst.msk [vmem:[#allocation3 + $0x18] sm:$0xf] %vm4631, %v4548
      %4639 = vst.msk [vmem:[#allocation3 + $0x1c] sm:$0xf] %vm4631, %v4550
      %4640 = vst.msk [vmem:[#allocation3 + $0x20] sm:$0xf] %vm4631, %v4552
      %4641 = vst.msk [vmem:[#allocation3 + $0x24] sm:$0xf] %vm4631, %v4554
      %4642 = vst.msk [vmem:[#allocation3 + $0x28] sm:$0xf] %vm4631, %v4556
      %4643 = vst.msk [vmem:[#allocation3 + $0x2c] sm:$0xf] %vm4631, %v4558
      %4644 = vst.msk [vmem:[#allocation3 + $0x30] sm:$0xf] %vm4631, %v4560
      %4645 = vst.msk [vmem:[#allocation3 + $0x34] sm:$0xf] %vm4631, %v4562
      %4646 = vst.msk [vmem:[#allocation3 + $0x38] sm:$0xf] %vm4631, %v4564
      %4647 = vst.msk [vmem:[#allocation3 + $0x3c] sm:$0xf] %vm4631, %v4566
      %4648 = vst.msk [vmem:[#allocation3 + $0x40] sm:$0xf] %vm4631, %v4568
      %4649 = vst.msk [vmem:[#allocation3 + $0x44] sm:$0xf] %vm4631, %v4570
      %4650 = vst.msk [vmem:[#allocation3 + $0x48] sm:$0xf] %vm4631, %v4572
      %4651 = vst.msk [vmem:[#allocation3 + $0x4c] sm:$0xf] %vm4631, %v4574
      %4652 = vst.msk [vmem:[#allocation3 + $0x50] sm:$0xf] %vm4631, %v4576
      %4653 = vst.msk [vmem:[#allocation3 + $0x54] sm:$0xf] %vm4631, %v4578
      %4654 = vst.msk [vmem:[#allocation3 + $0x58] sm:$0xf] %vm4631, %v4580
      %4655 = vst.msk [vmem:[#allocation3 + $0x5c] sm:$0xf] %vm4631, %v4582
      %4656 = vst.msk [vmem:[#allocation3 + $0x60] sm:$0xf] %vm4631, %v4584
      %4657 = vst.msk [vmem:[#allocation3 + $0x64] sm:$0xf] %vm4631, %v4586
      %4658 = vst.msk [vmem:[#allocation3 + $0x68] sm:$0xf] %vm4631, %v4588
      %4659 = vst.msk [vmem:[#allocation3 + $0x6c] sm:$0xf] %vm4631, %v4590
      %4660 = vst.msk [vmem:[#allocation3 + $0x70] sm:$0xf] %vm4631, %v4592
      %4661 = vst.msk [vmem:[#allocation3 + $0x74] sm:$0xf] %vm4631, %v4594
      %4662 = vst.msk [vmem:[#allocation3 + $0x78] sm:$0xf] %vm4631, %v4596
      %4663 = vst.msk [vmem:[#allocation3 + $0x7c] sm:$0xf] %vm4631, %v4598
      %v4664 = vld [vmem:[#allocation3] sm:$0xf]
      %v4665 = vld [vmem:[#allocation3 + $0x4] sm:$0xf]
      %v4666 = vld [vmem:[#allocation3 + $0x8] sm:$0xf]
      %v4667 = vld [vmem:[#allocation3 + $0xc] sm:$0xf]
      %v4668 = vld [vmem:[#allocation3 + $0x10] sm:$0xf]
      %v4669 = vld [vmem:[#allocation3 + $0x14] sm:$0xf]
      %v4670 = vld [vmem:[#allocation3 + $0x18] sm:$0xf]
      %v4671 = vld [vmem:[#allocation3 + $0x1c] sm:$0xf]
      %v4672 = vld [vmem:[#allocation3 + $0x20] sm:$0xf]
      %v4673 = vld [vmem:[#allocation3 + $0x24] sm:$0xf]
      %v4674 = vld [vmem:[#allocation3 + $0x28] sm:$0xf]
      %v4675 = vld [vmem:[#allocation3 + $0x2c] sm:$0xf]
      %v4676 = vld [vmem:[#allocation3 + $0x30] sm:$0xf]
      %v4677 = vld [vmem:[#allocation3 + $0x34] sm:$0xf]
      %v4678 = vld [vmem:[#allocation3 + $0x38] sm:$0xf]
      %v4679 = vld [vmem:[#allocation3 + $0x3c] sm:$0xf]
      %v4680 = vld [vmem:[#allocation3 + $0x40] sm:$0xf]
      %v4681 = vld [vmem:[#allocation3 + $0x44] sm:$0xf]
      %v4682 = vld [vmem:[#allocation3 + $0x48] sm:$0xf]
      %v4683 = vld [vmem:[#allocation3 + $0x4c] sm:$0xf]
      %v4684 = vld [vmem:[#allocation3 + $0x50] sm:$0xf]
      %v4685 = vld [vmem:[#allocation3 + $0x54] sm:$0xf]
      %v4686 = vld [vmem:[#allocation3 + $0x58] sm:$0xf]
      %v4687 = vld [vmem:[#allocation3 + $0x5c] sm:$0xf]
      %v4688 = vld [vmem:[#allocation3 + $0x60] sm:$0xf]
      %v4689 = vld [vmem:[#allocation3 + $0x64] sm:$0xf]
      %v4690 = vld [vmem:[#allocation3 + $0x68] sm:$0xf]
      %v4691 = vld [vmem:[#allocation3 + $0x6c] sm:$0xf]
      %v4692 = vld [vmem:[#allocation3 + $0x70] sm:$0xf]
      %v4693 = vld [vmem:[#allocation3 + $0x74] sm:$0xf]
      %v4694 = vld [vmem:[#allocation3 + $0x78] sm:$0xf]
      %v4695 = vld [vmem:[#allocation3 + $0x7c] sm:$0xf]
      %v4696 = vld [vmem:[%s5] sm:$0xf]
      %v4697 = vld [vmem:[%s5 + $0x4] sm:$0xf]
      %v4698 = vld [vmem:[%s5 + $0x8] sm:$0xf]
      %v4699 = vld [vmem:[%s5 + $0xc] sm:$0x3]
      %v4700 = vld [vmem:[%s6] sm:$0x1]
      %v4702 = vlaneseq
      %v4703 = vshrl.u32 %v4702, 7
      %v4704 = vsub.s32 0, %v4703
      %v4705 = vrot.slane %v4700, %v4704
      %v4739 = vunpack.c.l.b16 %v4664
      %v4740 = vunpack.c.l.b16 %v4665
      %v4741 = vunpack.c.l.b16 %v4666
      %v4742 = vunpack.c.l.b16 %v4667
      %v4743 = vunpack.c.l.b16 %v4668
      %v4744 = vunpack.c.l.b16 %v4669
      %v4745 = vunpack.c.l.b16 %v4670
      %v4746 = vunpack.c.l.b16 %v4671
      %v4747 = vunpack.c.l.b16 %v4672
      %v4748 = vunpack.c.l.b16 %v4673
      %v4749 = vunpack.c.l.b16 %v4674
      %v4750 = vunpack.c.l.b16 %v4675
      %v4751 = vunpack.c.l.b16 %v4676
      %v4752 = vunpack.c.l.b16 %v4677
      %v4753 = vunpack.c.l.b16 %v4678
      %v4754 = vunpack.c.l.b16 %v4679
      %v4755 = vunpack.c.l.b16 %v4680
      %v4756 = vunpack.c.l.b16 %v4681
      %v4757 = vunpack.c.l.b16 %v4682
      %v4758 = vunpack.c.l.b16 %v4683
      %v4759 = vunpack.c.l.b16 %v4684
      %v4760 = vunpack.c.l.b16 %v4685
      %v4761 = vunpack.c.l.b16 %v4686
      %v4762 = vunpack.c.l.b16 %v4687
      %v4763 = vunpack.c.l.b16 %v4688
      %v4764 = vunpack.c.l.b16 %v4689
      %v4765 = vunpack.c.l.b16 %v4690
      %v4766 = vunpack.c.l.b16 %v4691
      %v4767 = vunpack.c.l.b16 %v4692
      %v4768 = vunpack.c.l.b16 %v4693
      %v4769 = vunpack.c.l.b16 %v4694
      %v4770 = vunpack.c.l.b16 %v4695
      %v4771 = vpack.c.b16 %v4740, %v4739
      %v4772 = vpack.c.b16 %v4742, %v4741
      %v4773 = vpack.c.b16 %v4744, %v4743
      %v4774 = vpack.c.b16 %v4746, %v4745
      %v4775 = vpack.c.b16 %v4748, %v4747
      %v4776 = vpack.c.b16 %v4750, %v4749
      %v4777 = vpack.c.b16 %v4752, %v4751
      %v4778 = vpack.c.b16 %v4754, %v4753
      %v4779 = vpack.c.b16 %v4756, %v4755
      %v4780 = vpack.c.b16 %v4758, %v4757
      %v4781 = vpack.c.b16 %v4760, %v4759
      %v4782 = vpack.c.b16 %v4762, %v4761
      %v4783 = vpack.c.b16 %v4764, %v4763
      %v4784 = vpack.c.b16 %v4766, %v4765
      %v4785 = vpack.c.b16 %v4768, %v4767
      %v4786 = vpack.c.b16 %v4770, %v4769
      %v4791 = vunpack.c.l.b16 %v4696
      %v4792 = vunpack.c.l.b16 %v4697
      %v4793 = vunpack.c.l.b16 %v4698
      %v4794 = vunpack.c.l.b16 %v4699
      %v4795 = vpack.c.b16 %v4792, %v4791
      %v4796 = vpack.c.b16 %v4794, %v4793
      %vm4798 = vcmask 220160
      %v4800 = vsel %vm4798, %v4771, 0
      %v4803 = vsel %vm4798, %v4772, 0
      %v4806 = vsel %vm4798, %v4773, 0
      %v4809 = vsel %vm4798, %v4774, 0
      %v4812 = vsel %vm4798, %v4775, 0
      %v4815 = vsel %vm4798, %v4776, 0
      %v4818 = vsel %vm4798, %v4777, 0
      %v4821 = vsel %vm4798, %v4778, 0
      %v4824 = vsel %vm4798, %v4779, 0
      %v4827 = vsel %vm4798, %v4780, 0
      %v4830 = vsel %vm4798, %v4781, 0
      %v4833 = vsel %vm4798, %v4782, 0
      %v4836 = vsel %vm4798, %v4783, 0
      %v4839 = vsel %vm4798, %v4784, 0
      %v4842 = vsel %vm4798, %v4785, 0
      %v4845 = vsel %vm4798, %v4786, 0
      %vm4847 = vcmask 1044480
      %vm4848 = vcmask 1045504
      %v4849 = vsel %vm4847, 4294967295, 65535
      %v4850 = vsel %vm4848, %v4849, 0
      %v4852 = vand.u32 %v4796, %v4850
      %4854 = vmatprep.subr.bf16.mxu0 0
      %4855 = vmatpush1.bf16.msra.mxu0 0
      %4856 = vmatprep.subr.bf16.mxu0 0
      %4857 = vmatpush1.bf16.msra.mxu0 0
      %4858 = vmatprep.subr.bf16.mxu0 0
      %4859 = vmatpush1.bf16.msra.mxu0 0
      %4860 = vmatprep.subr.bf16.mxu0 0
      %4861 = vmatpush1.bf16.msra.mxu0 0
      %4862 = vmatprep.subr.bf16.mxu0 0
      %4863 = vmatpush1.bf16.msra.mxu0 0
      %4864 = vmatprep.subr.bf16.mxu0 0
      %4865 = vmatpush1.bf16.msra.mxu0 0
      %4866 = vmatprep.subr.bf16.mxu0 0
      %4867 = vmatpush1.bf16.msra.mxu0 %v4852
      %4868 = vmatprep.subr.bf16.mxu0 0
      %4869 = vmatpush1.bf16.msra.mxu0 %v4795
      %4870 = vmatprep.subr.bf16.mxu0 0
      %4871 = vmatpush2.bf16.msra.mxu0 0
      %4872 = vmatprep.subr.bf16.mxu0 0
      %4873 = vmatpush2.bf16.msra.mxu0 0
      %4874 = vmatprep.subr.bf16.mxu0 0
      %4875 = vmatpush2.bf16.msra.mxu0 0
      %4876 = vmatprep.subr.bf16.mxu0 0
      %4877 = vmatpush2.bf16.msra.mxu0 0
      %4878 = vmatprep.subr.bf16.mxu0 0
      %4879 = vmatpush2.bf16.msra.mxu0 0
      %4880 = vmatprep.subr.bf16.mxu0 0
      %4881 = vmatpush2.bf16.msra.mxu0 0
      %4882 = vmatprep.subr.bf16.mxu0 0
      %4883 = vmatpush2.bf16.msra.mxu0 0
      %4884 = vmatprep.subr.bf16.mxu0 0
      %4885 = vmatpush2.bf16.msra.mxu0 0
      %4886 = vmatprep.mubr.bf16.mxu0 0
      %4887 = vmatmul.mubr.bf16.gmra.mxu0 %v4800
      %v4888 = vpop.f32.mrf.mxu0
      %v4889 = vadd.f32 %v4705, %v4888
      %v4890 = vpop.f32.mrf.mxu0
      %v4891 = vpop.f32.mrf.mxu0
      %v4892 = vadd.f32 %v4705, %v4891
      %v4893 = vpop.f32.mrf.mxu0
      %4894 = vmatprep.mubr.bf16.mxu0 0
      %4895 = vmatmul.mubr.bf16.gmra.mxu0 %v4803
      %v4896 = vpop.f32.mrf.mxu0
      %v4897 = vadd.f32 %v4705, %v4896
      %v4898 = vpop.f32.mrf.mxu0
      %v4899 = vpop.f32.mrf.mxu0
      %v4900 = vadd.f32 %v4705, %v4899
      %v4901 = vpop.f32.mrf.mxu0
      %4902 = vmatprep.mubr.bf16.mxu0 0
      %4903 = vmatmul.mubr.bf16.gmra.mxu0 %v4806
      %v4904 = vpop.f32.mrf.mxu0
      %v4905 = vadd.f32 %v4705, %v4904
      %v4906 = vpop.f32.mrf.mxu0
      %v4907 = vpop.f32.mrf.mxu0
      %v4908 = vadd.f32 %v4705, %v4907
      %v4909 = vpop.f32.mrf.mxu0
      %4910 = vmatprep.mubr.bf16.mxu0 0
      %4911 = vmatmul.mubr.bf16.gmra.mxu0 %v4809
      %v4912 = vpop.f32.mrf.mxu0
      %v4913 = vadd.f32 %v4705, %v4912
      %v4914 = vpop.f32.mrf.mxu0
      %v4915 = vpop.f32.mrf.mxu0
      %v4916 = vadd.f32 %v4705, %v4915
      %v4917 = vpop.f32.mrf.mxu0
      %4918 = vmatprep.mubr.bf16.mxu0 0
      %4919 = vmatmul.mubr.bf16.gmra.mxu0 %v4812
      %v4920 = vpop.f32.mrf.mxu0
      %v4921 = vadd.f32 %v4705, %v4920
      %v4922 = vpop.f32.mrf.mxu0
      %v4923 = vpop.f32.mrf.mxu0
      %v4924 = vadd.f32 %v4705, %v4923
      %v4925 = vpop.f32.mrf.mxu0
      %4926 = vmatprep.mubr.bf16.mxu0 0
      %4927 = vmatmul.mubr.bf16.gmra.mxu0 %v4815
      %v4928 = vpop.f32.mrf.mxu0
      %v4929 = vadd.f32 %v4705, %v4928
      %v4930 = vpop.f32.mrf.mxu0
      %v4931 = vpop.f32.mrf.mxu0
      %v4932 = vadd.f32 %v4705, %v4931
      %v4933 = vpop.f32.mrf.mxu0
      %4934 = vmatprep.mubr.bf16.mxu0 0
      %4935 = vmatmul.mubr.bf16.gmra.mxu0 %v4818
      %v4936 = vpop.f32.mrf.mxu0
      %v4937 = vadd.f32 %v4705, %v4936
      %v4938 = vpop.f32.mrf.mxu0
      %v4939 = vpop.f32.mrf.mxu0
      %v4940 = vadd.f32 %v4705, %v4939
      %v4941 = vpop.f32.mrf.mxu0
      %4942 = vmatprep.mubr.bf16.mxu0 0
      %4943 = vmatmul.mubr.bf16.gmra.mxu0 %v4821
      %v4944 = vpop.f32.mrf.mxu0
      %v4945 = vadd.f32 %v4705, %v4944
      %v4946 = vpop.f32.mrf.mxu0
      %v4947 = vpop.f32.mrf.mxu0
      %v4948 = vadd.f32 %v4705, %v4947
      %v4949 = vpop.f32.mrf.mxu0
      %4950 = vmatprep.mubr.bf16.mxu0 0
      %4951 = vmatmul.mubr.bf16.gmra.mxu0 %v4824
      %v4952 = vpop.f32.mrf.mxu0
      %v4953 = vadd.f32 %v4705, %v4952
      %v4954 = vpop.f32.mrf.mxu0
      %v4955 = vpop.f32.mrf.mxu0
      %v4956 = vadd.f32 %v4705, %v4955
      %v4957 = vpop.f32.mrf.mxu0
      %4958 = vmatprep.mubr.bf16.mxu0 0
      %4959 = vmatmul.mubr.bf16.gmra.mxu0 %v4827
      %v4960 = vpop.f32.mrf.mxu0
      %v4961 = vadd.f32 %v4705, %v4960
      %v4962 = vpop.f32.mrf.mxu0
      %v4963 = vpop.f32.mrf.mxu0
      %v4964 = vadd.f32 %v4705, %v4963
      %v4965 = vpop.f32.mrf.mxu0
      %4966 = vmatprep.mubr.bf16.mxu0 0
      %4967 = vmatmul.mubr.bf16.gmra.mxu0 %v4830
      %v4968 = vpop.f32.mrf.mxu0
      %v4969 = vadd.f32 %v4705, %v4968
      %v4970 = vpop.f32.mrf.mxu0
      %v4971 = vpop.f32.mrf.mxu0
      %v4972 = vadd.f32 %v4705, %v4971
      %v4973 = vpop.f32.mrf.mxu0
      %4974 = vmatprep.mubr.bf16.mxu0 0
      %4975 = vmatmul.mubr.bf16.gmra.mxu0 %v4833
      %v4976 = vpop.f32.mrf.mxu0
      %v4977 = vadd.f32 %v4705, %v4976
      %v4978 = vpop.f32.mrf.mxu0
      %v4979 = vpop.f32.mrf.mxu0
      %v4980 = vadd.f32 %v4705, %v4979
      %v4981 = vpop.f32.mrf.mxu0
      %4982 = vmatprep.mubr.bf16.mxu0 0
      %4983 = vmatmul.mubr.bf16.gmra.mxu0 %v4836
      %v4984 = vpop.f32.mrf.mxu0
      %v4985 = vadd.f32 %v4705, %v4984
      %v4986 = vpop.f32.mrf.mxu0
      %v4987 = vpop.f32.mrf.mxu0
      %v4988 = vadd.f32 %v4705, %v4987
      %v4989 = vpop.f32.mrf.mxu0
      %4990 = vmatprep.mubr.bf16.mxu0 0
      %4991 = vmatmul.mubr.bf16.gmra.mxu0 %v4839
      %v4992 = vpop.f32.mrf.mxu0
      %v4993 = vadd.f32 %v4705, %v4992
      %v4994 = vpop.f32.mrf.mxu0
      %v4995 = vpop.f32.mrf.mxu0
      %v4996 = vadd.f32 %v4705, %v4995
      %v4997 = vpop.f32.mrf.mxu0
      %4998 = vmatprep.mubr.bf16.mxu0 0
      %4999 = vmatmul.mubr.bf16.gmra.mxu0 %v4842
      %v5000 = vpop.f32.mrf.mxu0
      %v5001 = vadd.f32 %v4705, %v5000
      %v5002 = vpop.f32.mrf.mxu0
      %v5003 = vpop.f32.mrf.mxu0
      %v5004 = vadd.f32 %v4705, %v5003
      %v5005 = vpop.f32.mrf.mxu0
      %5006 = vmatprep.mubr.bf16.mxu0 0
      %5007 = vmatmul.mubr.bf16.gmra.mxu0 %v4845
      %v5008 = vpop.f32.mrf.mxu0
      %v5009 = vadd.f32 %v4705, %v5008
      %v5010 = vpop.f32.mrf.mxu0
      %v5011 = vpop.f32.mrf.mxu0
      %v5012 = vadd.f32 %v4705, %v5011
      %v5013 = vpop.f32.mrf.mxu0
      %5014 = vdwg.mxu0
      %v5015 = vmax.f32 %v760, 0.0
      %v5016 = vmax.f32 %v763, 0.0
      %v5017 = vmax.f32 %v768, 0.0
      %v5018 = vmax.f32 %v771, 0.0
      %v5019 = vmax.f32 %v776, 0.0
      %v5020 = vmax.f32 %v779, 0.0
      %v5021 = vmax.f32 %v784, 0.0
      %v5022 = vmax.f32 %v787, 0.0
      %v5023 = vmax.f32 %v792, 0.0
      %v5024 = vmax.f32 %v795, 0.0
      %v5025 = vmax.f32 %v800, 0.0
      %v5026 = vmax.f32 %v803, 0.0
      %v5027 = vmax.f32 %v808, 0.0
      %v5028 = vmax.f32 %v811, 0.0
      %v5029 = vmax.f32 %v816, 0.0
      %v5030 = vmax.f32 %v819, 0.0
      %v5031 = vmax.f32 %v824, 0.0
      %v5032 = vmax.f32 %v827, 0.0
      %v5033 = vmax.f32 %v832, 0.0
      %v5034 = vmax.f32 %v835, 0.0
      %v5035 = vmax.f32 %v840, 0.0
      %v5036 = vmax.f32 %v843, 0.0
      %v5037 = vmax.f32 %v848, 0.0
      %v5038 = vmax.f32 %v851, 0.0
      %v5039 = vmax.f32 %v856, 0.0
      %v5040 = vmax.f32 %v859, 0.0
      %v5041 = vmax.f32 %v864, 0.0
      %v5042 = vmax.f32 %v867, 0.0
      %v5043 = vmax.f32 %v872, 0.0
      %v5044 = vmax.f32 %v875, 0.0
      %v5045 = vmax.f32 %v880, 0.0
      %v5046 = vmax.f32 %v883, 0.0
      %v5047 = vmax.f32 %v4889, 0.0
      %v5048 = vmax.f32 %v4892, 0.0
      %v5049 = vmax.f32 %v4897, 0.0
      %v5050 = vmax.f32 %v4900, 0.0
      %v5051 = vmax.f32 %v4905, 0.0
      %v5052 = vmax.f32 %v4908, 0.0
      %v5053 = vmax.f32 %v4913, 0.0
      %v5054 = vmax.f32 %v4916, 0.0
      %v5055 = vmax.f32 %v4921, 0.0
      %v5056 = vmax.f32 %v4924, 0.0
      %v5057 = vmax.f32 %v4929, 0.0
      %v5058 = vmax.f32 %v4932, 0.0
      %v5059 = vmax.f32 %v4937, 0.0
      %v5060 = vmax.f32 %v4940, 0.0
      %v5061 = vmax.f32 %v4945, 0.0
      %v5062 = vmax.f32 %v4948, 0.0
      %v5063 = vmax.f32 %v4953, 0.0
      %v5064 = vmax.f32 %v4956, 0.0
      %v5065 = vmax.f32 %v4961, 0.0
      %v5066 = vmax.f32 %v4964, 0.0
      %v5067 = vmax.f32 %v4969, 0.0
      %v5068 = vmax.f32 %v4972, 0.0
      %v5069 = vmax.f32 %v4977, 0.0
      %v5070 = vmax.f32 %v4980, 0.0
      %v5071 = vmax.f32 %v4985, 0.0
      %v5072 = vmax.f32 %v4988, 0.0
      %v5073 = vmax.f32 %v4993, 0.0
      %v5074 = vmax.f32 %v4996, 0.0
      %v5075 = vmax.f32 %v5001, 0.0
      %v5076 = vmax.f32 %v5004, 0.0
      %v5077 = vmax.f32 %v5009, 0.0
      %v5078 = vmax.f32 %v5012, 0.0
      %5111 = vrot.lane.b32.xlu0 %v5047, 4
      %v5112 = vpop.permute.xlu0 %5111
      %5113 = vrot.lane.b32.xlu0 %v5048, 4
      %v5114 = vpop.permute.xlu0 %5113
      %5115 = vrot.lane.b32.xlu0 %v5049, 4
      %v5116 = vpop.permute.xlu0 %5115
      %5117 = vrot.lane.b32.xlu0 %v5050, 4
      %v5118 = vpop.permute.xlu0 %5117
      %5119 = vrot.lane.b32.xlu0 %v5051, 4
      %v5120 = vpop.permute.xlu0 %5119
      %5121 = vrot.lane.b32.xlu0 %v5052, 4
      %v5122 = vpop.permute.xlu0 %5121
      %5123 = vrot.lane.b32.xlu0 %v5053, 4
      %v5124 = vpop.permute.xlu0 %5123
      %5125 = vrot.lane.b32.xlu0 %v5054, 4
      %v5126 = vpop.permute.xlu0 %5125
      %5127 = vrot.lane.b32.xlu0 %v5055, 4
      %v5128 = vpop.permute.xlu0 %5127
      %5129 = vrot.lane.b32.xlu0 %v5056, 4
      %v5130 = vpop.permute.xlu0 %5129
      %5131 = vrot.lane.b32.xlu0 %v5057, 4
      %v5132 = vpop.permute.xlu0 %5131
      %5133 = vrot.lane.b32.xlu0 %v5058, 4
      %v5134 = vpop.permute.xlu0 %5133
      %5135 = vrot.lane.b32.xlu0 %v5059, 4
      %v5136 = vpop.permute.xlu0 %5135
      %5137 = vrot.lane.b32.xlu0 %v5060, 4
      %v5138 = vpop.permute.xlu0 %5137
      %5139 = vrot.lane.b32.xlu0 %v5061, 4
      %v5140 = vpop.permute.xlu0 %5139
      %5141 = vrot.lane.b32.xlu0 %v5062, 4
      %v5142 = vpop.permute.xlu0 %5141
      %5143 = vrot.lane.b32.xlu0 %v5063, 4
      %v5144 = vpop.permute.xlu0 %5143
      %5145 = vrot.lane.b32.xlu0 %v5064, 4
      %v5146 = vpop.permute.xlu0 %5145
      %5147 = vrot.lane.b32.xlu0 %v5065, 4
      %v5148 = vpop.permute.xlu0 %5147
      %5149 = vrot.lane.b32.xlu0 %v5066, 4
      %v5150 = vpop.permute.xlu0 %5149
      %5151 = vrot.lane.b32.xlu0 %v5067, 4
      %v5152 = vpop.permute.xlu0 %5151
      %5153 = vrot.lane.b32.xlu0 %v5068, 4
      %v5154 = vpop.permute.xlu0 %5153
      %5155 = vrot.lane.b32.xlu0 %v5069, 4
      %v5156 = vpop.permute.xlu0 %5155
      %5157 = vrot.lane.b32.xlu0 %v5070, 4
      %v5158 = vpop.permute.xlu0 %5157
      %5159 = vrot.lane.b32.xlu0 %v5071, 4
      %v5160 = vpop.permute.xlu0 %5159
      %5161 = vrot.lane.b32.xlu0 %v5072, 4
      %v5162 = vpop.permute.xlu0 %5161
      %5163 = vrot.lane.b32.xlu0 %v5073, 4
      %v5164 = vpop.permute.xlu0 %5163
      %5165 = vrot.lane.b32.xlu0 %v5074, 4
      %v5166 = vpop.permute.xlu0 %5165
      %5167 = vrot.lane.b32.xlu0 %v5075, 4
      %v5168 = vpop.permute.xlu0 %5167
      %5169 = vrot.lane.b32.xlu0 %v5076, 4
      %v5170 = vpop.permute.xlu0 %5169
      %5171 = vrot.lane.b32.xlu0 %v5077, 4
      %v5172 = vpop.permute.xlu0 %5171
      %5173 = vrot.lane.b32.xlu0 %v5078, 4
      %v5174 = vpop.permute.xlu0 %5173
      %v5207 = vsel %vm400, %v5015, %v5112
      %v5208 = vsel %vm400, %v5016, %v5114
      %v5209 = vsel %vm400, %v5017, %v5116
      %v5210 = vsel %vm400, %v5018, %v5118
      %v5211 = vsel %vm400, %v5019, %v5120
      %v5212 = vsel %vm400, %v5020, %v5122
      %v5213 = vsel %vm400, %v5021, %v5124
      %v5214 = vsel %vm400, %v5022, %v5126
      %v5215 = vsel %vm400, %v5023, %v5128
      %v5216 = vsel %vm400, %v5024, %v5130
      %v5217 = vsel %vm400, %v5025, %v5132
      %v5218 = vsel %vm400, %v5026, %v5134
      %v5219 = vsel %vm400, %v5027, %v5136
      %v5220 = vsel %vm400, %v5028, %v5138
      %v5221 = vsel %vm400, %v5029, %v5140
      %v5222 = vsel %vm400, %v5030, %v5142
      %v5223 = vsel %vm400, %v5031, %v5144
      %v5224 = vsel %vm400, %v5032, %v5146
      %v5225 = vsel %vm400, %v5033, %v5148
      %v5226 = vsel %vm400, %v5034, %v5150
      %v5227 = vsel %vm400, %v5035, %v5152
      %v5228 = vsel %vm400, %v5036, %v5154
      %v5229 = vsel %vm400, %v5037, %v5156
      %v5230 = vsel %vm400, %v5038, %v5158
      %v5231 = vsel %vm400, %v5039, %v5160
      %v5232 = vsel %vm400, %v5040, %v5162
      %v5233 = vsel %vm400, %v5041, %v5164
      %v5234 = vsel %vm400, %v5042, %v5166
      %v5235 = vsel %vm400, %v5043, %v5168
      %v5236 = vsel %vm400, %v5044, %v5170
      %v5237 = vsel %vm400, %v5045, %v5172
      %v5238 = vsel %vm400, %v5046, %v5174
      %v5239 = vpack.c.bf16 %v5208, %v5207
      %v5240 = vpack.c.bf16 %v5210, %v5209
      %v5241 = vpack.c.bf16 %v5212, %v5211
      %v5242 = vpack.c.bf16 %v5214, %v5213
      %v5243 = vpack.c.bf16 %v5216, %v5215
      %v5244 = vpack.c.bf16 %v5218, %v5217
      %v5245 = vpack.c.bf16 %v5220, %v5219
      %v5246 = vpack.c.bf16 %v5222, %v5221
      %v5247 = vpack.c.bf16 %v5224, %v5223
      %v5248 = vpack.c.bf16 %v5226, %v5225
      %v5249 = vpack.c.bf16 %v5228, %v5227
      %v5250 = vpack.c.bf16 %v5230, %v5229
      %v5251 = vpack.c.bf16 %v5232, %v5231
      %v5252 = vpack.c.bf16 %v5234, %v5233
      %v5253 = vpack.c.bf16 %v5236, %v5235
      %v5254 = vpack.c.bf16 %v5238, %v5237
      %v5271 = vunpack.c.l.b16 %v5239
      %v5272 = vunpack.c.h.b16 %v5239
      %v5273 = vunpack.c.l.b16 %v5240
      %v5274 = vunpack.c.h.b16 %v5240
      %v5275 = vunpack.c.l.b16 %v5241
      %v5276 = vunpack.c.h.b16 %v5241
      %v5277 = vunpack.c.l.b16 %v5242
      %v5278 = vunpack.c.h.b16 %v5242
      %v5279 = vunpack.c.l.b16 %v5243
      %v5280 = vunpack.c.h.b16 %v5243
      %v5281 = vunpack.c.l.b16 %v5244
      %v5282 = vunpack.c.h.b16 %v5244
      %v5283 = vunpack.c.l.b16 %v5245
      %v5284 = vunpack.c.h.b16 %v5245
      %v5285 = vunpack.c.l.b16 %v5246
      %v5286 = vunpack.c.h.b16 %v5246
      %v5287 = vunpack.c.l.b16 %v5247
      %v5288 = vunpack.c.h.b16 %v5247
      %v5289 = vunpack.c.l.b16 %v5248
      %v5290 = vunpack.c.h.b16 %v5248
      %v5291 = vunpack.c.l.b16 %v5249
      %v5292 = vunpack.c.h.b16 %v5249
      %v5293 = vunpack.c.l.b16 %v5250
      %v5294 = vunpack.c.h.b16 %v5250
      %v5295 = vunpack.c.l.b16 %v5251
      %v5296 = vunpack.c.h.b16 %v5251
      %v5297 = vunpack.c.l.b16 %v5252
      %v5298 = vunpack.c.h.b16 %v5252
      %v5299 = vunpack.c.l.b16 %v5253
      %v5300 = vunpack.c.h.b16 %v5253
      %v5301 = vunpack.c.l.b16 %v5254
      %v5302 = vunpack.c.h.b16 %v5254
      %v5303 = vpack.c.b16 %v5271, %v5271
      %v5304 = vpack.c.b16 %v5272, %v5272
      %v5305 = vpack.c.b16 %v5273, %v5273
      %v5306 = vpack.c.b16 %v5274, %v5274
      %v5307 = vpack.c.b16 %v5275, %v5275
      %v5308 = vpack.c.b16 %v5276, %v5276
      %v5309 = vpack.c.b16 %v5277, %v5277
      %v5310 = vpack.c.b16 %v5278, %v5278
      %v5311 = vpack.c.b16 %v5279, %v5279
      %v5312 = vpack.c.b16 %v5280, %v5280
      %v5313 = vpack.c.b16 %v5281, %v5281
      %v5314 = vpack.c.b16 %v5282, %v5282
      %v5315 = vpack.c.b16 %v5283, %v5283
      %v5316 = vpack.c.b16 %v5284, %v5284
      %v5317 = vpack.c.b16 %v5285, %v5285
      %v5318 = vpack.c.b16 %v5286, %v5286
      %v5319 = vpack.c.b16 %v5287, %v5287
      %v5320 = vpack.c.b16 %v5288, %v5288
      %v5321 = vpack.c.b16 %v5289, %v5289
      %v5322 = vpack.c.b16 %v5290, %v5290
      %v5323 = vpack.c.b16 %v5291, %v5291
      %v5324 = vpack.c.b16 %v5292, %v5292
      %v5325 = vpack.c.b16 %v5293, %v5293
      %v5326 = vpack.c.b16 %v5294, %v5294
      %v5327 = vpack.c.b16 %v5295, %v5295
      %v5328 = vpack.c.b16 %v5296, %v5296
      %v5329 = vpack.c.b16 %v5297, %v5297
      %v5330 = vpack.c.b16 %v5298, %v5298
      %v5331 = vpack.c.b16 %v5299, %v5299
      %v5332 = vpack.c.b16 %v5300, %v5300
      %v5333 = vpack.c.b16 %v5301, %v5301
      %v5334 = vpack.c.b16 %v5302, %v5302
      %vm5367 = vcmask 60416
      %5368 = vst.msk [vmem:[%s278] sm:$0xf] %vm5367, %v5303
      %5369 = vst.msk [vmem:[%s278 + $0x4] sm:$0xf] %vm5367, %v5304
      %5370 = vst.msk [vmem:[%s278 + $0x8] sm:$0xf] %vm5367, %v5305
      %5371 = vst.msk [vmem:[%s278 + $0xc] sm:$0xf] %vm5367, %v5306
      %5372 = vst.msk [vmem:[%s278 + $0x10] sm:$0xf] %vm5367, %v5307
      %5373 = vst.msk [vmem:[%s278 + $0x14] sm:$0xf] %vm5367, %v5308
      %5374 = vst.msk [vmem:[%s278 + $0x18] sm:$0xf] %vm5367, %v5309
      %5375 = vst.msk [vmem:[%s278 + $0x1c] sm:$0xf] %vm5367, %v5310
      %5376 = vst.msk [vmem:[%s278 + $0x20] sm:$0xf] %vm5367, %v5311
      %5377 = vst.msk [vmem:[%s278 + $0x24] sm:$0xf] %vm5367, %v5312
      %5378 = vst.msk [vmem:[%s278 + $0x28] sm:$0xf] %vm5367, %v5313
      %5379 = vst.msk [vmem:[%s278 + $0x2c] sm:$0xf] %vm5367, %v5314
      %5380 = vst.msk [vmem:[%s278 + $0x30] sm:$0xf] %vm5367, %v5315
      %5381 = vst.msk [vmem:[%s278 + $0x34] sm:$0xf] %vm5367, %v5316
      %5382 = vst.msk [vmem:[%s278 + $0x38] sm:$0xf] %vm5367, %v5317
      %5383 = vst.msk [vmem:[%s278 + $0x3c] sm:$0xf] %vm5367, %v5318
      %5384 = vst.msk [vmem:[%s278 + $0x40] sm:$0xf] %vm5367, %v5319
      %5385 = vst.msk [vmem:[%s278 + $0x44] sm:$0xf] %vm5367, %v5320
      %5386 = vst.msk [vmem:[%s278 + $0x48] sm:$0xf] %vm5367, %v5321
      %5387 = vst.msk [vmem:[%s278 + $0x4c] sm:$0xf] %vm5367, %v5322
      %5388 = vst.msk [vmem:[%s278 + $0x50] sm:$0xf] %vm5367, %v5323
      %5389 = vst.msk [vmem:[%s278 + $0x54] sm:$0xf] %vm5367, %v5324
      %5390 = vst.msk [vmem:[%s278 + $0x58] sm:$0xf] %vm5367, %v5325
      %5391 = vst.msk [vmem:[%s278 + $0x5c] sm:$0xf] %vm5367, %v5326
      %5392 = vst.msk [vmem:[%s278 + $0x60] sm:$0xf] %vm5367, %v5327
      %5393 = vst.msk [vmem:[%s278 + $0x64] sm:$0xf] %vm5367, %v5328
      %5394 = vst.msk [vmem:[%s278 + $0x68] sm:$0xf] %vm5367, %v5329
      %5395 = vst.msk [vmem:[%s278 + $0x6c] sm:$0xf] %vm5367, %v5330
      %5396 = vst.msk [vmem:[%s278 + $0x70] sm:$0xf] %vm5367, %v5331
      %5397 = vst.msk [vmem:[%s278 + $0x74] sm:$0xf] %vm5367, %v5332
      %5398 = vst.msk [vmem:[%s278 + $0x78] sm:$0xf] %vm5367, %v5333
      %5399 = vst.msk [vmem:[%s278 + $0x7c] sm:$0xf] %vm5367, %v5334
      %p5400 = scmp.lt.s32.totalorder %s18, 1
      %s5401 = scalar_select %p5400, %s18, 1
      %s5402 = smul.addr %s5401, 32
      %s5403 = smul.addr %s5402, 4
      %s5404 = scalar_lea.vmem %s7, %s5403
      // Predicated region
      $region49: #{tpu_custom_call.1} parent=47 // pred_check
        %p5405 = pneg %p188
      $region50: #{tpu_custom_call.1} parent=47 // pred_check_branch
        %5407 = sbr.rel (%p5405) target = $region52
      $region51: #{tpu_custom_call.1} parent=47 // pred_region
        _
      $region52: #{tpu_custom_call.1} parent=47 // pred_fallthru
        _
    $region48: #{tpu_custom_call.1} parent=5 // pred_fallthru
      _
    %p5408 = scmp.le.s32.totalorder 2, %s13
    // Predicated region
    $region53: #{tpu_custom_call.1} parent=5 // pred_check
      %p5409 = pneg %p5408
    $region54: #{tpu_custom_call.1} parent=5 // pred_check_branch
      %5411 = sbr.rel (%p5409) target = $region56
    $region55: #{tpu_custom_call.1} parent=5 // pred_region
      %s5412 = ssub.s32 %s13, 2
      // Predicated region
      $region57: #{tpu_custom_call.1} parent=55 // pred_check
        %p5413 = pneg %p194
      $region58: #{tpu_custom_call.1} parent=55 // pred_check_branch
        %5415 = sbr.rel (%p5413) target = $region60
      $region59: #{tpu_custom_call.1} parent=55 // pred_region
        %p5416 = scmp.lt.s32.totalorder %s19, 1
        %s5417 = scalar_select %p5416, %s19, 1
        %s5418 = smul.addr %s5417, 32
        %s5419 = smul.addr %s5418, 4
        %s5420 = scalar_lea.vmem %s7, %s5419
      $region60: #{tpu_custom_call.1} parent=55 // pred_fallthru
        _
    $region56: #{tpu_custom_call.1} parent=5 // pred_fallthru
      _
  $region6: #{tpu_custom_call.1} parent=0 // loop_footer
    %s17 = sadd.s32 1, %s13
  $region7: #{tpu_custom_call.1} parent=0 // loop_footer_branch
    %12 = sbr.rel target = $region3
  $region8: #{tpu_custom_call.1} parent=0 // loop_exit
    _

</llo_original>
